<compile_context>
chip_gen: v7x
topology: tpu7x:2x2x1
jax: 0.10.0
libtpu: 0.0.40
codegen_flags: <defaults>
</compile_context>

<pallas_src>
import math
from functools import partial

import numpy as np
import jax
import jax.numpy as jnp
from jax.experimental import pallas as pl
from jax.experimental.pallas import tpu as pltpu

SQRT2 = float(np.sqrt(2.0))
BLUR_KERNEL = [1.0, 3.0, 3.0, 1.0]
VMEM_LIMIT = 32 * 1024 * 1024     # explicit VMEM budget (safe on v5e / v6e / v7x)


# ------------------------------ tile pickers --------------------------------

def _pick_m_tile(M):
    for t in (1024, 512, 256, 128, 64, 32, 16, 8):
        if M % t == 0:
            return t
    return M


def _pick_p_tile(P, CK):
    # keep the (CK, TP) bf16 patch block <= ~4 MiB so double-buffered blocks fit v7x VMEM
    cap = max(128, min(2048, (4 * 1024 * 1024) // max(1, 2 * CK)))
    if P <= cap:
        return P
    t = cap - (cap % 128)
    while t >= 128:
        if P % t == 0:
            return t
        t -= 128
    return P


def _pick_c_tile(C, Hp, Wp):
    cap = max(1, (4 * 1024 * 1024) // (Hp * Wp * 4))
    for t in range(min(C, cap), 0, -1):
        if C % t == 0:
            return t
    return 1


# ------------------------------ Pallas kernels ------------------------------

# ---- fused mapping network: PixelNorm + L x (EqualLinear + fused_leaky_relu) ----

def _mapping_kernel(z_ref, w_ref, b_ref, o_ref, *, n_layers):
    x = z_ref[...]
    x = x * jax.lax.rsqrt(jnp.mean(x * x, axis=1, keepdims=True) + 1e-8)  # PixelNorm
    for l in range(n_layers):                                             # small static loop
        x = jnp.dot(x, w_ref[l], preferred_element_type=jnp.float32) + b_ref[l]
        x = jnp.where(x >= 0, x, 0.2 * x) * SQRT2                         # fused_leaky_relu
    o_ref[...] = x


def pallas_mapping(z, w_stack, b_stack):
    M, D = z.shape
    L = w_stack.shape[0]
    TM = _pick_m_tile(M)
    return pl.pallas_call(
        partial(_mapping_kernel, n_layers=L),
        out_shape=jax.ShapeDtypeStruct((M, D), jnp.float32),
        grid=(M // TM,),
        in_specs=[
            pl.BlockSpec((TM, D), lambda i: (i, 0)),
            pl.BlockSpec((L, D, D), lambda i: (0, 0, 0)),
            pl.BlockSpec((L, 1, D), lambda i: (0, 0, 0)),
        ],
        out_specs=pl.BlockSpec((TM, D), lambda i: (i, 0)),
        compiler_params=pltpu.CompilerParams(
            dimension_semantics=("parallel",), vmem_limit_bytes=VMEM_LIMIT),
    )(z.astype(jnp.float32), w_stack.astype(jnp.float32), b_stack.astype(jnp.float32))


# ---- fused modulated conv: modulate(weight) + demod-scale + matmul + epilogue ----

def _modconv_kernel(p_ref, w_ref, s_ref, d_ref, *rest, mode):
    o_ref = rest[-1]
    # style modulation folded onto the small VMEM-resident weight (lane-aligned broadcast),
    # demodulation folded in as a precomputed per-(sample, Cout) scale.
    w = w_ref[...] * s_ref[0]                    # (Cout, CK) * (1, CK)
    w = w * d_ref[0]                             # (Cout, CK) * (Cout, 1)
    y = jnp.dot(w.astype(jnp.bfloat16), p_ref[0],
                preferred_element_type=jnp.float32)   # (Cout, TP); lane dim = H*W
    if mode == "act":                            # noise injection + bias + fused leaky relu
        n_ref, b_ref = rest[0], rest[1]
        y = y + n_ref[0] + b_ref[...]
        y = jnp.where(y >= 0, y, 0.2 * y) * SQRT2
    elif mode == "bias":                         # ToRGB: bias only
        y = y + rest[0][...]
    o_ref[0] = y


def pallas_modconv(patches, w_mat, s_exp, d_scale, *, mode="none", noise=None, bias=None):
    # patches: (B, CK, P)  (cast to bf16 here)
    # w_mat:   (Cout, CK)  base weight * scale, flattened over (Cin, kh, kw)
    # s_exp:   (B, 1, CK)  per-sample style repeated over kernel taps
    # d_scale: (B, Cout, 1) demodulation scale (ones when demodulate=False)
    # noise:   (B, 1, P)   already scaled by noise_weight (mode == "act")
    # bias:    (Cout, 1)   activation / rgb bias (mode in {"act", "bias"})
    B, CK, P = patches.shape
    Cout = w_mat.shape[0]
    TP = _pick_p_tile(P, CK)
    in_specs = [
        pl.BlockSpec((1, CK, TP), lambda b, p: (b, 0, p)),
        pl.BlockSpec((Cout, CK), lambda b, p: (0, 0)),
        pl.BlockSpec((1, 1, CK), lambda b, p: (b, 0, 0)),
        pl.BlockSpec((1, Cout, 1), lambda b, p: (b, 0, 0)),
    ]
    args = [patches.astype(jnp.bfloat16), w_mat.astype(jnp.float32),
            s_exp.astype(jnp.float32), d_scale.astype(jnp.float32)]
    if mode == "act":
        in_specs.append(pl.BlockSpec((1, 1, TP), lambda b, p: (b, 0, p)))
        args.append(noise.astype(jnp.float32))
    if mode in ("act", "bias"):
        in_specs.append(pl.BlockSpec((Cout, 1), lambda b, p: (0, 0)))
        args.append(bias.astype(jnp.float32))
    return pl.pallas_call(
        partial(_modconv_kernel, mode=mode),
        out_shape=jax.ShapeDtypeStruct((B, Cout, P), jnp.float32),
        grid=(B, P // TP),
        in_specs=in_specs,
        out_specs=pl.BlockSpec((1, Cout, TP), lambda b, p: (b, 0, p)),
        compiler_params=pltpu.CompilerParams(
            dimension_semantics=("parallel", "parallel"), vmem_limit_bytes=VMEM_LIMIT),
    )(*args)


# ---- fused separable blur (upfirdn2d, down=1) with optional noise/bias/lrelu epilogue ----

def _blur_kernel(x_ref, *rest, taps_w, taps_h, Ho, Wo, mode):
    o_ref = rest[-1]
    x = x_ref[...]                                    # (1, TC, Hp, Wp)
    yw = taps_w[0] * x[..., 0:Wo]                     # 4-tap FIR along W: shifted adds
    for t in range(1, len(taps_w)):
        yw = yw + taps_w[t] * x[..., t:t + Wo]
    y = taps_h[0] * yw[..., 0:Ho, :]                  # 4-tap FIR along H
    for t in range(1, len(taps_h)):
        y = y + taps_h[t] * yw[..., t:t + Ho, :]
    if mode == "act":                                 # noise + bias + fused leaky relu
        n_ref, b_ref = rest[0], rest[1]
        y = y + n_ref[...] + b_ref[...]
        y = jnp.where(y >= 0, y, 0.2 * y) * SQRT2
    o_ref[...] = y


def pallas_blur(x, pad, gain, *, up=1, mode="none", noise=None, bias=None):
    kn = np.asarray(BLUR_KERNEL, np.float64)
    kn = kn / kn.sum()
    kflip = kn[::-1]                                  # true convolution (kernel symmetric)
    taps_w = tuple(float(v) for v in kflip)
    taps_h = tuple(float(v * gain) for v in kflip)
    if up == 2:
        # TODO(synk): zero-insertion still materialized in HBM; only used for the tiny
        # 3-channel ToRGB skip branch.
        B, C, H, W = x.shape
        z = jnp.zeros((B, C, 2 * H, 2 * W), jnp.float32)
        x = z.at[:, :, ::2, ::2].set(x)
    xp = jnp.pad(x.astype(jnp.float32),
                 ((0, 0), (0, 0), (pad[0], pad[1]), (pad[0], pad[1])))
    B, C, Hp, Wp = xp.shape
    Ho, Wo = Hp - len(taps_h) + 1, Wp - len(taps_w) + 1
    TC = _pick_c_tile(C, Hp, Wp)
    in_specs = [pl.BlockSpec((1, TC, Hp, Wp), lambda b, c: (b, c, 0, 0))]
    args = [xp]
    if mode == "act":
        in_specs.append(pl.BlockSpec((1, 1, Ho, Wo), lambda b, c: (b, 0, 0, 0)))
        args.append(noise.astype(jnp.float32))
        in_specs.append(pl.BlockSpec((1, TC, 1, 1), lambda b, c: (0, c, 0, 0)))
        args.append(bias.astype(jnp.float32))
    return pl.pallas_call(
        partial(_blur_kernel, taps_w=taps_w, taps_h=taps_h, Ho=Ho, Wo=Wo, mode=mode),
        out_shape=jax.ShapeDtypeStruct((B, C, Ho, Wo), jnp.float32),
        grid=(B, C // TC),
        in_specs=in_specs,
        out_specs=pl.BlockSpec((1, TC, Ho, Wo), lambda b, c: (b, c, 0, 0)),
        compiler_params=pltpu.CompilerParams(
            dimension_semantics=("parallel", "parallel"), vmem_limit_bytes=VMEM_LIMIT),
    )(*args)


# --------------------------------- glue ------------------------------------

def im2col_ckp(x, k, pad):
    # (B, C, H, W) -> (B, C*k*k, Ho*Wo); CK order (ci, ky, kx) with ci slowest,
    # spatial index on the lane axis.
    if pad > 0:
        x = jnp.pad(x, ((0, 0), (0, 0), (pad, pad), (pad, pad)))
    B, C, Hp, Wp = x.shape
    Ho, Wo = Hp - k + 1, Wp - k + 1
    rows = []
    for ky in range(k):
        for kx in range(k):
            rows.append(x[:, :, ky:ky + Ho, kx:kx + Wo])
    col = jnp.stack(rows, axis=2)                     # (B, C, k*k, Ho, Wo)
    return col.reshape(B, C * k * k, Ho * Wo), Ho, Wo


def _style_and_demod(p, style, scale, demodulate):
    # Tiny (B, Cin) modulation EqualLinear and (B, Cout) demod scale stay in plain JAX
    # and are folded into the Pallas modconv (weight scale + per-output scale).
    lin_scale = 1.0 / math.sqrt(p['mod_w'].shape[1])
    s = style @ (p['mod_w'] * lin_scale).T + p['mod_b']          # (B, Cin)
    w = p['weight'][0].astype(jnp.float32) * scale               # (Cout, Cin, k, k)
    if demodulate:
        wsq = jnp.sum(w * w, axis=(2, 3))                        # (Cout, Cin)
        d = jax.lax.rsqrt((s * s) @ wsq.T + 1e-8)                # (B, Cout)
    else:
        d = jnp.ones((s.shape[0], w.shape[0]), jnp.float32)
    return s, d, w


def modconv_regular(x, p, style, *, demodulate, mode="none", noise=None, act_bias=None):
    B = x.shape[0]
    _, Cout, Cin, k, _ = p['weight'].shape
    scale = 1.0 / math.sqrt(Cin * k * k)
    s, d, w = _style_and_demod(p, style, scale, demodulate)
    patches, Ho, Wo = im2col_ckp(x, k, pad=k // 2)
    s_exp = jnp.repeat(s, k * k, axis=1)[:, None, :]             # (B, 1, Cin*k*k)
    out = pallas_modconv(patches, w.reshape(Cout, Cin * k * k), s_exp, d[:, :, None],
                         mode=mode, noise=noise, bias=act_bias)
    return out.reshape(B, Cout, Ho, Wo)


def _build_phase_weight(w):
    # Sub-pixel decomposition of the stride-2 transposed 3x3 conv into 4 output phases
    # merged into one (4*Cout, 4*Cin) matmul over 2x2 patches of the low-res input
    # (removes the 4x zero waste of zero-dilated im2col).
    Cout, Cin = w.shape[0], w.shape[1]
    wp = jnp.zeros((4, Cout, Cin, 2, 2), w.dtype)
    wp = wp.at[0, :, :, 0, 0].set(w[:, :, 2, 2])   # phase (even, even)
    wp = wp.at[0, :, :, 0, 1].set(w[:, :, 2, 0])
    wp = wp.at[0, :, :, 1, 0].set(w[:, :, 0, 2])
    wp = wp.at[0, :, :, 1, 1].set(w[:, :, 0, 0])
    wp = wp.at[1, :, :, 0, 1].set(w[:, :, 2, 1])   # phase (even, odd)
    wp = wp.at[1, :, :, 1, 1].set(w[:, :, 0, 1])
    wp = wp.at[2, :, :, 1, 0].set(w[:, :, 1, 2])   # phase (odd, even)
    wp = wp.at[2, :, :, 1, 1].set(w[:, :, 1, 0])
    wp = wp.at[3, :, :, 1, 1].set(w[:, :, 1, 1])   # phase (odd, odd)
    return wp.reshape(4 * Cout, Cin * 4)


def modconv_upsample(x, p, style, *, demodulate=True):
    B, Cin, H, W = x.shape
    _, Cout, _, k, _ = p['weight'].shape            # k == 3
    scale = 1.0 / math.sqrt(Cin * k * k)
    s, d, w = _style_and_demod(p, style, scale, demodulate)
    w_phase = _build_phase_weight(w)                # (4*Cout, 4*Cin)
    xp = jnp.pad(x, ((0, 0), (0, 0), (1, 1), (1, 1)))
    patches, Hh, Wh = im2col_ckp(xp, 2, pad=0)      # (B, 4*Cin, (H+1)*(W+1))
    s_exp = jnp.repeat(s, 4, axis=1)[:, None, :]
    d4 = jnp.tile(d, (1, 4))[:, :, None]            # same demod for all 4 phases
    out = pallas_modconv(patches, w_phase, s_exp, d4, mode="none")
    out = out.reshape(B, 4, Cout, Hh, Wh)
    # interleave phases == conv_transpose2d(stride=2) output of size (2H+1, 2W+1)
    y = jnp.zeros((B, Cout, 2 * H + 1, 2 * W + 1), jnp.float32)
    y = y.at[:, :, 0::2, 0::2].set(out[:, 0])
    y = y.at[:, :, 0::2, 1::2].set(out[:, 1, :, :, :W])
    y = y.at[:, :, 1::2, 0::2].set(out[:, 2, :, :H, :])
    y = y.at[:, :, 1::2, 1::2].set(out[:, 3, :, :H, :W])
    return y


def styled_conv(x, p, style, noise, upsample=False):
    Cout = p['conv']['weight'].shape[1]
    bias = p['act_bias'].reshape(Cout, 1).astype(jnp.float32)
    noise_s = p['noise_weight'][0] * noise                      # (B, 1, Ho, Wo)
    if upsample:
        y = modconv_upsample(x, p['conv'], style, demodulate=True)
        # blur (upfirdn pad=(1,1), gain=4) with fused noise + bias + leaky relu epilogue
        return pallas_blur(y, pad=(1, 1), gain=4.0, mode="act",
                           noise=noise_s, bias=bias.reshape(1, Cout, 1, 1))
    B, _, H, W = x.shape
    return modconv_regular(x, p['conv'], style, demodulate=True, mode="act",
                           noise=noise_s.reshape(B, 1, H * W), act_bias=bias)


def to_rgb(x, p, style, skip=None):
    out = modconv_regular(x, p['conv'], style, demodulate=False, mode="bias",
                          act_bias=p['bias'].reshape(3, 1))
    if skip is not None:
        skip = pallas_blur(skip, pad=(2, 1), gain=4.0, up=2)    # Upsample(blur_kernel, 2)
        out = out + skip
    return out


def style_forward(params, z):
    lr_mul = 0.01
    ws, bs = [], []
    for (w, b) in params['mapping']:
        scale = (1.0 / math.sqrt(w.shape[1])) * lr_mul
        ws.append((w * scale).T)
        bs.append((b * lr_mul)[None, :])
    return pallas_mapping(z, jnp.stack(ws), jnp.stack(bs))


def generator_forward(params, styles, noise, return_latents=False, inject_index=None,
                      truncation=1.0, truncation_latent=None, input_is_latent=False):
    if not input_is_latent:
        styles = [style_forward(params, s) for s in styles]

    if truncation < 1:
        styles = [truncation_latent + truncation * (s - truncation_latent) for s in styles]

    n_latent = params['n_latent']
    if len(styles) < 2:
        inject_index = n_latent
        if styles[0].ndim < 3:
            latent = jnp.repeat(styles[0][:, None, :], inject_index, axis=1)
        else:
            latent = styles[0]
    else:
        if inject_index is None:
            # TODO(synk): original uses random.randint(1, n_latent - 1); deterministic stand-in.
            inject_index = max(1, n_latent // 2)
        latent = jnp.repeat(styles[0][:, None, :], inject_index, axis=1)
        latent2 = jnp.repeat(styles[1][:, None, :], n_latent - inject_index, axis=1)
        latent = jnp.concatenate([latent, latent2], axis=1)

    batch = latent.shape[0]
    out = jnp.repeat(params['const'], batch, axis=0)                 # ConstantInput
    out = styled_conv(out, params['conv1'], latent[:, 0], noise[0], upsample=False)
    skip = to_rgb(out, params['to_rgb1'], latent[:, 1], skip=None)

    i = 1
    for (conv_up, conv_same), trgb, n1, n2 in zip(params['convs'], params['to_rgbs'],
                                                  noise[1::2], noise[2::2]):
        out = styled_conv(out, conv_up, latent[:, i], n1, upsample=True)
        out = styled_conv(out, conv_same, latent[:, i + 1], n2, upsample=False)
        skip = to_rgb(out, trgb, latent[:, i + 2], skip=skip)
        i += 2

    image = skip
    if return_latents:
        return image, latent
    return image, None


# ------------------------------ parameters ---------------------------------

def init_generator_params(key, latent_size, map_layers, img_size, channels):
    log_size = int(math.log2(img_size))
    n_latent = log_size * 2 - 2
    num_layers = (log_size - 2) * 2 + 1

    keys = list(jax.random.split(key, 256))
    kit = iter(keys)

    def randn(shape):
        return jax.random.normal(next(kit), shape, jnp.float32)

    params = {'n_latent': n_latent, 'num_layers': num_layers, 'log_size': log_size}

    lr_mul = 0.01
    params['mapping'] = [(randn((latent_size, latent_size)) / lr_mul,
                          jnp.zeros((latent_size,), jnp.float32))
                         for _ in range(map_layers)]

    def modconv_params(cin, cout, k):
        return {'weight': randn((1, cout, cin, k, k)),
                'mod_w': randn((cin, latent_size)),
                'mod_b': jnp.ones((cin,), jnp.float32)}     # EqualLinear bias_init=1

    def styled_conv_params(cin, cout, k):
        return {'conv': modconv_params(cin, cout, k),
                # NoiseInjection weight is zero at __init__; small nonzero used here so the
                # noise path is actually exercised with synthetic weights.
                'noise_weight': jnp.full((1,), 0.05, jnp.float32),
                'act_bias': jnp.zeros((cout,), jnp.float32)}

    def to_rgb_params(cin):
        return {'conv': modconv_params(cin, 3, 1),
                'bias': jnp.zeros((1, 3, 1, 1), jnp.float32)}

    params['const'] = randn((1, channels[4], 4, 4))
    params['conv1'] = styled_conv_params(channels[4], channels[4], 3)
    params['to_rgb1'] = to_rgb_params(channels[4])

    convs, to_rgbs = [], []
    in_ch = channels[4]
    for i in range(3, log_size + 1):
        out_ch = channels[2 ** i]
        convs.append((styled_conv_params(in_ch, out_ch, 3),    # upsample StyledConv
                      styled_conv_params(out_ch, out_ch, 3)))  # regular StyledConv
        to_rgbs.append(to_rgb_params(out_ch))
        in_ch = out_ch
    params['convs'] = convs
    params['to_rgbs'] = to_rgbs
    return params


class SG2GeneratorPallas:
    """Pallas/JAX port of ZSSGAN's SG2Generator forward (synthetic deterministic weights)."""

    def __init__(self, key, latent_size=32, map_layers=2, img_size=8,
                 channel_multiplier=2, channels=None, mean_latent_samples=4096):
        # TODO(synk): torch.load of the g_ema checkpoint has no Pallas equivalent;
        # weights are deterministic synthetic initializations with the same shapes
        # (channel widths scaled down for a small demo).
        if channels is None:
            channels = {4: 16, 8: 16, 16: 16, 32: 16}
        del channel_multiplier  # only affects resolutions >= 64 in the original table
        k_param, k_lat = jax.random.split(key)
        self.latent_size = latent_size
        self.img_size = img_size
        self.params = init_generator_params(k_param, latent_size, map_layers,
                                            img_size, channels)
        # mean_latent(4096), as in SG2Generator.__init__
        z = jax.random.normal(k_lat, (mean_latent_samples, latent_size), jnp.float32)
        self.mean_latent = jnp.mean(style_forward(self.params, z), axis=0, keepdims=True)

    def style(self, styles):
        return [style_forward(self.params, s) for s in styles]

    def _make_noise(self, key, batch):
        log_size = self.params['log_size']
        keys = jax.random.split(key, self.params['num_layers'])
        noises = [jax.random.normal(keys[0], (batch, 1, 4, 4), jnp.float32)]
        idx = 1
        for i in range(3, log_size + 1):
            res = 2 ** i
            for _ in range(2):
                noises.append(jax.random.normal(keys[idx], (batch, 1, res, res), jnp.float32))
                idx += 1
        return noises

    def __call__(self, styles, return_latents=False, inject_index=None, truncation=1,
                 truncation_latent=None, input_is_latent=False, input_is_s_code=False,
                 noise=None, randomize_noise=True, noise_key=None):
        # TODO(synk): input_is_s_code / get_s_code (S-space) path not implemented.
        batch = styles[0].shape[0]
        if noise is None:
            key = noise_key if noise_key is not None else jax.random.PRNGKey(1)
            if not randomize_noise:
                key = jax.random.PRNGKey(0)   # stands in for the fixed registered noise buffers
            noise = self._make_noise(key, batch)
        return generator_forward(self.params, styles, noise,
                                 return_latents=return_latents,
                                 inject_index=inject_index,
                                 truncation=truncation,
                                 truncation_latent=self.mean_latent,
                                 input_is_latent=input_is_latent)


if __name__ == "__main__":
    key = jax.random.PRNGKey(0)
    k_model, k_z, k_noise = jax.random.split(key, 3)

    B, LATENT = 2, 32
    G = SG2GeneratorPallas(k_model, latent_size=LATENT, map_layers=2, img_size=8,
                           mean_latent_samples=4096)

    z = jax.random.normal(k_z, (B, LATENT), jnp.float32)
    image, _ = G([z], truncation=1, randomize_noise=True, noise_key=k_noise)
    image = jax.block_until_ready(image)

    assert image.shape == (B, 3, 8, 8), image.shape
    assert bool(jnp.all(jnp.isfinite(image)))
    print("KERNEL_OK")
</pallas_src>

<mosaic_0001>
module attributes {stable_mosaic.version = 11 : i64} {
  func.func @_mapping_kernel(%arg0: i32, %arg1: memref<1024x32xf32, #tpu.memory_space<vmem>>, %arg2: memref<2x32x32xf32, #tpu.memory_space<vmem>>, %arg3: memref<2x1x32xf32, #tpu.memory_space<vmem>>, %arg4: memref<1024x32xf32, #tpu.memory_space<vmem>>) attributes {dimension_semantics = [#tpu.dimension_semantics<parallel>], iteration_bounds = array<i64: 4>, scalar_prefetch = 0 : i64, scratch_operands = 0 : i64, tpu.core_type = #tpu.core_type<tc>, window_params = [{transform_indices = @transform_0, window_bounds = array<i64: 1024, 32>}, {pipeline_mode = #tpu.pipeline_mode<synchronous>, transform_indices = @transform_1, window_bounds = array<i64: 2, 32, 32>}, {pipeline_mode = #tpu.pipeline_mode<synchronous>, transform_indices = @transform_2, window_bounds = array<i64: 2, 1, 32>}, {transform_indices = @transform_3, window_bounds = array<i64: 1024, 32>}]} {
    %c0 = arith.constant 0 : index
    %c0_0 = arith.constant 0 : index
    %0 = vector.load %arg1[%c0, %c0_0] : memref<1024x32xf32, #tpu.memory_space<vmem>>, vector<1024x32xf32>
    %1 = arith.mulf %0, %0 : vector<1024x32xf32>
    %cst = arith.constant dense<0.000000e+00> : vector<1024xf32>
    %2 = vector.multi_reduction <add>, %1, %cst [1] : vector<1024x32xf32> to vector<1024xf32>
    %3 = vector.shape_cast %2 : vector<1024xf32> to vector<1024x1xf32>
    %cst_1 = arith.constant 3.200000e+01 : f32
    %4 = vector.broadcast %cst_1 : f32 to vector<1024x1xf32>
    %5 = arith.divf %3, %4 : vector<1024x1xf32>
    %cst_2 = arith.constant 9.99999993E-9 : f32
    %6 = vector.broadcast %cst_2 : f32 to vector<1024x1xf32>
    %7 = arith.addf %5, %6 : vector<1024x1xf32>
    %8 = math.rsqrt %7 : vector<1024x1xf32>
    %9 = vector.broadcast %8 : vector<1024x1xf32> to vector<1024x32xf32>
    %10 = arith.mulf %0, %9 : vector<1024x32xf32>
    %c0_3 = arith.constant 0 : index
    %c0_4 = arith.constant 0 : index
    %c0_5 = arith.constant 0 : index
    %11 = vector.load %arg2[%c0_3, %c0_4, %c0_5] : memref<2x32x32xf32, #tpu.memory_space<vmem>>, vector<1x32x32xf32>
    %12 = vector.shape_cast %11 : vector<1x32x32xf32> to vector<32x32xf32>
    %cst_6 = arith.constant dense<0.000000e+00> : vector<1024x32xf32>
    %13 = tpu.matmul %10, %12, %cst_6 {dimension_numbers = #tpu.dot_dimension_numbers<[1], [0], [0], [1], [0, 0, 1, 1], [], []>} : vector<1024x32xf32>, vector<32x32xf32>, vector<1024x32xf32> -> vector<1024x32xf32>
    %c0_7 = arith.constant 0 : index
    %c0_8 = arith.constant 0 : index
    %c0_9 = arith.constant 0 : index
    %14 = vector.load %arg3[%c0_7, %c0_8, %c0_9] : memref<2x1x32xf32, #tpu.memory_space<vmem>>, vector<1x1x32xf32>
    %15 = vector.shape_cast %14 : vector<1x1x32xf32> to vector<1x32xf32>
    %16 = vector.broadcast %15 : vector<1x32xf32> to vector<1024x32xf32>
    %17 = arith.addf %13, %16 : vector<1024x32xf32>
    %cst_10 = arith.constant 0.000000e+00 : f32
    %18 = vector.broadcast %cst_10 : f32 to vector<1024x32xf32>
    %19 = arith.cmpf oge, %17, %18 : vector<1024x32xf32>
    %cst_11 = arith.constant 2.000000e-01 : f32
    %20 = vector.broadcast %cst_11 : f32 to vector<1024x32xf32>
    %21 = arith.mulf %20, %17 : vector<1024x32xf32>
    %22 = arith.select %19, %17, %21 : vector<1024x32xi1>, vector<1024x32xf32>
    %cst_12 = arith.constant 1.41421354 : f32
    %23 = vector.broadcast %cst_12 : f32 to vector<1024x32xf32>
    %24 = arith.mulf %22, %23 : vector<1024x32xf32>
    %c1 = arith.constant 1 : index
    %c0_13 = arith.constant 0 : index
    %c0_14 = arith.constant 0 : index
    %25 = vector.load %arg2[%c1, %c0_13, %c0_14] : memref<2x32x32xf32, #tpu.memory_space<vmem>>, vector<1x32x32xf32>
    %26 = vector.shape_cast %25 : vector<1x32x32xf32> to vector<32x32xf32>
    %cst_15 = arith.constant dense<0.000000e+00> : vector<1024x32xf32>
    %27 = tpu.matmul %24, %26, %cst_15 {dimension_numbers = #tpu.dot_dimension_numbers<[1], [0], [0], [1], [0, 0, 1, 1], [], []>} : vector<1024x32xf32>, vector<32x32xf32>, vector<1024x32xf32> -> vector<1024x32xf32>
    %c1_16 = arith.constant 1 : index
    %c0_17 = arith.constant 0 : index
    %c0_18 = arith.constant 0 : index
    %28 = vector.load %arg3[%c1_16, %c0_17, %c0_18] : memref<2x1x32xf32, #tpu.memory_space<vmem>>, vector<1x1x32xf32>
    %29 = vector.shape_cast %28 : vector<1x1x32xf32> to vector<1x32xf32>
    %30 = vector.broadcast %29 : vector<1x32xf32> to vector<1024x32xf32>
    %31 = arith.addf %27, %30 : vector<1024x32xf32>
    %cst_19 = arith.constant 0.000000e+00 : f32
    %32 = vector.broadcast %cst_19 : f32 to vector<1024x32xf32>
    %33 = arith.cmpf oge, %31, %32 : vector<1024x32xf32>
    %cst_20 = arith.constant 2.000000e-01 : f32
    %34 = vector.broadcast %cst_20 : f32 to vector<1024x32xf32>
    %35 = arith.mulf %34, %31 : vector<1024x32xf32>
    %36 = arith.select %33, %31, %35 : vector<1024x32xi1>, vector<1024x32xf32>
    %cst_21 = arith.constant 1.41421354 : f32
    %37 = vector.broadcast %cst_21 : f32 to vector<1024x32xf32>
    %38 = arith.mulf %36, %37 : vector<1024x32xf32>
    %c0_22 = arith.constant 0 : index
    %c0_23 = arith.constant 0 : index
    %39 = vector.load %arg4[%c0_22, %c0_23] : memref<1024x32xf32, #tpu.memory_space<vmem>>, vector<1024x32xf32>
    tpu.vector_store %arg4[%c0_22, %c0_23], %38 {strides = array<i32>} : memref<1024x32xf32, #tpu.memory_space<vmem>>, vector<1024x32xf32>,
    return
  }
  func.func @transform_0(%arg0: i32) -> (i32, i32) {
    %c0_i32 = arith.constant 0 : i32
    %c0_i32_0 = arith.constant 0 : i32
    return %arg0, %c0_i32 : i32, i32
  }
  func.func @transform_1(%arg0: i32) -> (i32, i32, i32) {
    %c0_i32 = arith.constant 0 : i32
    %c0_i32_0 = arith.constant 0 : i32
    %c0_i32_1 = arith.constant 0 : i32
    %c0_i32_2 = arith.constant 0 : i32
    return %c0_i32, %c0_i32_0, %c0_i32_1 : i32, i32, i32
  }
  func.func @transform_2(%arg0: i32) -> (i32, i32, i32) {
    %c0_i32 = arith.constant 0 : i32
    %c0_i32_0 = arith.constant 0 : i32
    %c0_i32_1 = arith.constant 0 : i32
    %c0_i32_2 = arith.constant 0 : i32
    return %c0_i32, %c0_i32_0, %c0_i32_1 : i32, i32, i32
  }
  func.func @transform_3(%arg0: i32) -> (i32, i32) {
    %c0_i32 = arith.constant 0 : i32
    %c0_i32_0 = arith.constant 0 : i32
    return %arg0, %c0_i32 : i32, i32
  }
}

</mosaic_0001>

<llo_original>
// kernel: tpu_custom_call.1
$region0: #{tpu_custom_call.1}
  #allocation0 [shape = 'u32[]', space=smem, size = 0x4, offset = 0x4, fixed_abs, tag = 'smem constant byte address 0x4 - core index']
  #allocation1 [shape = 'u32[144,128]{1,0:T(1,128)}', space=vmem, size = 0x12000, scoped, tag = 'internal scratch']
  %s0 = inlined_call_operand.vmem [shape: f32[4096,32], index: 0, kind: input, shape index: {}]
  %s1 = inlined_call_operand.vmem [shape: f32[2,32,32], index: 1, kind: input, shape index: {}]
  %s2 = inlined_call_operand.vmem [shape: f32[2,1,32], index: 2, kind: input, shape index: {}]
  %s3 = inlined_call_operand.vmem [shape: f32[4096,32], index: 3, kind: output, shape index: {}]
  %s4 = sld [smem:[#allocation0]]
  $region45: #{tpu_custom_call.1} parent=0
    _
  %s6 = ssub.s32 1, %s4
  %s7 = scalar_select 0, %s6, %s4
  loop: start=0, step=1, limit=6
  $region2: #{tpu_custom_call.1} parent=0 // loop_pre_header
    _
  $region3: #{tpu_custom_call.1} parent=0 // loop_header
    %s9 = sphi 0, %s13
    %p10 = scmp.ge.s32.totalorder %s9, 6
    %s19 = sphi 0, %s21
    %s22 = sphi 0, %s19
    %s23 = sphi 0, %s22
    %s39 = sphi 0, %s23
    %s43 = sphi 0, %s43
    %s45 = sphi 0, %s43
    %s46 = sphi 0, %s45
    %s60 = sphi 0, %s46
    %s64 = sphi 0, %s64
    %s66 = sphi 0, %s64
    %s67 = sphi 0, %s66
    %s81 = sphi 0, %s67
    %s87 = sphi 0, %s89
    %s90 = sphi 0, %s87
    %s91 = sphi 0, %s90
    %s107 = sphi 0, %s91
  $region4: #{tpu_custom_call.1} parent=0 // loop_header_branch
    %12 = sbr.rel (%p10) target = $region8
  $region5: #{tpu_custom_call.1} parent=0 // loop_body
    %s14 = ssub.s32 %s9, 1
    %s15 = ssub.s32 %s9, 2
    %s16 = sadd.s32 %s9, 1
    %s17 = ssub.s32 %s9, %s16
    %p18 = scmp.eq.s32.totalorder %s17, 0
    %s20 = sadd.s32 %s19, 1
    %s21 = scalar_select %p18, %s19, %s20
    %p24 = pneg %p18
    %p25 = scmp.eq.s32.totalorder %s9, 3
    %p26 = por %p24, %p25
    %p27 = scmp.ne.s32.totalorder %s19, %s22
    %p28 = scmp.eq.s32.totalorder %s9, 0
    %p29 = por %p27, %p28
    %p30 = scmp.ne.s32.totalorder %s19, %s22
    %p31 = scmp.eq.s32.totalorder %s14, 3
    %p32 = por %p30, %p31
    %p33 = scmp.ne.s32.totalorder %s22, %s23
    %p34 = scmp.eq.s32.totalorder %s14, 0
    %p35 = por %p33, %p34
    %p36 = scmp.ne.s32.totalorder %s22, %s23
    %p37 = scmp.eq.s32.totalorder %s15, 3
    %p38 = por %p36, %p37
    %p40 = scmp.ne.s32.totalorder %s23, %s39
    %p41 = scmp.eq.s32.totalorder %s15, 0
    %p42 = por %p40, %p41
    %s44 = sadd.s32 %s43, 1
    %p47 = scmp.eq.s32.totalorder %s9, 3
    %p48 = scmp.ne.s32.totalorder %s43, %s45
    %p49 = scmp.eq.s32.totalorder %s9, 0
    %p50 = por %p48, %p49
    %p51 = scmp.ne.s32.totalorder %s43, %s45
    %p52 = scmp.eq.s32.totalorder %s14, 3
    %p53 = por %p51, %p52
    %p54 = scmp.ne.s32.totalorder %s45, %s46
    %p55 = scmp.eq.s32.totalorder %s14, 0
    %p56 = por %p54, %p55
    %p57 = scmp.ne.s32.totalorder %s45, %s46
    %p58 = scmp.eq.s32.totalorder %s15, 3
    %p59 = por %p57, %p58
    %p61 = scmp.ne.s32.totalorder %s46, %s60
    %p62 = scmp.eq.s32.totalorder %s15, 0
    %p63 = por %p61, %p62
    %s65 = sadd.s32 %s64, 1
    %p68 = scmp.eq.s32.totalorder %s9, 3
    %p69 = scmp.ne.s32.totalorder %s64, %s66
    %p70 = scmp.eq.s32.totalorder %s9, 0
    %p71 = por %p69, %p70
    %p72 = scmp.ne.s32.totalorder %s64, %s66
    %p73 = scmp.eq.s32.totalorder %s14, 3
    %p74 = por %p72, %p73
    %p75 = scmp.ne.s32.totalorder %s66, %s67
    %p76 = scmp.eq.s32.totalorder %s14, 0
    %p77 = por %p75, %p76
    %p78 = scmp.ne.s32.totalorder %s66, %s67
    %p79 = scmp.eq.s32.totalorder %s15, 3
    %p80 = por %p78, %p79
    %p82 = scmp.ne.s32.totalorder %s67, %s81
    %p83 = scmp.eq.s32.totalorder %s15, 0
    %p84 = por %p82, %p83
    %s85 = ssub.s32 %s9, %s16
    %p86 = scmp.eq.s32.totalorder %s85, 0
    %s88 = sadd.s32 %s87, 1
    %s89 = scalar_select %p86, %s87, %s88
    %p92 = pneg %p86
    %p93 = scmp.eq.s32.totalorder %s9, 3
    %p94 = por %p92, %p93
    %p95 = scmp.ne.s32.totalorder %s87, %s90
    %p96 = scmp.eq.s32.totalorder %s9, 0
    %p97 = por %p95, %p96
    %p98 = scmp.ne.s32.totalorder %s87, %s90
    %p99 = scmp.eq.s32.totalorder %s14, 3
    %p100 = por %p98, %p99
    %p101 = scmp.ne.s32.totalorder %s90, %s91
    %p102 = scmp.eq.s32.totalorder %s14, 0
    %p103 = por %p101, %p102
    %p104 = scmp.ne.s32.totalorder %s90, %s91
    %p105 = scmp.eq.s32.totalorder %s15, 3
    %p106 = por %p104, %p105
    %p108 = scmp.ne.s32.totalorder %s91, %s107
    %p109 = scmp.eq.s32.totalorder %s15, 0
    %p110 = por %p108, %p109
    %p111 = scmp.le.s32.totalorder 1, %s9
    %p112 = scmp.lt.s32.totalorder %s9, 5
    %p113 = pnand %p111, %p112
    %p114 = pneg %p113
    // Predicated region
    $region9: #{tpu_custom_call.1} parent=5 // pred_check
      _
    $region10: #{tpu_custom_call.1} parent=5 // pred_check_branch
      %116 = sbr.rel (%p113) target = $region12
    $region11: #{tpu_custom_call.1} parent=5 // pred_region
      %s117 = ssub.s32 %s9, 1
      // Predicated region
      $region13: #{tpu_custom_call.1} parent=11 // pred_check
        %p118 = pneg %p56
      $region14: #{tpu_custom_call.1} parent=11 // pred_check_branch
        %120 = sbr.rel (%p118) target = $region16
      $region15: #{tpu_custom_call.1} parent=11 // pred_region
        _
      $region16: #{tpu_custom_call.1} parent=11 // pred_fallthru
        _
      // Predicated region
      $region17: #{tpu_custom_call.1} parent=11 // pred_check
        %p121 = pneg %p77
      $region18: #{tpu_custom_call.1} parent=11 // pred_check_branch
        %123 = sbr.rel (%p121) target = $region20
      $region19: #{tpu_custom_call.1} parent=11 // pred_region
        _
      $region20: #{tpu_custom_call.1} parent=11 // pred_fallthru
        _
    $region12: #{tpu_custom_call.1} parent=5 // pred_fallthru
      _
    %p124 = scmp.lt.s32.totalorder %s9, 4
    // Predicated region
    $region21: #{tpu_custom_call.1} parent=5 // pred_check
      %p125 = pneg %p124
    $region22: #{tpu_custom_call.1} parent=5 // pred_check_branch
      %127 = sbr.rel (%p125) target = $region24
    $region23: #{tpu_custom_call.1} parent=5 // pred_region
      // Predicated region
      $region25: #{tpu_custom_call.1} parent=23 // pred_check
        %p128 = pneg %p29
      $region26: #{tpu_custom_call.1} parent=23 // pred_check_branch
        %130 = sbr.rel (%p128) target = $region28
      $region27: #{tpu_custom_call.1} parent=23 // pred_region
        %s131 = smul.u32 128, %s9
        %p132 = scmp.lt.s32.totalorder %s131, 511
        %s133 = scalar_select %p132, %s131, 511
        %s134 = smul.addr %s133, 8
        %s135 = scalar_lea.vmem %s0, %s134
        %s136 = smul.u32 128, %s9
      $region28: #{tpu_custom_call.1} parent=23 // pred_fallthru
        _
    $region24: #{tpu_custom_call.1} parent=5 // pred_fallthru
      _
    %p137 = scmp.le.s32.totalorder 1, %s9
    %p138 = scmp.lt.s32.totalorder %s9, 5
    %p139 = pnand %p137, %p138
    %p140 = pneg %p139
    // Predicated region
    $region29: #{tpu_custom_call.1} parent=5 // pred_check
      _
    $region30: #{tpu_custom_call.1} parent=5 // pred_check_branch
      %142 = sbr.rel (%p139) target = $region32
    $region31: #{tpu_custom_call.1} parent=5 // pred_region
      %s143 = ssub.s32 %s9, 1
      %s144 = smul.u32 128, %s14
      %p145 = scmp.lt.s32.totalorder %s144, 511
      %s146 = scalar_select %p145, %s144, 511
      %s147 = smul.addr %s146, 8
      %s148 = scalar_lea.vmem %s0, %s147
      %p149 = pneg %p35
      %p150 = pneg %p32
      %p151 = pneg %p56
      %p152 = pneg %p53
      %p153 = pneg %p77
      %p154 = pneg %p74
      %p155 = pneg %p103
      %p156 = pneg %p100
      %s157 = smul.u32 128, %s14
      %p158 = scmp.lt.s32.totalorder %s157, 511
      %s159 = scalar_select %p158, %s157, 511
      %s160 = smul.addr %s159, 8
      %s161 = scalar_lea.vmem %s3, %s160
      %s162 = smul.u32 128, %s14
      %p163 = scmp.lt.s32.totalorder %s162, 511
      %s164 = scalar_select %p163, %s162, 511
      %s165 = smul.addr %s164, 8
      %s166 = scalar_lea.vmem %s0, %s165
      %s167 = smul.u32 128, %s14
      %s168 = smul.u32 128, %s14
      %p169 = scmp.lt.s32.totalorder %s168, 511
      %s170 = scalar_select %p169, %s168, 511
      %s171 = smul.addr %s170, 8
      %s172 = scalar_lea.vmem %s3, %s171
      %s173 = smul.u32 128, %s14
      %v174 = vld [vmem:[%s166] sm:$0xff]
      %v175 = vld [vmem:[%s166 + $0x8] sm:$0xff]
      %v176 = vld [vmem:[%s166 + $0x10] sm:$0xff]
      %v177 = vld [vmem:[%s166 + $0x18] sm:$0xff]
      %v178 = vld [vmem:[%s166 + $0x20] sm:$0xff]
      %v179 = vld [vmem:[%s166 + $0x28] sm:$0xff]
      %v180 = vld [vmem:[%s166 + $0x30] sm:$0xff]
      %v181 = vld [vmem:[%s166 + $0x38] sm:$0xff]
      %v182 = vld [vmem:[%s166 + $0x40] sm:$0xff]
      %v183 = vld [vmem:[%s166 + $0x48] sm:$0xff]
      %v184 = vld [vmem:[%s166 + $0x50] sm:$0xff]
      %v185 = vld [vmem:[%s166 + $0x58] sm:$0xff]
      %v186 = vld [vmem:[%s166 + $0x60] sm:$0xff]
      %v187 = vld [vmem:[%s166 + $0x68] sm:$0xff]
      %v188 = vld [vmem:[%s166 + $0x70] sm:$0xff]
      %v189 = vld [vmem:[%s166 + $0x78] sm:$0xff]
      %v190 = vld [vmem:[%s166 + $0x80] sm:$0xff]
      %v191 = vld [vmem:[%s166 + $0x88] sm:$0xff]
      %v192 = vld [vmem:[%s166 + $0x90] sm:$0xff]
      %v193 = vld [vmem:[%s166 + $0x98] sm:$0xff]
      %v194 = vld [vmem:[%s166 + $0xa0] sm:$0xff]
      %v195 = vld [vmem:[%s166 + $0xa8] sm:$0xff]
      %v196 = vld [vmem:[%s166 + $0xb0] sm:$0xff]
      %v197 = vld [vmem:[%s166 + $0xb8] sm:$0xff]
      %v198 = vld [vmem:[%s166 + $0xc0] sm:$0xff]
      %v199 = vld [vmem:[%s166 + $0xc8] sm:$0xff]
      %v200 = vld [vmem:[%s166 + $0xd0] sm:$0xff]
      %v201 = vld [vmem:[%s166 + $0xd8] sm:$0xff]
      %v202 = vld [vmem:[%s166 + $0xe0] sm:$0xff]
      %v203 = vld [vmem:[%s166 + $0xe8] sm:$0xff]
      %v204 = vld [vmem:[%s166 + $0xf0] sm:$0xff]
      %v205 = vld [vmem:[%s166 + $0xf8] sm:$0xff]
      %v206 = vld [vmem:[%s166 + $0x100] sm:$0xff]
      %v207 = vld [vmem:[%s166 + $0x108] sm:$0xff]
      %v208 = vld [vmem:[%s166 + $0x110] sm:$0xff]
      %v209 = vld [vmem:[%s166 + $0x118] sm:$0xff]
      %v210 = vld [vmem:[%s166 + $0x120] sm:$0xff]
      %v211 = vld [vmem:[%s166 + $0x128] sm:$0xff]
      %v212 = vld [vmem:[%s166 + $0x130] sm:$0xff]
      %v213 = vld [vmem:[%s166 + $0x138] sm:$0xff]
      %v214 = vld [vmem:[%s166 + $0x140] sm:$0xff]
      %v215 = vld [vmem:[%s166 + $0x148] sm:$0xff]
      %v216 = vld [vmem:[%s166 + $0x150] sm:$0xff]
      %v217 = vld [vmem:[%s166 + $0x158] sm:$0xff]
      %v218 = vld [vmem:[%s166 + $0x160] sm:$0xff]
      %v219 = vld [vmem:[%s166 + $0x168] sm:$0xff]
      %v220 = vld [vmem:[%s166 + $0x170] sm:$0xff]
      %v221 = vld [vmem:[%s166 + $0x178] sm:$0xff]
      %v222 = vld [vmem:[%s166 + $0x180] sm:$0xff]
      %v223 = vld [vmem:[%s166 + $0x188] sm:$0xff]
      %v224 = vld [vmem:[%s166 + $0x190] sm:$0xff]
      %v225 = vld [vmem:[%s166 + $0x198] sm:$0xff]
      %v226 = vld [vmem:[%s166 + $0x1a0] sm:$0xff]
      %v227 = vld [vmem:[%s166 + $0x1a8] sm:$0xff]
      %v228 = vld [vmem:[%s166 + $0x1b0] sm:$0xff]
      %v229 = vld [vmem:[%s166 + $0x1b8] sm:$0xff]
      %v230 = vld [vmem:[%s166 + $0x1c0] sm:$0xff]
      %v231 = vld [vmem:[%s166 + $0x1c8] sm:$0xff]
      %v232 = vld [vmem:[%s166 + $0x1d0] sm:$0xff]
      %v233 = vld [vmem:[%s166 + $0x1d8] sm:$0xff]
      %v234 = vld [vmem:[%s166 + $0x1e0] sm:$0xff]
      %v235 = vld [vmem:[%s166 + $0x1e8] sm:$0xff]
      %v236 = vld [vmem:[%s166 + $0x1f0] sm:$0xff]
      %v237 = vld [vmem:[%s166 + $0x1f8] sm:$0xff]
      %v238 = vld [vmem:[%s166 + $0x200] sm:$0xff]
      %v239 = vld [vmem:[%s166 + $0x208] sm:$0xff]
      %v240 = vld [vmem:[%s166 + $0x210] sm:$0xff]
      %v241 = vld [vmem:[%s166 + $0x218] sm:$0xff]
      %v242 = vld [vmem:[%s166 + $0x220] sm:$0xff]
      %v243 = vld [vmem:[%s166 + $0x228] sm:$0xff]
      %v244 = vld [vmem:[%s166 + $0x230] sm:$0xff]
      %v245 = vld [vmem:[%s166 + $0x238] sm:$0xff]
      %v246 = vld [vmem:[%s166 + $0x240] sm:$0xff]
      %v247 = vld [vmem:[%s166 + $0x248] sm:$0xff]
      %v248 = vld [vmem:[%s166 + $0x250] sm:$0xff]
      %v249 = vld [vmem:[%s166 + $0x258] sm:$0xff]
      %v250 = vld [vmem:[%s166 + $0x260] sm:$0xff]
      %v251 = vld [vmem:[%s166 + $0x268] sm:$0xff]
      %v252 = vld [vmem:[%s166 + $0x270] sm:$0xff]
      %v253 = vld [vmem:[%s166 + $0x278] sm:$0xff]
      %v254 = vld [vmem:[%s166 + $0x280] sm:$0xff]
      %v255 = vld [vmem:[%s166 + $0x288] sm:$0xff]
      %v256 = vld [vmem:[%s166 + $0x290] sm:$0xff]
      %v257 = vld [vmem:[%s166 + $0x298] sm:$0xff]
      %v258 = vld [vmem:[%s166 + $0x2a0] sm:$0xff]
      %v259 = vld [vmem:[%s166 + $0x2a8] sm:$0xff]
      %v260 = vld [vmem:[%s166 + $0x2b0] sm:$0xff]
      %v261 = vld [vmem:[%s166 + $0x2b8] sm:$0xff]
      %v262 = vld [vmem:[%s166 + $0x2c0] sm:$0xff]
      %v263 = vld [vmem:[%s166 + $0x2c8] sm:$0xff]
      %v264 = vld [vmem:[%s166 + $0x2d0] sm:$0xff]
      %v265 = vld [vmem:[%s166 + $0x2d8] sm:$0xff]
      %v266 = vld [vmem:[%s166 + $0x2e0] sm:$0xff]
      %v267 = vld [vmem:[%s166 + $0x2e8] sm:$0xff]
      %v268 = vld [vmem:[%s166 + $0x2f0] sm:$0xff]
      %v269 = vld [vmem:[%s166 + $0x2f8] sm:$0xff]
      %v270 = vld [vmem:[%s166 + $0x300] sm:$0xff]
      %v271 = vld [vmem:[%s166 + $0x308] sm:$0xff]
      %v272 = vld [vmem:[%s166 + $0x310] sm:$0xff]
      %v273 = vld [vmem:[%s166 + $0x318] sm:$0xff]
      %v274 = vld [vmem:[%s166 + $0x320] sm:$0xff]
      %v275 = vld [vmem:[%s166 + $0x328] sm:$0xff]
      %v276 = vld [vmem:[%s166 + $0x330] sm:$0xff]
      %v277 = vld [vmem:[%s166 + $0x338] sm:$0xff]
      %v278 = vld [vmem:[%s166 + $0x340] sm:$0xff]
      %v279 = vld [vmem:[%s166 + $0x348] sm:$0xff]
      %v280 = vld [vmem:[%s166 + $0x350] sm:$0xff]
      %v281 = vld [vmem:[%s166 + $0x358] sm:$0xff]
      %v282 = vld [vmem:[%s166 + $0x360] sm:$0xff]
      %v283 = vld [vmem:[%s166 + $0x368] sm:$0xff]
      %v284 = vld [vmem:[%s166 + $0x370] sm:$0xff]
      %v285 = vld [vmem:[%s166 + $0x378] sm:$0xff]
      %v286 = vld [vmem:[%s166 + $0x380] sm:$0xff]
      %v287 = vld [vmem:[%s166 + $0x388] sm:$0xff]
      %v288 = vld [vmem:[%s166 + $0x390] sm:$0xff]
      %v289 = vld [vmem:[%s166 + $0x398] sm:$0xff]
      %v290 = vld [vmem:[%s166 + $0x3a0] sm:$0xff]
      %v291 = vld [vmem:[%s166 + $0x3a8] sm:$0xff]
      %v292 = vld [vmem:[%s166 + $0x3b0] sm:$0xff]
      %v293 = vld [vmem:[%s166 + $0x3b8] sm:$0xff]
      %v294 = vld [vmem:[%s166 + $0x3c0] sm:$0xff]
      %v295 = vld [vmem:[%s166 + $0x3c8] sm:$0xff]
      %v296 = vld [vmem:[%s166 + $0x3d0] sm:$0xff]
      %v297 = vld [vmem:[%s166 + $0x3d8] sm:$0xff]
      %v298 = vld [vmem:[%s166 + $0x3e0] sm:$0xff]
      %v299 = vld [vmem:[%s166 + $0x3e8] sm:$0xff]
      %v300 = vld [vmem:[%s166 + $0x3f0] sm:$0xff]
      %v301 = vld [vmem:[%s166 + $0x3f8] sm:$0xff]
      %v302 = vmul.f32 %v174, %v174
      %v303 = vmul.f32 %v175, %v175
      %v304 = vmul.f32 %v176, %v176
      %v305 = vmul.f32 %v177, %v177
      %v306 = vmul.f32 %v178, %v178
      %v307 = vmul.f32 %v179, %v179
      %v308 = vmul.f32 %v180, %v180
      %v309 = vmul.f32 %v181, %v181
      %v310 = vmul.f32 %v182, %v182
      %v311 = vmul.f32 %v183, %v183
      %v312 = vmul.f32 %v184, %v184
      %v313 = vmul.f32 %v185, %v185
      %v314 = vmul.f32 %v186, %v186
      %v315 = vmul.f32 %v187, %v187
      %v316 = vmul.f32 %v188, %v188
      %v317 = vmul.f32 %v189, %v189
      %v318 = vmul.f32 %v190, %v190
      %v319 = vmul.f32 %v191, %v191
      %v320 = vmul.f32 %v192, %v192
      %v321 = vmul.f32 %v193, %v193
      %v322 = vmul.f32 %v194, %v194
      %v323 = vmul.f32 %v195, %v195
      %v324 = vmul.f32 %v196, %v196
      %v325 = vmul.f32 %v197, %v197
      %v326 = vmul.f32 %v198, %v198
      %v327 = vmul.f32 %v199, %v199
      %v328 = vmul.f32 %v200, %v200
      %v329 = vmul.f32 %v201, %v201
      %v330 = vmul.f32 %v202, %v202
      %v331 = vmul.f32 %v203, %v203
      %v332 = vmul.f32 %v204, %v204
      %v333 = vmul.f32 %v205, %v205
      %v334 = vmul.f32 %v206, %v206
      %v335 = vmul.f32 %v207, %v207
      %v336 = vmul.f32 %v208, %v208
      %v337 = vmul.f32 %v209, %v209
      %v338 = vmul.f32 %v210, %v210
      %v339 = vmul.f32 %v211, %v211
      %v340 = vmul.f32 %v212, %v212
      %v341 = vmul.f32 %v213, %v213
      %v342 = vmul.f32 %v214, %v214
      %v343 = vmul.f32 %v215, %v215
      %v344 = vmul.f32 %v216, %v216
      %v345 = vmul.f32 %v217, %v217
      %v346 = vmul.f32 %v218, %v218
      %v347 = vmul.f32 %v219, %v219
      %v348 = vmul.f32 %v220, %v220
      %v349 = vmul.f32 %v221, %v221
      %v350 = vmul.f32 %v222, %v222
      %v351 = vmul.f32 %v223, %v223
      %v352 = vmul.f32 %v224, %v224
      %v353 = vmul.f32 %v225, %v225
      %v354 = vmul.f32 %v226, %v226
      %v355 = vmul.f32 %v227, %v227
      %v356 = vmul.f32 %v228, %v228
      %v357 = vmul.f32 %v229, %v229
      %v358 = vmul.f32 %v230, %v230
      %v359 = vmul.f32 %v231, %v231
      %v360 = vmul.f32 %v232, %v232
      %v361 = vmul.f32 %v233, %v233
      %v362 = vmul.f32 %v234, %v234
      %v363 = vmul.f32 %v235, %v235
      %v364 = vmul.f32 %v236, %v236
      %v365 = vmul.f32 %v237, %v237
      %v366 = vmul.f32 %v238, %v238
      %v367 = vmul.f32 %v239, %v239
      %v368 = vmul.f32 %v240, %v240
      %v369 = vmul.f32 %v241, %v241
      %v370 = vmul.f32 %v242, %v242
      %v371 = vmul.f32 %v243, %v243
      %v372 = vmul.f32 %v244, %v244
      %v373 = vmul.f32 %v245, %v245
      %v374 = vmul.f32 %v246, %v246
      %v375 = vmul.f32 %v247, %v247
      %v376 = vmul.f32 %v248, %v248
      %v377 = vmul.f32 %v249, %v249
      %v378 = vmul.f32 %v250, %v250
      %v379 = vmul.f32 %v251, %v251
      %v380 = vmul.f32 %v252, %v252
      %v381 = vmul.f32 %v253, %v253
      %v382 = vmul.f32 %v254, %v254
      %v383 = vmul.f32 %v255, %v255
      %v384 = vmul.f32 %v256, %v256
      %v385 = vmul.f32 %v257, %v257
      %v386 = vmul.f32 %v258, %v258
      %v387 = vmul.f32 %v259, %v259
      %v388 = vmul.f32 %v260, %v260
      %v389 = vmul.f32 %v261, %v261
      %v390 = vmul.f32 %v262, %v262
      %v391 = vmul.f32 %v263, %v263
      %v392 = vmul.f32 %v264, %v264
      %v393 = vmul.f32 %v265, %v265
      %v394 = vmul.f32 %v266, %v266
      %v395 = vmul.f32 %v267, %v267
      %v396 = vmul.f32 %v268, %v268
      %v397 = vmul.f32 %v269, %v269
      %v398 = vmul.f32 %v270, %v270
      %v399 = vmul.f32 %v271, %v271
      %v400 = vmul.f32 %v272, %v272
      %v401 = vmul.f32 %v273, %v273
      %v402 = vmul.f32 %v274, %v274
      %v403 = vmul.f32 %v275, %v275
      %v404 = vmul.f32 %v276, %v276
      %v405 = vmul.f32 %v277, %v277
      %v406 = vmul.f32 %v278, %v278
      %v407 = vmul.f32 %v279, %v279
      %v408 = vmul.f32 %v280, %v280
      %v409 = vmul.f32 %v281, %v281
      %v410 = vmul.f32 %v282, %v282
      %v411 = vmul.f32 %v283, %v283
      %v412 = vmul.f32 %v284, %v284
      %v413 = vmul.f32 %v285, %v285
      %v414 = vmul.f32 %v286, %v286
      %v415 = vmul.f32 %v287, %v287
      %v416 = vmul.f32 %v288, %v288
      %v417 = vmul.f32 %v289, %v289
      %v418 = vmul.f32 %v290, %v290
      %v419 = vmul.f32 %v291, %v291
      %v420 = vmul.f32 %v292, %v292
      %v421 = vmul.f32 %v293, %v293
      %v422 = vmul.f32 %v294, %v294
      %v423 = vmul.f32 %v295, %v295
      %v424 = vmul.f32 %v296, %v296
      %v425 = vmul.f32 %v297, %v297
      %v426 = vmul.f32 %v298, %v298
      %v427 = vmul.f32 %v299, %v299
      %v428 = vmul.f32 %v300, %v300
      %v429 = vmul.f32 %v301, %v301
      %vm430 = vcmask 261120
      %v431 = vsel %vm430, %v302, 0.0
      %432 = vadd.xlane.f32.xlu0 %v431
      %v433 = vpop.xlane.xlu0 %432
      %v434 = vsel %vm430, %v303, 0.0
      %435 = vadd.xlane.f32.xlu0 %v434
      %v436 = vpop.xlane.xlu0 %435
      %v437 = vsel %vm430, %v304, 0.0
      %438 = vadd.xlane.f32.xlu0 %v437
      %v439 = vpop.xlane.xlu0 %438
      %v440 = vsel %vm430, %v305, 0.0
      %441 = vadd.xlane.f32.xlu0 %v440
      %v442 = vpop.xlane.xlu0 %441
      %v443 = vsel %vm430, %v306, 0.0
      %444 = vadd.xlane.f32.xlu0 %v443
      %v445 = vpop.xlane.xlu0 %444
      %v446 = vsel %vm430, %v307, 0.0
      %447 = vadd.xlane.f32.xlu0 %v446
      %v448 = vpop.xlane.xlu0 %447
      %v449 = vsel %vm430, %v308, 0.0
      %450 = vadd.xlane.f32.xlu0 %v449
      %v451 = vpop.xlane.xlu0 %450
      %v452 = vsel %vm430, %v309, 0.0
      %453 = vadd.xlane.f32.xlu0 %v452
      %v454 = vpop.xlane.xlu0 %453
      %v455 = vsel %vm430, %v310, 0.0
      %456 = vadd.xlane.f32.xlu0 %v455
      %v457 = vpop.xlane.xlu0 %456
      %v458 = vsel %vm430, %v311, 0.0
      %459 = vadd.xlane.f32.xlu0 %v458
      %v460 = vpop.xlane.xlu0 %459
      %v461 = vsel %vm430, %v312, 0.0
      %462 = vadd.xlane.f32.xlu0 %v461
      %v463 = vpop.xlane.xlu0 %462
      %v464 = vsel %vm430, %v313, 0.0
      %465 = vadd.xlane.f32.xlu0 %v464
      %v466 = vpop.xlane.xlu0 %465
      %v467 = vsel %vm430, %v314, 0.0
      %468 = vadd.xlane.f32.xlu0 %v467
      %v469 = vpop.xlane.xlu0 %468
      %v470 = vsel %vm430, %v315, 0.0
      %471 = vadd.xlane.f32.xlu0 %v470
      %v472 = vpop.xlane.xlu0 %471
      %v473 = vsel %vm430, %v316, 0.0
      %474 = vadd.xlane.f32.xlu0 %v473
      %v475 = vpop.xlane.xlu0 %474
      %v476 = vsel %vm430, %v317, 0.0
      %477 = vadd.xlane.f32.xlu0 %v476
      %v478 = vpop.xlane.xlu0 %477
      %v479 = vsel %vm430, %v318, 0.0
      %480 = vadd.xlane.f32.xlu0 %v479
      %v481 = vpop.xlane.xlu0 %480
      %v482 = vsel %vm430, %v319, 0.0
      %483 = vadd.xlane.f32.xlu0 %v482
      %v484 = vpop.xlane.xlu0 %483
      %v485 = vsel %vm430, %v320, 0.0
      %486 = vadd.xlane.f32.xlu0 %v485
      %v487 = vpop.xlane.xlu0 %486
      %v488 = vsel %vm430, %v321, 0.0
      %489 = vadd.xlane.f32.xlu0 %v488
      %v490 = vpop.xlane.xlu0 %489
      %v491 = vsel %vm430, %v322, 0.0
      %492 = vadd.xlane.f32.xlu0 %v491
      %v493 = vpop.xlane.xlu0 %492
      %v494 = vsel %vm430, %v323, 0.0
      %495 = vadd.xlane.f32.xlu0 %v494
      %v496 = vpop.xlane.xlu0 %495
      %v497 = vsel %vm430, %v324, 0.0
      %498 = vadd.xlane.f32.xlu0 %v497
      %v499 = vpop.xlane.xlu0 %498
      %v500 = vsel %vm430, %v325, 0.0
      %501 = vadd.xlane.f32.xlu0 %v500
      %v502 = vpop.xlane.xlu0 %501
      %v503 = vsel %vm430, %v326, 0.0
      %504 = vadd.xlane.f32.xlu0 %v503
      %v505 = vpop.xlane.xlu0 %504
      %v506 = vsel %vm430, %v327, 0.0
      %507 = vadd.xlane.f32.xlu0 %v506
      %v508 = vpop.xlane.xlu0 %507
      %v509 = vsel %vm430, %v328, 0.0
      %510 = vadd.xlane.f32.xlu0 %v509
      %v511 = vpop.xlane.xlu0 %510
      %v512 = vsel %vm430, %v329, 0.0
      %513 = vadd.xlane.f32.xlu0 %v512
      %v514 = vpop.xlane.xlu0 %513
      %v515 = vsel %vm430, %v330, 0.0
      %516 = vadd.xlane.f32.xlu0 %v515
      %v517 = vpop.xlane.xlu0 %516
      %v518 = vsel %vm430, %v331, 0.0
      %519 = vadd.xlane.f32.xlu0 %v518
      %v520 = vpop.xlane.xlu0 %519
      %v521 = vsel %vm430, %v332, 0.0
      %522 = vadd.xlane.f32.xlu0 %v521
      %v523 = vpop.xlane.xlu0 %522
      %v524 = vsel %vm430, %v333, 0.0
      %525 = vadd.xlane.f32.xlu0 %v524
      %v526 = vpop.xlane.xlu0 %525
      %v527 = vsel %vm430, %v334, 0.0
      %528 = vadd.xlane.f32.xlu0 %v527
      %v529 = vpop.xlane.xlu0 %528
      %v530 = vsel %vm430, %v335, 0.0
      %531 = vadd.xlane.f32.xlu0 %v530
      %v532 = vpop.xlane.xlu0 %531
      %v533 = vsel %vm430, %v336, 0.0
      %534 = vadd.xlane.f32.xlu0 %v533
      %v535 = vpop.xlane.xlu0 %534
      %v536 = vsel %vm430, %v337, 0.0
      %537 = vadd.xlane.f32.xlu0 %v536
      %v538 = vpop.xlane.xlu0 %537
      %v539 = vsel %vm430, %v338, 0.0
      %540 = vadd.xlane.f32.xlu0 %v539
      %v541 = vpop.xlane.xlu0 %540
      %v542 = vsel %vm430, %v339, 0.0
      %543 = vadd.xlane.f32.xlu0 %v542
      %v544 = vpop.xlane.xlu0 %543
      %v545 = vsel %vm430, %v340, 0.0
      %546 = vadd.xlane.f32.xlu0 %v545
      %v547 = vpop.xlane.xlu0 %546
      %v548 = vsel %vm430, %v341, 0.0
      %549 = vadd.xlane.f32.xlu0 %v548
      %v550 = vpop.xlane.xlu0 %549
      %v551 = vsel %vm430, %v342, 0.0
      %552 = vadd.xlane.f32.xlu0 %v551
      %v553 = vpop.xlane.xlu0 %552
      %v554 = vsel %vm430, %v343, 0.0
      %555 = vadd.xlane.f32.xlu0 %v554
      %v556 = vpop.xlane.xlu0 %555
      %v557 = vsel %vm430, %v344, 0.0
      %558 = vadd.xlane.f32.xlu0 %v557
      %v559 = vpop.xlane.xlu0 %558
      %v560 = vsel %vm430, %v345, 0.0
      %561 = vadd.xlane.f32.xlu0 %v560
      %v562 = vpop.xlane.xlu0 %561
      %v563 = vsel %vm430, %v346, 0.0
      %564 = vadd.xlane.f32.xlu0 %v563
      %v565 = vpop.xlane.xlu0 %564
      %v566 = vsel %vm430, %v347, 0.0
      %567 = vadd.xlane.f32.xlu0 %v566
      %v568 = vpop.xlane.xlu0 %567
      %v569 = vsel %vm430, %v348, 0.0
      %570 = vadd.xlane.f32.xlu0 %v569
      %v571 = vpop.xlane.xlu0 %570
      %v572 = vsel %vm430, %v349, 0.0
      %573 = vadd.xlane.f32.xlu0 %v572
      %v574 = vpop.xlane.xlu0 %573
      %v575 = vsel %vm430, %v350, 0.0
      %576 = vadd.xlane.f32.xlu0 %v575
      %v577 = vpop.xlane.xlu0 %576
      %v578 = vsel %vm430, %v351, 0.0
      %579 = vadd.xlane.f32.xlu0 %v578
      %v580 = vpop.xlane.xlu0 %579
      %v581 = vsel %vm430, %v352, 0.0
      %582 = vadd.xlane.f32.xlu0 %v581
      %v583 = vpop.xlane.xlu0 %582
      %v584 = vsel %vm430, %v353, 0.0
      %585 = vadd.xlane.f32.xlu0 %v584
      %v586 = vpop.xlane.xlu0 %585
      %v587 = vsel %vm430, %v354, 0.0
      %588 = vadd.xlane.f32.xlu0 %v587
      %v589 = vpop.xlane.xlu0 %588
      %v590 = vsel %vm430, %v355, 0.0
      %591 = vadd.xlane.f32.xlu0 %v590
      %v592 = vpop.xlane.xlu0 %591
      %v593 = vsel %vm430, %v356, 0.0
      %594 = vadd.xlane.f32.xlu0 %v593
      %v595 = vpop.xlane.xlu0 %594
      %v596 = vsel %vm430, %v357, 0.0
      %597 = vadd.xlane.f32.xlu0 %v596
      %v598 = vpop.xlane.xlu0 %597
      %v599 = vsel %vm430, %v358, 0.0
      %600 = vadd.xlane.f32.xlu0 %v599
      %v601 = vpop.xlane.xlu0 %600
      %v602 = vsel %vm430, %v359, 0.0
      %603 = vadd.xlane.f32.xlu0 %v602
      %v604 = vpop.xlane.xlu0 %603
      %v605 = vsel %vm430, %v360, 0.0
      %606 = vadd.xlane.f32.xlu0 %v605
      %v607 = vpop.xlane.xlu0 %606
      %v608 = vsel %vm430, %v361, 0.0
      %609 = vadd.xlane.f32.xlu0 %v608
      %v610 = vpop.xlane.xlu0 %609
      %v611 = vsel %vm430, %v362, 0.0
      %612 = vadd.xlane.f32.xlu0 %v611
      %v613 = vpop.xlane.xlu0 %612
      %v614 = vsel %vm430, %v363, 0.0
      %615 = vadd.xlane.f32.xlu0 %v614
      %v616 = vpop.xlane.xlu0 %615
      %v617 = vsel %vm430, %v364, 0.0
      %618 = vadd.xlane.f32.xlu0 %v617
      %v619 = vpop.xlane.xlu0 %618
      %v620 = vsel %vm430, %v365, 0.0
      %621 = vadd.xlane.f32.xlu0 %v620
      %v622 = vpop.xlane.xlu0 %621
      %v623 = vsel %vm430, %v366, 0.0
      %624 = vadd.xlane.f32.xlu0 %v623
      %v625 = vpop.xlane.xlu0 %624
      %v626 = vsel %vm430, %v367, 0.0
      %627 = vadd.xlane.f32.xlu0 %v626
      %v628 = vpop.xlane.xlu0 %627
      %v629 = vsel %vm430, %v368, 0.0
      %630 = vadd.xlane.f32.xlu0 %v629
      %v631 = vpop.xlane.xlu0 %630
      %v632 = vsel %vm430, %v369, 0.0
      %633 = vadd.xlane.f32.xlu0 %v632
      %v634 = vpop.xlane.xlu0 %633
      %v635 = vsel %vm430, %v370, 0.0
      %636 = vadd.xlane.f32.xlu0 %v635
      %v637 = vpop.xlane.xlu0 %636
      %v638 = vsel %vm430, %v371, 0.0
      %639 = vadd.xlane.f32.xlu0 %v638
      %v640 = vpop.xlane.xlu0 %639
      %v641 = vsel %vm430, %v372, 0.0
      %642 = vadd.xlane.f32.xlu0 %v641
      %v643 = vpop.xlane.xlu0 %642
      %v644 = vsel %vm430, %v373, 0.0
      %645 = vadd.xlane.f32.xlu0 %v644
      %v646 = vpop.xlane.xlu0 %645
      %v647 = vsel %vm430, %v374, 0.0
      %648 = vadd.xlane.f32.xlu0 %v647
      %v649 = vpop.xlane.xlu0 %648
      %v650 = vsel %vm430, %v375, 0.0
      %651 = vadd.xlane.f32.xlu0 %v650
      %v652 = vpop.xlane.xlu0 %651
      %v653 = vsel %vm430, %v376, 0.0
      %654 = vadd.xlane.f32.xlu0 %v653
      %v655 = vpop.xlane.xlu0 %654
      %v656 = vsel %vm430, %v377, 0.0
      %657 = vadd.xlane.f32.xlu0 %v656
      %v658 = vpop.xlane.xlu0 %657
      %v659 = vsel %vm430, %v378, 0.0
      %660 = vadd.xlane.f32.xlu0 %v659
      %v661 = vpop.xlane.xlu0 %660
      %v662 = vsel %vm430, %v379, 0.0
      %663 = vadd.xlane.f32.xlu0 %v662
      %v664 = vpop.xlane.xlu0 %663
      %v665 = vsel %vm430, %v380, 0.0
      %666 = vadd.xlane.f32.xlu0 %v665
      %v667 = vpop.xlane.xlu0 %666
      %v668 = vsel %vm430, %v381, 0.0
      %669 = vadd.xlane.f32.xlu0 %v668
      %v670 = vpop.xlane.xlu0 %669
      %v671 = vsel %vm430, %v382, 0.0
      %672 = vadd.xlane.f32.xlu0 %v671
      %v673 = vpop.xlane.xlu0 %672
      %v674 = vsel %vm430, %v383, 0.0
      %675 = vadd.xlane.f32.xlu0 %v674
      %v676 = vpop.xlane.xlu0 %675
      %v677 = vsel %vm430, %v384, 0.0
      %678 = vadd.xlane.f32.xlu0 %v677
      %v679 = vpop.xlane.xlu0 %678
      %v680 = vsel %vm430, %v385, 0.0
      %681 = vadd.xlane.f32.xlu0 %v680
      %v682 = vpop.xlane.xlu0 %681
      %v683 = vsel %vm430, %v386, 0.0
      %684 = vadd.xlane.f32.xlu0 %v683
      %v685 = vpop.xlane.xlu0 %684
      %v686 = vsel %vm430, %v387, 0.0
      %687 = vadd.xlane.f32.xlu0 %v686
      %v688 = vpop.xlane.xlu0 %687
      %v689 = vsel %vm430, %v388, 0.0
      %690 = vadd.xlane.f32.xlu0 %v689
      %v691 = vpop.xlane.xlu0 %690
      %v692 = vsel %vm430, %v389, 0.0
      %693 = vadd.xlane.f32.xlu0 %v692
      %v694 = vpop.xlane.xlu0 %693
      %v695 = vsel %vm430, %v390, 0.0
      %696 = vadd.xlane.f32.xlu0 %v695
      %v697 = vpop.xlane.xlu0 %696
      %v698 = vsel %vm430, %v391, 0.0
      %699 = vadd.xlane.f32.xlu0 %v698
      %v700 = vpop.xlane.xlu0 %699
      %v701 = vsel %vm430, %v392, 0.0
      %702 = vadd.xlane.f32.xlu0 %v701
      %v703 = vpop.xlane.xlu0 %702
      %v704 = vsel %vm430, %v393, 0.0
      %705 = vadd.xlane.f32.xlu0 %v704
      %v706 = vpop.xlane.xlu0 %705
      %v707 = vsel %vm430, %v394, 0.0
      %708 = vadd.xlane.f32.xlu0 %v707
      %v709 = vpop.xlane.xlu0 %708
      %v710 = vsel %vm430, %v395, 0.0
      %711 = vadd.xlane.f32.xlu0 %v710
      %v712 = vpop.xlane.xlu0 %711
      %v713 = vsel %vm430, %v396, 0.0
      %714 = vadd.xlane.f32.xlu0 %v713
      %v715 = vpop.xlane.xlu0 %714
      %v716 = vsel %vm430, %v397, 0.0
      %717 = vadd.xlane.f32.xlu0 %v716
      %v718 = vpop.xlane.xlu0 %717
      %v719 = vsel %vm430, %v398, 0.0
      %720 = vadd.xlane.f32.xlu0 %v719
      %v721 = vpop.xlane.xlu0 %720
      %v722 = vsel %vm430, %v399, 0.0
      %723 = vadd.xlane.f32.xlu0 %v722
      %v724 = vpop.xlane.xlu0 %723
      %v725 = vsel %vm430, %v400, 0.0
      %726 = vadd.xlane.f32.xlu0 %v725
      %v727 = vpop.xlane.xlu0 %726
      %v728 = vsel %vm430, %v401, 0.0
      %729 = vadd.xlane.f32.xlu0 %v728
      %v730 = vpop.xlane.xlu0 %729
      %v731 = vsel %vm430, %v402, 0.0
      %732 = vadd.xlane.f32.xlu0 %v731
      %v733 = vpop.xlane.xlu0 %732
      %v734 = vsel %vm430, %v403, 0.0
      %735 = vadd.xlane.f32.xlu0 %v734
      %v736 = vpop.xlane.xlu0 %735
      %v737 = vsel %vm430, %v404, 0.0
      %738 = vadd.xlane.f32.xlu0 %v737
      %v739 = vpop.xlane.xlu0 %738
      %v740 = vsel %vm430, %v405, 0.0
      %741 = vadd.xlane.f32.xlu0 %v740
      %v742 = vpop.xlane.xlu0 %741
      %v743 = vsel %vm430, %v406, 0.0
      %744 = vadd.xlane.f32.xlu0 %v743
      %v745 = vpop.xlane.xlu0 %744
      %v746 = vsel %vm430, %v407, 0.0
      %747 = vadd.xlane.f32.xlu0 %v746
      %v748 = vpop.xlane.xlu0 %747
      %v749 = vsel %vm430, %v408, 0.0
      %750 = vadd.xlane.f32.xlu0 %v749
      %v751 = vpop.xlane.xlu0 %750
      %v752 = vsel %vm430, %v409, 0.0
      %753 = vadd.xlane.f32.xlu0 %v752
      %v754 = vpop.xlane.xlu0 %753
      %v755 = vsel %vm430, %v410, 0.0
      %756 = vadd.xlane.f32.xlu0 %v755
      %v757 = vpop.xlane.xlu0 %756
      %v758 = vsel %vm430, %v411, 0.0
      %759 = vadd.xlane.f32.xlu0 %v758
      %v760 = vpop.xlane.xlu0 %759
      %v761 = vsel %vm430, %v412, 0.0
      %762 = vadd.xlane.f32.xlu0 %v761
      %v763 = vpop.xlane.xlu0 %762
      %v764 = vsel %vm430, %v413, 0.0
      %765 = vadd.xlane.f32.xlu0 %v764
      %v766 = vpop.xlane.xlu0 %765
      %v767 = vsel %vm430, %v414, 0.0
      %768 = vadd.xlane.f32.xlu0 %v767
      %v769 = vpop.xlane.xlu0 %768
      %v770 = vsel %vm430, %v415, 0.0
      %771 = vadd.xlane.f32.xlu0 %v770
      %v772 = vpop.xlane.xlu0 %771
      %v773 = vsel %vm430, %v416, 0.0
      %774 = vadd.xlane.f32.xlu0 %v773
      %v775 = vpop.xlane.xlu0 %774
      %v776 = vsel %vm430, %v417, 0.0
      %777 = vadd.xlane.f32.xlu0 %v776
      %v778 = vpop.xlane.xlu0 %777
      %v779 = vsel %vm430, %v418, 0.0
      %780 = vadd.xlane.f32.xlu0 %v779
      %v781 = vpop.xlane.xlu0 %780
      %v782 = vsel %vm430, %v419, 0.0
      %783 = vadd.xlane.f32.xlu0 %v782
      %v784 = vpop.xlane.xlu0 %783
      %v785 = vsel %vm430, %v420, 0.0
      %786 = vadd.xlane.f32.xlu0 %v785
      %v787 = vpop.xlane.xlu0 %786
      %v788 = vsel %vm430, %v421, 0.0
      %789 = vadd.xlane.f32.xlu0 %v788
      %v790 = vpop.xlane.xlu0 %789
      %v791 = vsel %vm430, %v422, 0.0
      %792 = vadd.xlane.f32.xlu0 %v791
      %v793 = vpop.xlane.xlu0 %792
      %v794 = vsel %vm430, %v423, 0.0
      %795 = vadd.xlane.f32.xlu0 %v794
      %v796 = vpop.xlane.xlu0 %795
      %v797 = vsel %vm430, %v424, 0.0
      %798 = vadd.xlane.f32.xlu0 %v797
      %v799 = vpop.xlane.xlu0 %798
      %v800 = vsel %vm430, %v425, 0.0
      %801 = vadd.xlane.f32.xlu0 %v800
      %v802 = vpop.xlane.xlu0 %801
      %v803 = vsel %vm430, %v426, 0.0
      %804 = vadd.xlane.f32.xlu0 %v803
      %v805 = vpop.xlane.xlu0 %804
      %v806 = vsel %vm430, %v427, 0.0
      %807 = vadd.xlane.f32.xlu0 %v806
      %v808 = vpop.xlane.xlu0 %807
      %v809 = vsel %vm430, %v428, 0.0
      %810 = vadd.xlane.f32.xlu0 %v809
      %v811 = vpop.xlane.xlu0 %810
      %v812 = vsel %vm430, %v429, 0.0
      %813 = vadd.xlane.f32.xlu0 %v812
      %v814 = vpop.xlane.xlu0 %813
      %v815 = vrcp.pop 32.0
      %v816 = vmul.f32 %v433, %v815
      %v817 = vmul.f32 %v436, %v815
      %v818 = vmul.f32 %v439, %v815
      %v819 = vmul.f32 %v442, %v815
      %v820 = vmul.f32 %v445, %v815
      %v821 = vmul.f32 %v448, %v815
      %v822 = vmul.f32 %v451, %v815
      %v823 = vmul.f32 %v454, %v815
      %v824 = vmul.f32 %v457, %v815
      %v825 = vmul.f32 %v460, %v815
      %v826 = vmul.f32 %v463, %v815
      %v827 = vmul.f32 %v466, %v815
      %v828 = vmul.f32 %v469, %v815
      %v829 = vmul.f32 %v472, %v815
      %v830 = vmul.f32 %v475, %v815
      %v831 = vmul.f32 %v478, %v815
      %v832 = vmul.f32 %v481, %v815
      %v833 = vmul.f32 %v484, %v815
      %v834 = vmul.f32 %v487, %v815
      %v835 = vmul.f32 %v490, %v815
      %v836 = vmul.f32 %v493, %v815
      %v837 = vmul.f32 %v496, %v815
      %v838 = vmul.f32 %v499, %v815
      %v839 = vmul.f32 %v502, %v815
      %v840 = vmul.f32 %v505, %v815
      %v841 = vmul.f32 %v508, %v815
      %v842 = vmul.f32 %v511, %v815
      %v843 = vmul.f32 %v514, %v815
      %v844 = vmul.f32 %v517, %v815
      %v845 = vmul.f32 %v520, %v815
      %v846 = vmul.f32 %v523, %v815
      %v847 = vmul.f32 %v526, %v815
      %v848 = vmul.f32 %v529, %v815
      %v849 = vmul.f32 %v532, %v815
      %v850 = vmul.f32 %v535, %v815
      %v851 = vmul.f32 %v538, %v815
      %v852 = vmul.f32 %v541, %v815
      %v853 = vmul.f32 %v544, %v815
      %v854 = vmul.f32 %v547, %v815
      %v855 = vmul.f32 %v550, %v815
      %v856 = vmul.f32 %v553, %v815
      %v857 = vmul.f32 %v556, %v815
      %v858 = vmul.f32 %v559, %v815
      %v859 = vmul.f32 %v562, %v815
      %v860 = vmul.f32 %v565, %v815
      %v861 = vmul.f32 %v568, %v815
      %v862 = vmul.f32 %v571, %v815
      %v863 = vmul.f32 %v574, %v815
      %v864 = vmul.f32 %v577, %v815
      %v865 = vmul.f32 %v580, %v815
      %v866 = vmul.f32 %v583, %v815
      %v867 = vmul.f32 %v586, %v815
      %v868 = vmul.f32 %v589, %v815
      %v869 = vmul.f32 %v592, %v815
      %v870 = vmul.f32 %v595, %v815
      %v871 = vmul.f32 %v598, %v815
      %v872 = vmul.f32 %v601, %v815
      %v873 = vmul.f32 %v604, %v815
      %v874 = vmul.f32 %v607, %v815
      %v875 = vmul.f32 %v610, %v815
      %v876 = vmul.f32 %v613, %v815
      %v877 = vmul.f32 %v616, %v815
      %v878 = vmul.f32 %v619, %v815
      %v879 = vmul.f32 %v622, %v815
      %v880 = vmul.f32 %v625, %v815
      %v881 = vmul.f32 %v628, %v815
      %v882 = vmul.f32 %v631, %v815
      %v883 = vmul.f32 %v634, %v815
      %v884 = vmul.f32 %v637, %v815
      %v885 = vmul.f32 %v640, %v815
      %v886 = vmul.f32 %v643, %v815
      %v887 = vmul.f32 %v646, %v815
      %v888 = vmul.f32 %v649, %v815
      %v889 = vmul.f32 %v652, %v815
      %v890 = vmul.f32 %v655, %v815
      %v891 = vmul.f32 %v658, %v815
      %v892 = vmul.f32 %v661, %v815
      %v893 = vmul.f32 %v664, %v815
      %v894 = vmul.f32 %v667, %v815
      %v895 = vmul.f32 %v670, %v815
      %v896 = vmul.f32 %v673, %v815
      %v897 = vmul.f32 %v676, %v815
      %v898 = vmul.f32 %v679, %v815
      %v899 = vmul.f32 %v682, %v815
      %v900 = vmul.f32 %v685, %v815
      %v901 = vmul.f32 %v688, %v815
      %v902 = vmul.f32 %v691, %v815
      %v903 = vmul.f32 %v694, %v815
      %v904 = vmul.f32 %v697, %v815
      %v905 = vmul.f32 %v700, %v815
      %v906 = vmul.f32 %v703, %v815
      %v907 = vmul.f32 %v706, %v815
      %v908 = vmul.f32 %v709, %v815
      %v909 = vmul.f32 %v712, %v815
      %v910 = vmul.f32 %v715, %v815
      %v911 = vmul.f32 %v718, %v815
      %v912 = vmul.f32 %v721, %v815
      %v913 = vmul.f32 %v724, %v815
      %v914 = vmul.f32 %v727, %v815
      %v915 = vmul.f32 %v730, %v815
      %v916 = vmul.f32 %v733, %v815
      %v917 = vmul.f32 %v736, %v815
      %v918 = vmul.f32 %v739, %v815
      %v919 = vmul.f32 %v742, %v815
      %v920 = vmul.f32 %v745, %v815
      %v921 = vmul.f32 %v748, %v815
      %v922 = vmul.f32 %v751, %v815
      %v923 = vmul.f32 %v754, %v815
      %v924 = vmul.f32 %v757, %v815
      %v925 = vmul.f32 %v760, %v815
      %v926 = vmul.f32 %v763, %v815
      %v927 = vmul.f32 %v766, %v815
      %v928 = vmul.f32 %v769, %v815
      %v929 = vmul.f32 %v772, %v815
      %v930 = vmul.f32 %v775, %v815
      %v931 = vmul.f32 %v778, %v815
      %v932 = vmul.f32 %v781, %v815
      %v933 = vmul.f32 %v784, %v815
      %v934 = vmul.f32 %v787, %v815
      %v935 = vmul.f32 %v790, %v815
      %v936 = vmul.f32 %v793, %v815
      %v937 = vmul.f32 %v796, %v815
      %v938 = vmul.f32 %v799, %v815
      %v939 = vmul.f32 %v802, %v815
      %v940 = vmul.f32 %v805, %v815
      %v941 = vmul.f32 %v808, %v815
      %v942 = vmul.f32 %v811, %v815
      %v943 = vmul.f32 %v814, %v815
      %v944 = vadd.f32 %v816, 1e-08
      %v945 = vadd.f32 %v817, 1e-08
      %v946 = vadd.f32 %v818, 1e-08
      %v947 = vadd.f32 %v819, 1e-08
      %v948 = vadd.f32 %v820, 1e-08
      %v949 = vadd.f32 %v821, 1e-08
      %v950 = vadd.f32 %v822, 1e-08
      %v951 = vadd.f32 %v823, 1e-08
      %v952 = vadd.f32 %v824, 1e-08
      %v953 = vadd.f32 %v825, 1e-08
      %v954 = vadd.f32 %v826, 1e-08
      %v955 = vadd.f32 %v827, 1e-08
      %v956 = vadd.f32 %v828, 1e-08
      %v957 = vadd.f32 %v829, 1e-08
      %v958 = vadd.f32 %v830, 1e-08
      %v959 = vadd.f32 %v831, 1e-08
      %v960 = vadd.f32 %v832, 1e-08
      %v961 = vadd.f32 %v833, 1e-08
      %v962 = vadd.f32 %v834, 1e-08
      %v963 = vadd.f32 %v835, 1e-08
      %v964 = vadd.f32 %v836, 1e-08
      %v965 = vadd.f32 %v837, 1e-08
      %v966 = vadd.f32 %v838, 1e-08
      %v967 = vadd.f32 %v839, 1e-08
      %v968 = vadd.f32 %v840, 1e-08
      %v969 = vadd.f32 %v841, 1e-08
      %v970 = vadd.f32 %v842, 1e-08
      %v971 = vadd.f32 %v843, 1e-08
      %v972 = vadd.f32 %v844, 1e-08
      %v973 = vadd.f32 %v845, 1e-08
      %v974 = vadd.f32 %v846, 1e-08
      %v975 = vadd.f32 %v847, 1e-08
      %v976 = vadd.f32 %v848, 1e-08
      %v977 = vadd.f32 %v849, 1e-08
      %v978 = vadd.f32 %v850, 1e-08
      %v979 = vadd.f32 %v851, 1e-08
      %v980 = vadd.f32 %v852, 1e-08
      %v981 = vadd.f32 %v853, 1e-08
      %v982 = vadd.f32 %v854, 1e-08
      %v983 = vadd.f32 %v855, 1e-08
      %v984 = vadd.f32 %v856, 1e-08
      %v985 = vadd.f32 %v857, 1e-08
      %v986 = vadd.f32 %v858, 1e-08
      %v987 = vadd.f32 %v859, 1e-08
      %v988 = vadd.f32 %v860, 1e-08
      %v989 = vadd.f32 %v861, 1e-08
      %v990 = vadd.f32 %v862, 1e-08
      %v991 = vadd.f32 %v863, 1e-08
      %v992 = vadd.f32 %v864, 1e-08
      %v993 = vadd.f32 %v865, 1e-08
      %v994 = vadd.f32 %v866, 1e-08
      %v995 = vadd.f32 %v867, 1e-08
      %v996 = vadd.f32 %v868, 1e-08
      %v997 = vadd.f32 %v869, 1e-08
      %v998 = vadd.f32 %v870, 1e-08
      %v999 = vadd.f32 %v871, 1e-08
      %v1000 = vadd.f32 %v872, 1e-08
      %v1001 = vadd.f32 %v873, 1e-08
      %v1002 = vadd.f32 %v874, 1e-08
      %v1003 = vadd.f32 %v875, 1e-08
      %v1004 = vadd.f32 %v876, 1e-08
      %v1005 = vadd.f32 %v877, 1e-08
      %v1006 = vadd.f32 %v878, 1e-08
      %v1007 = vadd.f32 %v879, 1e-08
      %v1008 = vadd.f32 %v880, 1e-08
      %v1009 = vadd.f32 %v881, 1e-08
      %v1010 = vadd.f32 %v882, 1e-08
      %v1011 = vadd.f32 %v883, 1e-08
      %v1012 = vadd.f32 %v884, 1e-08
      %v1013 = vadd.f32 %v885, 1e-08
      %v1014 = vadd.f32 %v886, 1e-08
      %v1015 = vadd.f32 %v887, 1e-08
      %v1016 = vadd.f32 %v888, 1e-08
      %v1017 = vadd.f32 %v889, 1e-08
      %v1018 = vadd.f32 %v890, 1e-08
      %v1019 = vadd.f32 %v891, 1e-08
      %v1020 = vadd.f32 %v892, 1e-08
      %v1021 = vadd.f32 %v893, 1e-08
      %v1022 = vadd.f32 %v894, 1e-08
      %v1023 = vadd.f32 %v895, 1e-08
      %v1024 = vadd.f32 %v896, 1e-08
      %v1025 = vadd.f32 %v897, 1e-08
      %v1026 = vadd.f32 %v898, 1e-08
      %v1027 = vadd.f32 %v899, 1e-08
      %v1028 = vadd.f32 %v900, 1e-08
      %v1029 = vadd.f32 %v901, 1e-08
      %v1030 = vadd.f32 %v902, 1e-08
      %v1031 = vadd.f32 %v903, 1e-08
      %v1032 = vadd.f32 %v904, 1e-08
      %v1033 = vadd.f32 %v905, 1e-08
      %v1034 = vadd.f32 %v906, 1e-08
      %v1035 = vadd.f32 %v907, 1e-08
      %v1036 = vadd.f32 %v908, 1e-08
      %v1037 = vadd.f32 %v909, 1e-08
      %v1038 = vadd.f32 %v910, 1e-08
      %v1039 = vadd.f32 %v911, 1e-08
      %v1040 = vadd.f32 %v912, 1e-08
      %v1041 = vadd.f32 %v913, 1e-08
      %v1042 = vadd.f32 %v914, 1e-08
      %v1043 = vadd.f32 %v915, 1e-08
      %v1044 = vadd.f32 %v916, 1e-08
      %v1045 = vadd.f32 %v917, 1e-08
      %v1046 = vadd.f32 %v918, 1e-08
      %v1047 = vadd.f32 %v919, 1e-08
      %v1048 = vadd.f32 %v920, 1e-08
      %v1049 = vadd.f32 %v921, 1e-08
      %v1050 = vadd.f32 %v922, 1e-08
      %v1051 = vadd.f32 %v923, 1e-08
      %v1052 = vadd.f32 %v924, 1e-08
      %v1053 = vadd.f32 %v925, 1e-08
      %v1054 = vadd.f32 %v926, 1e-08
      %v1055 = vadd.f32 %v927, 1e-08
      %v1056 = vadd.f32 %v928, 1e-08
      %v1057 = vadd.f32 %v929, 1e-08
      %v1058 = vadd.f32 %v930, 1e-08
      %v1059 = vadd.f32 %v931, 1e-08
      %v1060 = vadd.f32 %v932, 1e-08
      %v1061 = vadd.f32 %v933, 1e-08
      %v1062 = vadd.f32 %v934, 1e-08
      %v1063 = vadd.f32 %v935, 1e-08
      %v1064 = vadd.f32 %v936, 1e-08
      %v1065 = vadd.f32 %v937, 1e-08
      %v1066 = vadd.f32 %v938, 1e-08
      %v1067 = vadd.f32 %v939, 1e-08
      %v1068 = vadd.f32 %v940, 1e-08
      %v1069 = vadd.f32 %v941, 1e-08
      %v1070 = vadd.f32 %v942, 1e-08
      %v1071 = vadd.f32 %v943, 1e-08
      %v1072 = vrsqrt.pop %v944
      %v1073 = vrsqrt.pop %v945
      %v1074 = vrsqrt.pop %v946
      %v1075 = vrsqrt.pop %v947
      %v1076 = vrsqrt.pop %v948
      %v1077 = vrsqrt.pop %v949
      %v1078 = vrsqrt.pop %v950
      %v1079 = vrsqrt.pop %v951
      %v1080 = vrsqrt.pop %v952
      %v1081 = vrsqrt.pop %v953
      %v1082 = vrsqrt.pop %v954
      %v1083 = vrsqrt.pop %v955
      %v1084 = vrsqrt.pop %v956
      %v1085 = vrsqrt.pop %v957
      %v1086 = vrsqrt.pop %v958
      %v1087 = vrsqrt.pop %v959
      %v1088 = vrsqrt.pop %v960
      %v1089 = vrsqrt.pop %v961
      %v1090 = vrsqrt.pop %v962
      %v1091 = vrsqrt.pop %v963
      %v1092 = vrsqrt.pop %v964
      %v1093 = vrsqrt.pop %v965
      %v1094 = vrsqrt.pop %v966
      %v1095 = vrsqrt.pop %v967
      %v1096 = vrsqrt.pop %v968
      %v1097 = vrsqrt.pop %v969
      %v1098 = vrsqrt.pop %v970
      %v1099 = vrsqrt.pop %v971
      %v1100 = vrsqrt.pop %v972
      %v1101 = vrsqrt.pop %v973
      %v1102 = vrsqrt.pop %v974
      %v1103 = vrsqrt.pop %v975
      %v1104 = vrsqrt.pop %v976
      %v1105 = vrsqrt.pop %v977
      %v1106 = vrsqrt.pop %v978
      %v1107 = vrsqrt.pop %v979
      %v1108 = vrsqrt.pop %v980
      %v1109 = vrsqrt.pop %v981
      %v1110 = vrsqrt.pop %v982
      %v1111 = vrsqrt.pop %v983
      %v1112 = vrsqrt.pop %v984
      %v1113 = vrsqrt.pop %v985
      %v1114 = vrsqrt.pop %v986
      %v1115 = vrsqrt.pop %v987
      %v1116 = vrsqrt.pop %v988
      %v1117 = vrsqrt.pop %v989
      %v1118 = vrsqrt.pop %v990
      %v1119 = vrsqrt.pop %v991
      %v1120 = vrsqrt.pop %v992
      %v1121 = vrsqrt.pop %v993
      %v1122 = vrsqrt.pop %v994
      %v1123 = vrsqrt.pop %v995
      %v1124 = vrsqrt.pop %v996
      %v1125 = vrsqrt.pop %v997
      %v1126 = vrsqrt.pop %v998
      %v1127 = vrsqrt.pop %v999
      %v1128 = vrsqrt.pop %v1000
      %v1129 = vrsqrt.pop %v1001
      %v1130 = vrsqrt.pop %v1002
      %v1131 = vrsqrt.pop %v1003
      %v1132 = vrsqrt.pop %v1004
      %v1133 = vrsqrt.pop %v1005
      %v1134 = vrsqrt.pop %v1006
      %v1135 = vrsqrt.pop %v1007
      %v1136 = vrsqrt.pop %v1008
      %v1137 = vrsqrt.pop %v1009
      %v1138 = vrsqrt.pop %v1010
      %v1139 = vrsqrt.pop %v1011
      %v1140 = vrsqrt.pop %v1012
      %v1141 = vrsqrt.pop %v1013
      %v1142 = vrsqrt.pop %v1014
      %v1143 = vrsqrt.pop %v1015
      %v1144 = vrsqrt.pop %v1016
      %v1145 = vrsqrt.pop %v1017
      %v1146 = vrsqrt.pop %v1018
      %v1147 = vrsqrt.pop %v1019
      %v1148 = vrsqrt.pop %v1020
      %v1149 = vrsqrt.pop %v1021
      %v1150 = vrsqrt.pop %v1022
      %v1151 = vrsqrt.pop %v1023
      %v1152 = vrsqrt.pop %v1024
      %v1153 = vrsqrt.pop %v1025
      %v1154 = vrsqrt.pop %v1026
      %v1155 = vrsqrt.pop %v1027
      %v1156 = vrsqrt.pop %v1028
      %v1157 = vrsqrt.pop %v1029
      %v1158 = vrsqrt.pop %v1030
      %v1159 = vrsqrt.pop %v1031
      %v1160 = vrsqrt.pop %v1032
      %v1161 = vrsqrt.pop %v1033
      %v1162 = vrsqrt.pop %v1034
      %v1163 = vrsqrt.pop %v1035
      %v1164 = vrsqrt.pop %v1036
      %v1165 = vrsqrt.pop %v1037
      %v1166 = vrsqrt.pop %v1038
      %v1167 = vrsqrt.pop %v1039
      %v1168 = vrsqrt.pop %v1040
      %v1169 = vrsqrt.pop %v1041
      %v1170 = vrsqrt.pop %v1042
      %v1171 = vrsqrt.pop %v1043
      %v1172 = vrsqrt.pop %v1044
      %v1173 = vrsqrt.pop %v1045
      %v1174 = vrsqrt.pop %v1046
      %v1175 = vrsqrt.pop %v1047
      %v1176 = vrsqrt.pop %v1048
      %v1177 = vrsqrt.pop %v1049
      %v1178 = vrsqrt.pop %v1050
      %v1179 = vrsqrt.pop %v1051
      %v1180 = vrsqrt.pop %v1052
      %v1181 = vrsqrt.pop %v1053
      %v1182 = vrsqrt.pop %v1054
      %v1183 = vrsqrt.pop %v1055
      %v1184 = vrsqrt.pop %v1056
      %v1185 = vrsqrt.pop %v1057
      %v1186 = vrsqrt.pop %v1058
      %v1187 = vrsqrt.pop %v1059
      %v1188 = vrsqrt.pop %v1060
      %v1189 = vrsqrt.pop %v1061
      %v1190 = vrsqrt.pop %v1062
      %v1191 = vrsqrt.pop %v1063
      %v1192 = vrsqrt.pop %v1064
      %v1193 = vrsqrt.pop %v1065
      %v1194 = vrsqrt.pop %v1066
      %v1195 = vrsqrt.pop %v1067
      %v1196 = vrsqrt.pop %v1068
      %v1197 = vrsqrt.pop %v1069
      %v1198 = vrsqrt.pop %v1070
      %v1199 = vrsqrt.pop %v1071
      %v1200 = vmul.f32 %v174, %v1072
      %v1201 = vmul.f32 %v175, %v1073
      %v1202 = vmul.f32 %v176, %v1074
      %v1203 = vmul.f32 %v177, %v1075
      %v1204 = vmul.f32 %v178, %v1076
      %v1205 = vmul.f32 %v179, %v1077
      %v1206 = vmul.f32 %v180, %v1078
      %v1207 = vmul.f32 %v181, %v1079
      %v1208 = vmul.f32 %v182, %v1080
      %v1209 = vmul.f32 %v183, %v1081
      %v1210 = vmul.f32 %v184, %v1082
      %v1211 = vmul.f32 %v185, %v1083
      %v1212 = vmul.f32 %v186, %v1084
      %v1213 = vmul.f32 %v187, %v1085
      %v1214 = vmul.f32 %v188, %v1086
      %v1215 = vmul.f32 %v189, %v1087
      %v1216 = vmul.f32 %v190, %v1088
      %v1217 = vmul.f32 %v191, %v1089
      %v1218 = vmul.f32 %v192, %v1090
      %v1219 = vmul.f32 %v193, %v1091
      %v1220 = vmul.f32 %v194, %v1092
      %v1221 = vmul.f32 %v195, %v1093
      %v1222 = vmul.f32 %v196, %v1094
      %v1223 = vmul.f32 %v197, %v1095
      %v1224 = vmul.f32 %v198, %v1096
      %v1225 = vmul.f32 %v199, %v1097
      %v1226 = vmul.f32 %v200, %v1098
      %v1227 = vmul.f32 %v201, %v1099
      %v1228 = vmul.f32 %v202, %v1100
      %v1229 = vmul.f32 %v203, %v1101
      %v1230 = vmul.f32 %v204, %v1102
      %v1231 = vmul.f32 %v205, %v1103
      %v1232 = vmul.f32 %v206, %v1104
      %v1233 = vmul.f32 %v207, %v1105
      %v1234 = vmul.f32 %v208, %v1106
      %v1235 = vmul.f32 %v209, %v1107
      %v1236 = vmul.f32 %v210, %v1108
      %v1237 = vmul.f32 %v211, %v1109
      %v1238 = vmul.f32 %v212, %v1110
      %v1239 = vmul.f32 %v213, %v1111
      %v1240 = vmul.f32 %v214, %v1112
      %v1241 = vmul.f32 %v215, %v1113
      %v1242 = vmul.f32 %v216, %v1114
      %v1243 = vmul.f32 %v217, %v1115
      %v1244 = vmul.f32 %v218, %v1116
      %v1245 = vmul.f32 %v219, %v1117
      %v1246 = vmul.f32 %v220, %v1118
      %v1247 = vmul.f32 %v221, %v1119
      %v1248 = vmul.f32 %v222, %v1120
      %v1249 = vmul.f32 %v223, %v1121
      %v1250 = vmul.f32 %v224, %v1122
      %v1251 = vmul.f32 %v225, %v1123
      %v1252 = vmul.f32 %v226, %v1124
      %v1253 = vmul.f32 %v227, %v1125
      %v1254 = vmul.f32 %v228, %v1126
      %v1255 = vmul.f32 %v229, %v1127
      %v1256 = vmul.f32 %v230, %v1128
      %v1257 = vmul.f32 %v231, %v1129
      %v1258 = vmul.f32 %v232, %v1130
      %v1259 = vmul.f32 %v233, %v1131
      %v1260 = vmul.f32 %v234, %v1132
      %v1261 = vmul.f32 %v235, %v1133
      %v1262 = vmul.f32 %v236, %v1134
      %v1263 = vmul.f32 %v237, %v1135
      %v1264 = vmul.f32 %v238, %v1136
      %v1265 = vmul.f32 %v239, %v1137
      %v1266 = vmul.f32 %v240, %v1138
      %v1267 = vmul.f32 %v241, %v1139
      %v1268 = vmul.f32 %v242, %v1140
      %v1269 = vmul.f32 %v243, %v1141
      %v1270 = vmul.f32 %v244, %v1142
      %v1271 = vmul.f32 %v245, %v1143
      %v1272 = vmul.f32 %v246, %v1144
      %v1273 = vmul.f32 %v247, %v1145
      %v1274 = vmul.f32 %v248, %v1146
      %v1275 = vmul.f32 %v249, %v1147
      %v1276 = vmul.f32 %v250, %v1148
      %v1277 = vmul.f32 %v251, %v1149
      %v1278 = vmul.f32 %v252, %v1150
      %v1279 = vmul.f32 %v253, %v1151
      %v1280 = vmul.f32 %v254, %v1152
      %v1281 = vmul.f32 %v255, %v1153
      %v1282 = vmul.f32 %v256, %v1154
      %v1283 = vmul.f32 %v257, %v1155
      %v1284 = vmul.f32 %v258, %v1156
      %v1285 = vmul.f32 %v259, %v1157
      %v1286 = vmul.f32 %v260, %v1158
      %v1287 = vmul.f32 %v261, %v1159
      %v1288 = vmul.f32 %v262, %v1160
      %v1289 = vmul.f32 %v263, %v1161
      %v1290 = vmul.f32 %v264, %v1162
      %v1291 = vmul.f32 %v265, %v1163
      %v1292 = vmul.f32 %v266, %v1164
      %v1293 = vmul.f32 %v267, %v1165
      %v1294 = vmul.f32 %v268, %v1166
      %v1295 = vmul.f32 %v269, %v1167
      %v1296 = vmul.f32 %v270, %v1168
      %v1297 = vmul.f32 %v271, %v1169
      %v1298 = vmul.f32 %v272, %v1170
      %v1299 = vmul.f32 %v273, %v1171
      %v1300 = vmul.f32 %v274, %v1172
      %v1301 = vmul.f32 %v275, %v1173
      %v1302 = vmul.f32 %v276, %v1174
      %v1303 = vmul.f32 %v277, %v1175
      %v1304 = vmul.f32 %v278, %v1176
      %v1305 = vmul.f32 %v279, %v1177
      %v1306 = vmul.f32 %v280, %v1178
      %v1307 = vmul.f32 %v281, %v1179
      %v1308 = vmul.f32 %v282, %v1180
      %v1309 = vmul.f32 %v283, %v1181
      %v1310 = vmul.f32 %v284, %v1182
      %v1311 = vmul.f32 %v285, %v1183
      %v1312 = vmul.f32 %v286, %v1184
      %v1313 = vmul.f32 %v287, %v1185
      %v1314 = vmul.f32 %v288, %v1186
      %v1315 = vmul.f32 %v289, %v1187
      %v1316 = vmul.f32 %v290, %v1188
      %v1317 = vmul.f32 %v291, %v1189
      %v1318 = vmul.f32 %v292, %v1190
      %v1319 = vmul.f32 %v293, %v1191
      %v1320 = vmul.f32 %v294, %v1192
      %v1321 = vmul.f32 %v295, %v1193
      %v1322 = vmul.f32 %v296, %v1194
      %v1323 = vmul.f32 %v297, %v1195
      %v1324 = vmul.f32 %v298, %v1196
      %v1325 = vmul.f32 %v299, %v1197
      %v1326 = vmul.f32 %v300, %v1198
      %v1327 = vmul.f32 %v301, %v1199
      %v1328 = vld [vmem:[%s1] sm:$0xff]
      %v1329 = vld [vmem:[%s1 + $0x8] sm:$0xff]
      %v1330 = vld [vmem:[%s1 + $0x10] sm:$0xff]
      %v1331 = vld [vmem:[%s1 + $0x18] sm:$0xff]
      %v1332 = vld [vmem:[%s2] sm:$0x1]
      %v1334 = vlaneseq
      %v1335 = vshrl.u32 %v1334, 7
      %v1336 = vsub.s32 0, %v1335
      %v1337 = vrot.slane %v1332, %v1336
      %v1340 = vsel %vm430, %v1200, 0
      %v1343 = vsel %vm430, %v1201, 0
      %v1346 = vsel %vm430, %v1202, 0
      %v1349 = vsel %vm430, %v1203, 0
      %v1352 = vsel %vm430, %v1204, 0
      %v1355 = vsel %vm430, %v1205, 0
      %v1358 = vsel %vm430, %v1206, 0
      %v1361 = vsel %vm430, %v1207, 0
      %v1364 = vsel %vm430, %v1208, 0
      %v1367 = vsel %vm430, %v1209, 0
      %v1370 = vsel %vm430, %v1210, 0
      %v1373 = vsel %vm430, %v1211, 0
      %v1376 = vsel %vm430, %v1212, 0
      %v1379 = vsel %vm430, %v1213, 0
      %v1382 = vsel %vm430, %v1214, 0
      %v1385 = vsel %vm430, %v1215, 0
      %v1388 = vsel %vm430, %v1216, 0
      %v1391 = vsel %vm430, %v1217, 0
      %v1394 = vsel %vm430, %v1218, 0
      %v1397 = vsel %vm430, %v1219, 0
      %v1400 = vsel %vm430, %v1220, 0
      %v1403 = vsel %vm430, %v1221, 0
      %v1406 = vsel %vm430, %v1222, 0
      %v1409 = vsel %vm430, %v1223, 0
      %v1412 = vsel %vm430, %v1224, 0
      %v1415 = vsel %vm430, %v1225, 0
      %v1418 = vsel %vm430, %v1226, 0
      %v1421 = vsel %vm430, %v1227, 0
      %v1424 = vsel %vm430, %v1228, 0
      %v1427 = vsel %vm430, %v1229, 0
      %v1430 = vsel %vm430, %v1230, 0
      %v1433 = vsel %vm430, %v1231, 0
      %v1436 = vsel %vm430, %v1232, 0
      %v1439 = vsel %vm430, %v1233, 0
      %v1442 = vsel %vm430, %v1234, 0
      %v1445 = vsel %vm430, %v1235, 0
      %v1448 = vsel %vm430, %v1236, 0
      %v1451 = vsel %vm430, %v1237, 0
      %v1454 = vsel %vm430, %v1238, 0
      %v1457 = vsel %vm430, %v1239, 0
      %v1460 = vsel %vm430, %v1240, 0
      %v1463 = vsel %vm430, %v1241, 0
      %v1466 = vsel %vm430, %v1242, 0
      %v1469 = vsel %vm430, %v1243, 0
      %v1472 = vsel %vm430, %v1244, 0
      %v1475 = vsel %vm430, %v1245, 0
      %v1478 = vsel %vm430, %v1246, 0
      %v1481 = vsel %vm430, %v1247, 0
      %v1484 = vsel %vm430, %v1248, 0
      %v1487 = vsel %vm430, %v1249, 0
      %v1490 = vsel %vm430, %v1250, 0
      %v1493 = vsel %vm430, %v1251, 0
      %v1496 = vsel %vm430, %v1252, 0
      %v1499 = vsel %vm430, %v1253, 0
      %v1502 = vsel %vm430, %v1254, 0
      %v1505 = vsel %vm430, %v1255, 0
      %v1508 = vsel %vm430, %v1256, 0
      %v1511 = vsel %vm430, %v1257, 0
      %v1514 = vsel %vm430, %v1258, 0
      %v1517 = vsel %vm430, %v1259, 0
      %v1520 = vsel %vm430, %v1260, 0
      %v1523 = vsel %vm430, %v1261, 0
      %v1526 = vsel %vm430, %v1262, 0
      %v1529 = vsel %vm430, %v1263, 0
      %v1532 = vsel %vm430, %v1264, 0
      %v1535 = vsel %vm430, %v1265, 0
      %v1538 = vsel %vm430, %v1266, 0
      %v1541 = vsel %vm430, %v1267, 0
      %v1544 = vsel %vm430, %v1268, 0
      %v1547 = vsel %vm430, %v1269, 0
      %v1550 = vsel %vm430, %v1270, 0
      %v1553 = vsel %vm430, %v1271, 0
      %v1556 = vsel %vm430, %v1272, 0
      %v1559 = vsel %vm430, %v1273, 0
      %v1562 = vsel %vm430, %v1274, 0
      %v1565 = vsel %vm430, %v1275, 0
      %v1568 = vsel %vm430, %v1276, 0
      %v1571 = vsel %vm430, %v1277, 0
      %v1574 = vsel %vm430, %v1278, 0
      %v1577 = vsel %vm430, %v1279, 0
      %v1580 = vsel %vm430, %v1280, 0
      %v1583 = vsel %vm430, %v1281, 0
      %v1586 = vsel %vm430, %v1282, 0
      %v1589 = vsel %vm430, %v1283, 0
      %v1592 = vsel %vm430, %v1284, 0
      %v1595 = vsel %vm430, %v1285, 0
      %v1598 = vsel %vm430, %v1286, 0
      %v1601 = vsel %vm430, %v1287, 0
      %v1604 = vsel %vm430, %v1288, 0
      %v1607 = vsel %vm430, %v1289, 0
      %v1610 = vsel %vm430, %v1290, 0
      %v1613 = vsel %vm430, %v1291, 0
      %v1616 = vsel %vm430, %v1292, 0
      %v1619 = vsel %vm430, %v1293, 0
      %v1622 = vsel %vm430, %v1294, 0
      %v1625 = vsel %vm430, %v1295, 0
      %v1628 = vsel %vm430, %v1296, 0
      %v1631 = vsel %vm430, %v1297, 0
      %v1634 = vsel %vm430, %v1298, 0
      %v1637 = vsel %vm430, %v1299, 0
      %v1640 = vsel %vm430, %v1300, 0
      %v1643 = vsel %vm430, %v1301, 0
      %v1646 = vsel %vm430, %v1302, 0
      %v1649 = vsel %vm430, %v1303, 0
      %v1652 = vsel %vm430, %v1304, 0
      %v1655 = vsel %vm430, %v1305, 0
      %v1658 = vsel %vm430, %v1306, 0
      %v1661 = vsel %vm430, %v1307, 0
      %v1664 = vsel %vm430, %v1308, 0
      %v1667 = vsel %vm430, %v1309, 0
      %v1670 = vsel %vm430, %v1310, 0
      %v1673 = vsel %vm430, %v1311, 0
      %v1676 = vsel %vm430, %v1312, 0
      %v1679 = vsel %vm430, %v1313, 0
      %v1682 = vsel %vm430, %v1314, 0
      %v1685 = vsel %vm430, %v1315, 0
      %v1688 = vsel %vm430, %v1316, 0
      %v1691 = vsel %vm430, %v1317, 0
      %v1694 = vsel %vm430, %v1318, 0
      %v1697 = vsel %vm430, %v1319, 0
      %v1700 = vsel %vm430, %v1320, 0
      %v1703 = vsel %vm430, %v1321, 0
      %v1706 = vsel %vm430, %v1322, 0
      %v1709 = vsel %vm430, %v1323, 0
      %v1712 = vsel %vm430, %v1324, 0
      %v1715 = vsel %vm430, %v1325, 0
      %v1718 = vsel %vm430, %v1326, 0
      %v1721 = vsel %vm430, %v1327, 0
      %1723 = vmatprep.subr.mxu0 0.0
      %1724 = vmatpush1.msra.mxu0 %v1328
      %1725 = vmatprep.subr.mxu0 0.0
      %1726 = vmatpush1.msra.mxu0 %v1329
      %1727 = vmatprep.subr.mxu0 0.0
      %1728 = vmatpush1.msra.mxu0 %v1330
      %1729 = vmatprep.subr.mxu0 0.0
      %1730 = vmatpush1.msra.mxu0 %v1331
      %1731 = vmatprep.subr.mxu0 0.0
      %1732 = vmatpush1.msra.mxu0 0.0
      %1733 = vmatprep.subr.mxu0 0.0
      %1734 = vmatpush1.msra.mxu0 0.0
      %1735 = vmatprep.subr.mxu0 0.0
      %1736 = vmatpush1.msra.mxu0 0.0
      %1737 = vmatprep.subr.mxu0 0.0
      %1738 = vmatpush1.msra.mxu0 0.0
      %1739 = vmatprep.subr.mxu0 0.0
      %1740 = vmatpush1.msra.mxu0 0.0
      %1741 = vmatprep.subr.mxu0 0.0
      %1742 = vmatpush1.msra.mxu0 0.0
      %1743 = vmatprep.subr.mxu0 0.0
      %1744 = vmatpush1.msra.mxu0 0.0
      %1745 = vmatprep.subr.mxu0 0.0
      %1746 = vmatpush1.msra.mxu0 0.0
      %1747 = vmatprep.subr.mxu0 0.0
      %1748 = vmatpush1.msra.mxu0 0.0
      %1749 = vmatprep.subr.mxu0 0.0
      %1750 = vmatpush1.msra.mxu0 0.0
      %1751 = vmatprep.subr.mxu0 0.0
      %1752 = vmatpush1.msra.mxu0 0.0
      %1753 = vmatprep.subr.mxu0 0.0
      %1754 = vmatpush1.msra.mxu0 0.0
      %1755 = vmatprep.subr.mxu0 0.0
      %1756 = vmatpush1.msra.mxu0 0.0
      %1757 = vmatprep.subr.mxu0 0.0
      %1758 = vmatpush1.msra.mxu0 0.0
      %1759 = vmatprep.subr.mxu0 0.0
      %1760 = vmatpush1.msra.mxu0 0.0
      %1761 = vmatprep.subr.mxu0 0.0
      %1762 = vmatpush1.msra.mxu0 0.0
      %1763 = vmatprep.subr.mxu0 0.0
      %1764 = vmatpush1.msra.mxu0 0.0
      %1765 = vmatprep.subr.mxu0 0.0
      %1766 = vmatpush1.msra.mxu0 0.0
      %1767 = vmatprep.subr.mxu0 0.0
      %1768 = vmatpush1.msra.mxu0 0.0
      %1769 = vmatprep.subr.mxu0 0.0
      %1770 = vmatpush1.msra.mxu0 0.0
      %1771 = vmatprep.subr.mxu0 0.0
      %1772 = vmatpush1.msra.mxu0 0.0
      %1773 = vmatprep.subr.mxu0 0.0
      %1774 = vmatpush1.msra.mxu0 0.0
      %1775 = vmatprep.subr.mxu0 0.0
      %1776 = vmatpush1.msra.mxu0 0.0
      %1777 = vmatprep.subr.mxu0 0.0
      %1778 = vmatpush1.msra.mxu0 0.0
      %1779 = vmatprep.subr.mxu0 0.0
      %1780 = vmatpush1.msra.mxu0 0.0
      %1781 = vmatprep.subr.mxu0 0.0
      %1782 = vmatpush1.msra.mxu0 0.0
      %1783 = vmatprep.subr.mxu0 0.0
      %1784 = vmatpush1.msra.mxu0 0.0
      %1785 = vmatprep.subr.mxu0 0.0
      %1786 = vmatpush1.msra.mxu0 0.0
      %1787 = vmatprep.mubr.f32.mxu0 0.0
      %1788 = vmatmul.mubr.f32.gmra.mrb[0].mxu0 %v1340
      %v1789 = vpop.f32.mrb[0].mxu0
      %v1790 = vadd.f32 %v1337, %v1789
      %v1791 = vpop.f32.mrb[0].mxu0
      %1792 = vmatprep.mubr.f32.mxu0 0.0
      %1793 = vmatmul.mubr.f32.gmra.mrb[0].mxu0 %v1343
      %v1794 = vpop.f32.mrb[0].mxu0
      %v1795 = vadd.f32 %v1337, %v1794
      %v1796 = vpop.f32.mrb[0].mxu0
      %1797 = vmatprep.mubr.f32.mxu0 0.0
      %1798 = vmatmul.mubr.f32.gmra.mrb[0].mxu0 %v1346
      %v1799 = vpop.f32.mrb[0].mxu0
      %v1800 = vadd.f32 %v1337, %v1799
      %v1801 = vpop.f32.mrb[0].mxu0
      %1802 = vmatprep.mubr.f32.mxu0 0.0
      %1803 = vmatmul.mubr.f32.gmra.mrb[0].mxu0 %v1349
      %v1804 = vpop.f32.mrb[0].mxu0
      %v1805 = vadd.f32 %v1337, %v1804
      %v1806 = vpop.f32.mrb[0].mxu0
      %1807 = vmatprep.mubr.f32.mxu0 0.0
      %1808 = vmatmul.mubr.f32.gmra.mrb[0].mxu0 %v1352
      %v1809 = vpop.f32.mrb[0].mxu0
      %v1810 = vadd.f32 %v1337, %v1809
      %v1811 = vpop.f32.mrb[0].mxu0
      %1812 = vmatprep.mubr.f32.mxu0 0.0
      %1813 = vmatmul.mubr.f32.gmra.mrb[0].mxu0 %v1355
      %v1814 = vpop.f32.mrb[0].mxu0
      %v1815 = vadd.f32 %v1337, %v1814
      %v1816 = vpop.f32.mrb[0].mxu0
      %1817 = vmatprep.mubr.f32.mxu0 0.0
      %1818 = vmatmul.mubr.f32.gmra.mrb[0].mxu0 %v1358
      %v1819 = vpop.f32.mrb[0].mxu0
      %v1820 = vadd.f32 %v1337, %v1819
      %v1821 = vpop.f32.mrb[0].mxu0
      %1822 = vmatprep.mubr.f32.mxu0 0.0
      %1823 = vmatmul.mubr.f32.gmra.mrb[0].mxu0 %v1361
      %v1824 = vpop.f32.mrb[0].mxu0
      %v1825 = vadd.f32 %v1337, %v1824
      %v1826 = vpop.f32.mrb[0].mxu0
      %1827 = vmatprep.mubr.f32.mxu0 0.0
      %1828 = vmatmul.mubr.f32.gmra.mrb[0].mxu0 %v1364
      %v1829 = vpop.f32.mrb[0].mxu0
      %v1830 = vadd.f32 %v1337, %v1829
      %v1831 = vpop.f32.mrb[0].mxu0
      %1832 = vmatprep.mubr.f32.mxu0 0.0
      %1833 = vmatmul.mubr.f32.gmra.mrb[0].mxu0 %v1367
      %v1834 = vpop.f32.mrb[0].mxu0
      %v1835 = vadd.f32 %v1337, %v1834
      %v1836 = vpop.f32.mrb[0].mxu0
      %1837 = vmatprep.mubr.f32.mxu0 0.0
      %1838 = vmatmul.mubr.f32.gmra.mrb[0].mxu0 %v1370
      %v1839 = vpop.f32.mrb[0].mxu0
      %v1840 = vadd.f32 %v1337, %v1839
      %v1841 = vpop.f32.mrb[0].mxu0
      %1842 = vmatprep.mubr.f32.mxu0 0.0
      %1843 = vmatmul.mubr.f32.gmra.mrb[0].mxu0 %v1373
      %v1844 = vpop.f32.mrb[0].mxu0
      %v1845 = vadd.f32 %v1337, %v1844
      %v1846 = vpop.f32.mrb[0].mxu0
      %1847 = vmatprep.mubr.f32.mxu0 0.0
      %1848 = vmatmul.mubr.f32.gmra.mrb[0].mxu0 %v1376
      %v1849 = vpop.f32.mrb[0].mxu0
      %v1850 = vadd.f32 %v1337, %v1849
      %v1851 = vpop.f32.mrb[0].mxu0
      %1852 = vmatprep.mubr.f32.mxu0 0.0
      %1853 = vmatmul.mubr.f32.gmra.mrb[0].mxu0 %v1379
      %v1854 = vpop.f32.mrb[0].mxu0
      %v1855 = vadd.f32 %v1337, %v1854
      %v1856 = vpop.f32.mrb[0].mxu0
      %1857 = vmatprep.mubr.f32.mxu0 0.0
      %1858 = vmatmul.mubr.f32.gmra.mrb[0].mxu0 %v1382
      %v1859 = vpop.f32.mrb[0].mxu0
      %v1860 = vadd.f32 %v1337, %v1859
      %v1861 = vpop.f32.mrb[0].mxu0
      %1862 = vmatprep.mubr.f32.mxu0 0.0
      %1863 = vmatmul.mubr.f32.gmra.mrb[0].mxu0 %v1385
      %v1864 = vpop.f32.mrb[0].mxu0
      %v1865 = vadd.f32 %v1337, %v1864
      %v1866 = vpop.f32.mrb[0].mxu0
      %1867 = vmatprep.mubr.f32.mxu0 0.0
      %1868 = vmatmul.mubr.f32.gmra.mrb[0].mxu0 %v1388
      %v1869 = vpop.f32.mrb[0].mxu0
      %v1870 = vadd.f32 %v1337, %v1869
      %v1871 = vpop.f32.mrb[0].mxu0
      %1872 = vmatprep.mubr.f32.mxu0 0.0
      %1873 = vmatmul.mubr.f32.gmra.mrb[0].mxu0 %v1391
      %v1874 = vpop.f32.mrb[0].mxu0
      %v1875 = vadd.f32 %v1337, %v1874
      %v1876 = vpop.f32.mrb[0].mxu0
      %1877 = vmatprep.mubr.f32.mxu0 0.0
      %1878 = vmatmul.mubr.f32.gmra.mrb[0].mxu0 %v1394
      %v1879 = vpop.f32.mrb[0].mxu0
      %v1880 = vadd.f32 %v1337, %v1879
      %v1881 = vpop.f32.mrb[0].mxu0
      %1882 = vmatprep.mubr.f32.mxu0 0.0
      %1883 = vmatmul.mubr.f32.gmra.mrb[0].mxu0 %v1397
      %v1884 = vpop.f32.mrb[0].mxu0
      %v1885 = vadd.f32 %v1337, %v1884
      %v1886 = vpop.f32.mrb[0].mxu0
      %1887 = vmatprep.mubr.f32.mxu0 0.0
      %1888 = vmatmul.mubr.f32.gmra.mrb[0].mxu0 %v1400
      %v1889 = vpop.f32.mrb[0].mxu0
      %v1890 = vadd.f32 %v1337, %v1889
      %v1891 = vpop.f32.mrb[0].mxu0
      %1892 = vmatprep.mubr.f32.mxu0 0.0
      %1893 = vmatmul.mubr.f32.gmra.mrb[0].mxu0 %v1403
      %v1894 = vpop.f32.mrb[0].mxu0
      %v1895 = vadd.f32 %v1337, %v1894
      %v1896 = vpop.f32.mrb[0].mxu0
      %1897 = vmatprep.mubr.f32.mxu0 0.0
      %1898 = vmatmul.mubr.f32.gmra.mrb[0].mxu0 %v1406
      %v1899 = vpop.f32.mrb[0].mxu0
      %v1900 = vadd.f32 %v1337, %v1899
      %v1901 = vpop.f32.mrb[0].mxu0
      %1902 = vmatprep.mubr.f32.mxu0 0.0
      %1903 = vmatmul.mubr.f32.gmra.mrb[0].mxu0 %v1409
      %v1904 = vpop.f32.mrb[0].mxu0
      %v1905 = vadd.f32 %v1337, %v1904
      %v1906 = vpop.f32.mrb[0].mxu0
      %1907 = vmatprep.mubr.f32.mxu0 0.0
      %1908 = vmatmul.mubr.f32.gmra.mrb[0].mxu0 %v1412
      %v1909 = vpop.f32.mrb[0].mxu0
      %v1910 = vadd.f32 %v1337, %v1909
      %v1911 = vpop.f32.mrb[0].mxu0
      %1912 = vmatprep.mubr.f32.mxu0 0.0
      %1913 = vmatmul.mubr.f32.gmra.mrb[0].mxu0 %v1415
      %v1914 = vpop.f32.mrb[0].mxu0
      %v1915 = vadd.f32 %v1337, %v1914
      %v1916 = vpop.f32.mrb[0].mxu0
      %1917 = vmatprep.mubr.f32.mxu0 0.0
      %1918 = vmatmul.mubr.f32.gmra.mrb[0].mxu0 %v1418
      %v1919 = vpop.f32.mrb[0].mxu0
      %v1920 = vadd.f32 %v1337, %v1919
      %v1921 = vpop.f32.mrb[0].mxu0
      %1922 = vmatprep.mubr.f32.mxu0 0.0
      %1923 = vmatmul.mubr.f32.gmra.mrb[0].mxu0 %v1421
      %v1924 = vpop.f32.mrb[0].mxu0
      %v1925 = vadd.f32 %v1337, %v1924
      %v1926 = vpop.f32.mrb[0].mxu0
      %1927 = vmatprep.mubr.f32.mxu0 0.0
      %1928 = vmatmul.mubr.f32.gmra.mrb[0].mxu0 %v1424
      %v1929 = vpop.f32.mrb[0].mxu0
      %v1930 = vadd.f32 %v1337, %v1929
      %v1931 = vpop.f32.mrb[0].mxu0
      %1932 = vmatprep.mubr.f32.mxu0 0.0
      %1933 = vmatmul.mubr.f32.gmra.mrb[0].mxu0 %v1427
      %v1934 = vpop.f32.mrb[0].mxu0
      %v1935 = vadd.f32 %v1337, %v1934
      %v1936 = vpop.f32.mrb[0].mxu0
      %1937 = vmatprep.mubr.f32.mxu0 0.0
      %1938 = vmatmul.mubr.f32.gmra.mrb[0].mxu0 %v1430
      %v1939 = vpop.f32.mrb[0].mxu0
      %v1940 = vadd.f32 %v1337, %v1939
      %v1941 = vpop.f32.mrb[0].mxu0
      %1942 = vmatprep.mubr.f32.mxu0 0.0
      %1943 = vmatmul.mubr.f32.gmra.mrb[0].mxu0 %v1433
      %v1944 = vpop.f32.mrb[0].mxu0
      %v1945 = vadd.f32 %v1337, %v1944
      %v1946 = vpop.f32.mrb[0].mxu0
      %1947 = vmatprep.mubr.f32.mxu0 0.0
      %1948 = vmatmul.mubr.f32.gmra.mrb[0].mxu0 %v1436
      %v1949 = vpop.f32.mrb[0].mxu0
      %v1950 = vadd.f32 %v1337, %v1949
      %v1951 = vpop.f32.mrb[0].mxu0
      %1952 = vmatprep.mubr.f32.mxu0 0.0
      %1953 = vmatmul.mubr.f32.gmra.mrb[0].mxu0 %v1439
      %v1954 = vpop.f32.mrb[0].mxu0
      %v1955 = vadd.f32 %v1337, %v1954
      %v1956 = vpop.f32.mrb[0].mxu0
      %1957 = vmatprep.mubr.f32.mxu0 0.0
      %1958 = vmatmul.mubr.f32.gmra.mrb[0].mxu0 %v1442
      %v1959 = vpop.f32.mrb[0].mxu0
      %v1960 = vadd.f32 %v1337, %v1959
      %v1961 = vpop.f32.mrb[0].mxu0
      %1962 = vmatprep.mubr.f32.mxu0 0.0
      %1963 = vmatmul.mubr.f32.gmra.mrb[0].mxu0 %v1445
      %v1964 = vpop.f32.mrb[0].mxu0
      %v1965 = vadd.f32 %v1337, %v1964
      %v1966 = vpop.f32.mrb[0].mxu0
      %1967 = vmatprep.mubr.f32.mxu0 0.0
      %1968 = vmatmul.mubr.f32.gmra.mrb[0].mxu0 %v1448
      %v1969 = vpop.f32.mrb[0].mxu0
      %v1970 = vadd.f32 %v1337, %v1969
      %v1971 = vpop.f32.mrb[0].mxu0
      %1972 = vmatprep.mubr.f32.mxu0 0.0
      %1973 = vmatmul.mubr.f32.gmra.mrb[0].mxu0 %v1451
      %v1974 = vpop.f32.mrb[0].mxu0
      %v1975 = vadd.f32 %v1337, %v1974
      %v1976 = vpop.f32.mrb[0].mxu0
      %1977 = vmatprep.mubr.f32.mxu0 0.0
      %1978 = vmatmul.mubr.f32.gmra.mrb[0].mxu0 %v1454
      %v1979 = vpop.f32.mrb[0].mxu0
      %v1980 = vadd.f32 %v1337, %v1979
      %v1981 = vpop.f32.mrb[0].mxu0
      %1982 = vmatprep.mubr.f32.mxu0 0.0
      %1983 = vmatmul.mubr.f32.gmra.mrb[0].mxu0 %v1457
      %v1984 = vpop.f32.mrb[0].mxu0
      %v1985 = vadd.f32 %v1337, %v1984
      %v1986 = vpop.f32.mrb[0].mxu0
      %1987 = vmatprep.mubr.f32.mxu0 0.0
      %1988 = vmatmul.mubr.f32.gmra.mrb[0].mxu0 %v1460
      %v1989 = vpop.f32.mrb[0].mxu0
      %v1990 = vadd.f32 %v1337, %v1989
      %v1991 = vpop.f32.mrb[0].mxu0
      %1992 = vmatprep.mubr.f32.mxu0 0.0
      %1993 = vmatmul.mubr.f32.gmra.mrb[0].mxu0 %v1463
      %v1994 = vpop.f32.mrb[0].mxu0
      %v1995 = vadd.f32 %v1337, %v1994
      %v1996 = vpop.f32.mrb[0].mxu0
      %1997 = vmatprep.mubr.f32.mxu0 0.0
      %1998 = vmatmul.mubr.f32.gmra.mrb[0].mxu0 %v1466
      %v1999 = vpop.f32.mrb[0].mxu0
      %v2000 = vadd.f32 %v1337, %v1999
      %v2001 = vpop.f32.mrb[0].mxu0
      %2002 = vmatprep.mubr.f32.mxu0 0.0
      %2003 = vmatmul.mubr.f32.gmra.mrb[0].mxu0 %v1469
      %v2004 = vpop.f32.mrb[0].mxu0
      %v2005 = vadd.f32 %v1337, %v2004
      %v2006 = vpop.f32.mrb[0].mxu0
      %2007 = vmatprep.mubr.f32.mxu0 0.0
      %2008 = vmatmul.mubr.f32.gmra.mrb[0].mxu0 %v1472
      %v2009 = vpop.f32.mrb[0].mxu0
      %v2010 = vadd.f32 %v1337, %v2009
      %v2011 = vpop.f32.mrb[0].mxu0
      %2012 = vmatprep.mubr.f32.mxu0 0.0
      %2013 = vmatmul.mubr.f32.gmra.mrb[0].mxu0 %v1475
      %v2014 = vpop.f32.mrb[0].mxu0
      %v2015 = vadd.f32 %v1337, %v2014
      %v2016 = vpop.f32.mrb[0].mxu0
      %2017 = vmatprep.mubr.f32.mxu0 0.0
      %2018 = vmatmul.mubr.f32.gmra.mrb[0].mxu0 %v1478
      %v2019 = vpop.f32.mrb[0].mxu0
      %v2020 = vadd.f32 %v1337, %v2019
      %v2021 = vpop.f32.mrb[0].mxu0
      %2022 = vmatprep.mubr.f32.mxu0 0.0
      %2023 = vmatmul.mubr.f32.gmra.mrb[0].mxu0 %v1481
      %v2024 = vpop.f32.mrb[0].mxu0
      %v2025 = vadd.f32 %v1337, %v2024
      %v2026 = vpop.f32.mrb[0].mxu0
      %2027 = vmatprep.mubr.f32.mxu0 0.0
      %2028 = vmatmul.mubr.f32.gmra.mrb[0].mxu0 %v1484
      %v2029 = vpop.f32.mrb[0].mxu0
      %v2030 = vadd.f32 %v1337, %v2029
      %v2031 = vpop.f32.mrb[0].mxu0
      %2032 = vmatprep.mubr.f32.mxu0 0.0
      %2033 = vmatmul.mubr.f32.gmra.mrb[0].mxu0 %v1487
      %v2034 = vpop.f32.mrb[0].mxu0
      %v2035 = vadd.f32 %v1337, %v2034
      %v2036 = vpop.f32.mrb[0].mxu0
      %2037 = vmatprep.mubr.f32.mxu0 0.0
      %2038 = vmatmul.mubr.f32.gmra.mrb[0].mxu0 %v1490
      %v2039 = vpop.f32.mrb[0].mxu0
      %v2040 = vadd.f32 %v1337, %v2039
      %v2041 = vpop.f32.mrb[0].mxu0
      %2042 = vmatprep.mubr.f32.mxu0 0.0
      %2043 = vmatmul.mubr.f32.gmra.mrb[0].mxu0 %v1493
      %v2044 = vpop.f32.mrb[0].mxu0
      %v2045 = vadd.f32 %v1337, %v2044
      %v2046 = vpop.f32.mrb[0].mxu0
      %2047 = vmatprep.mubr.f32.mxu0 0.0
      %2048 = vmatmul.mubr.f32.gmra.mrb[0].mxu0 %v1496
      %v2049 = vpop.f32.mrb[0].mxu0
      %v2050 = vadd.f32 %v1337, %v2049
      %v2051 = vpop.f32.mrb[0].mxu0
      %2052 = vmatprep.mubr.f32.mxu0 0.0
      %2053 = vmatmul.mubr.f32.gmra.mrb[0].mxu0 %v1499
      %v2054 = vpop.f32.mrb[0].mxu0
      %v2055 = vadd.f32 %v1337, %v2054
      %v2056 = vpop.f32.mrb[0].mxu0
      %2057 = vmatprep.mubr.f32.mxu0 0.0
      %2058 = vmatmul.mubr.f32.gmra.mrb[0].mxu0 %v1502
      %v2059 = vpop.f32.mrb[0].mxu0
      %v2060 = vadd.f32 %v1337, %v2059
      %v2061 = vpop.f32.mrb[0].mxu0
      %2062 = vmatprep.mubr.f32.mxu0 0.0
      %2063 = vmatmul.mubr.f32.gmra.mrb[0].mxu0 %v1505
      %v2064 = vpop.f32.mrb[0].mxu0
      %v2065 = vadd.f32 %v1337, %v2064
      %v2066 = vpop.f32.mrb[0].mxu0
      %2067 = vmatprep.mubr.f32.mxu0 0.0
      %2068 = vmatmul.mubr.f32.gmra.mrb[0].mxu0 %v1508
      %v2069 = vpop.f32.mrb[0].mxu0
      %v2070 = vadd.f32 %v1337, %v2069
      %v2071 = vpop.f32.mrb[0].mxu0
      %2072 = vmatprep.mubr.f32.mxu0 0.0
      %2073 = vmatmul.mubr.f32.gmra.mrb[0].mxu0 %v1511
      %v2074 = vpop.f32.mrb[0].mxu0
      %v2075 = vadd.f32 %v1337, %v2074
      %v2076 = vpop.f32.mrb[0].mxu0
      %2077 = vmatprep.mubr.f32.mxu0 0.0
      %2078 = vmatmul.mubr.f32.gmra.mrb[0].mxu0 %v1514
      %v2079 = vpop.f32.mrb[0].mxu0
      %v2080 = vadd.f32 %v1337, %v2079
      %v2081 = vpop.f32.mrb[0].mxu0
      %2082 = vmatprep.mubr.f32.mxu0 0.0
      %2083 = vmatmul.mubr.f32.gmra.mrb[0].mxu0 %v1517
      %v2084 = vpop.f32.mrb[0].mxu0
      %v2085 = vadd.f32 %v1337, %v2084
      %v2086 = vpop.f32.mrb[0].mxu0
      %2087 = vmatprep.mubr.f32.mxu0 0.0
      %2088 = vmatmul.mubr.f32.gmra.mrb[0].mxu0 %v1520
      %v2089 = vpop.f32.mrb[0].mxu0
      %v2090 = vadd.f32 %v1337, %v2089
      %v2091 = vpop.f32.mrb[0].mxu0
      %2092 = vmatprep.mubr.f32.mxu0 0.0
      %2093 = vmatmul.mubr.f32.gmra.mrb[0].mxu0 %v1523
      %v2094 = vpop.f32.mrb[0].mxu0
      %v2095 = vadd.f32 %v1337, %v2094
      %v2096 = vpop.f32.mrb[0].mxu0
      %2097 = vmatprep.mubr.f32.mxu0 0.0
      %2098 = vmatmul.mubr.f32.gmra.mrb[0].mxu0 %v1526
      %v2099 = vpop.f32.mrb[0].mxu0
      %v2100 = vadd.f32 %v1337, %v2099
      %v2101 = vpop.f32.mrb[0].mxu0
      %2102 = vmatprep.mubr.f32.mxu0 0.0
      %2103 = vmatmul.mubr.f32.gmra.mrb[0].mxu0 %v1529
      %v2104 = vpop.f32.mrb[0].mxu0
      %v2105 = vadd.f32 %v1337, %v2104
      %v2106 = vpop.f32.mrb[0].mxu0
      %2107 = vmatprep.mubr.f32.mxu0 0.0
      %2108 = vmatmul.mubr.f32.gmra.mrb[0].mxu0 %v1532
      %v2109 = vpop.f32.mrb[0].mxu0
      %v2110 = vadd.f32 %v1337, %v2109
      %v2111 = vpop.f32.mrb[0].mxu0
      %2112 = vmatprep.mubr.f32.mxu0 0.0
      %2113 = vmatmul.mubr.f32.gmra.mrb[0].mxu0 %v1535
      %v2114 = vpop.f32.mrb[0].mxu0
      %v2115 = vadd.f32 %v1337, %v2114
      %v2116 = vpop.f32.mrb[0].mxu0
      %2117 = vmatprep.mubr.f32.mxu0 0.0
      %2118 = vmatmul.mubr.f32.gmra.mrb[0].mxu0 %v1538
      %v2119 = vpop.f32.mrb[0].mxu0
      %v2120 = vadd.f32 %v1337, %v2119
      %v2121 = vpop.f32.mrb[0].mxu0
      %2122 = vmatprep.mubr.f32.mxu0 0.0
      %2123 = vmatmul.mubr.f32.gmra.mrb[0].mxu0 %v1541
      %v2124 = vpop.f32.mrb[0].mxu0
      %v2125 = vadd.f32 %v1337, %v2124
      %v2126 = vpop.f32.mrb[0].mxu0
      %2127 = vmatprep.mubr.f32.mxu0 0.0
      %2128 = vmatmul.mubr.f32.gmra.mrb[0].mxu0 %v1544
      %v2129 = vpop.f32.mrb[0].mxu0
      %v2130 = vadd.f32 %v1337, %v2129
      %v2131 = vpop.f32.mrb[0].mxu0
      %2132 = vmatprep.mubr.f32.mxu0 0.0
      %2133 = vmatmul.mubr.f32.gmra.mrb[0].mxu0 %v1547
      %v2134 = vpop.f32.mrb[0].mxu0
      %v2135 = vadd.f32 %v1337, %v2134
      %v2136 = vpop.f32.mrb[0].mxu0
      %2137 = vmatprep.mubr.f32.mxu0 0.0
      %2138 = vmatmul.mubr.f32.gmra.mrb[0].mxu0 %v1550
      %v2139 = vpop.f32.mrb[0].mxu0
      %v2140 = vadd.f32 %v1337, %v2139
      %v2141 = vpop.f32.mrb[0].mxu0
      %2142 = vmatprep.mubr.f32.mxu0 0.0
      %2143 = vmatmul.mubr.f32.gmra.mrb[0].mxu0 %v1553
      %v2144 = vpop.f32.mrb[0].mxu0
      %v2145 = vadd.f32 %v1337, %v2144
      %v2146 = vpop.f32.mrb[0].mxu0
      %2147 = vmatprep.mubr.f32.mxu0 0.0
      %2148 = vmatmul.mubr.f32.gmra.mrb[0].mxu0 %v1556
      %v2149 = vpop.f32.mrb[0].mxu0
      %v2150 = vadd.f32 %v1337, %v2149
      %v2151 = vpop.f32.mrb[0].mxu0
      %2152 = vmatprep.mubr.f32.mxu0 0.0
      %2153 = vmatmul.mubr.f32.gmra.mrb[0].mxu0 %v1559
      %v2154 = vpop.f32.mrb[0].mxu0
      %v2155 = vadd.f32 %v1337, %v2154
      %v2156 = vpop.f32.mrb[0].mxu0
      %2157 = vmatprep.mubr.f32.mxu0 0.0
      %2158 = vmatmul.mubr.f32.gmra.mrb[0].mxu0 %v1562
      %v2159 = vpop.f32.mrb[0].mxu0
      %v2160 = vadd.f32 %v1337, %v2159
      %v2161 = vpop.f32.mrb[0].mxu0
      %2162 = vmatprep.mubr.f32.mxu0 0.0
      %2163 = vmatmul.mubr.f32.gmra.mrb[0].mxu0 %v1565
      %v2164 = vpop.f32.mrb[0].mxu0
      %v2165 = vadd.f32 %v1337, %v2164
      %v2166 = vpop.f32.mrb[0].mxu0
      %2167 = vmatprep.mubr.f32.mxu0 0.0
      %2168 = vmatmul.mubr.f32.gmra.mrb[0].mxu0 %v1568
      %v2169 = vpop.f32.mrb[0].mxu0
      %v2170 = vadd.f32 %v1337, %v2169
      %v2171 = vpop.f32.mrb[0].mxu0
      %2172 = vmatprep.mubr.f32.mxu0 0.0
      %2173 = vmatmul.mubr.f32.gmra.mrb[0].mxu0 %v1571
      %v2174 = vpop.f32.mrb[0].mxu0
      %v2175 = vadd.f32 %v1337, %v2174
      %v2176 = vpop.f32.mrb[0].mxu0
      %2177 = vmatprep.mubr.f32.mxu0 0.0
      %2178 = vmatmul.mubr.f32.gmra.mrb[0].mxu0 %v1574
      %v2179 = vpop.f32.mrb[0].mxu0
      %v2180 = vadd.f32 %v1337, %v2179
      %v2181 = vpop.f32.mrb[0].mxu0
      %2182 = vmatprep.mubr.f32.mxu0 0.0
      %2183 = vmatmul.mubr.f32.gmra.mrb[0].mxu0 %v1577
      %v2184 = vpop.f32.mrb[0].mxu0
      %v2185 = vadd.f32 %v1337, %v2184
      %v2186 = vpop.f32.mrb[0].mxu0
      %2187 = vmatprep.mubr.f32.mxu0 0.0
      %2188 = vmatmul.mubr.f32.gmra.mrb[0].mxu0 %v1580
      %v2189 = vpop.f32.mrb[0].mxu0
      %v2190 = vadd.f32 %v1337, %v2189
      %v2191 = vpop.f32.mrb[0].mxu0
      %2192 = vmatprep.mubr.f32.mxu0 0.0
      %2193 = vmatmul.mubr.f32.gmra.mrb[0].mxu0 %v1583
      %v2194 = vpop.f32.mrb[0].mxu0
      %v2195 = vadd.f32 %v1337, %v2194
      %v2196 = vpop.f32.mrb[0].mxu0
      %2197 = vmatprep.mubr.f32.mxu0 0.0
      %2198 = vmatmul.mubr.f32.gmra.mrb[0].mxu0 %v1586
      %v2199 = vpop.f32.mrb[0].mxu0
      %v2200 = vadd.f32 %v1337, %v2199
      %v2201 = vpop.f32.mrb[0].mxu0
      %2202 = vmatprep.mubr.f32.mxu0 0.0
      %2203 = vmatmul.mubr.f32.gmra.mrb[0].mxu0 %v1589
      %v2204 = vpop.f32.mrb[0].mxu0
      %v2205 = vadd.f32 %v1337, %v2204
      %v2206 = vpop.f32.mrb[0].mxu0
      %2207 = vmatprep.mubr.f32.mxu0 0.0
      %2208 = vmatmul.mubr.f32.gmra.mrb[0].mxu0 %v1592
      %v2209 = vpop.f32.mrb[0].mxu0
      %v2210 = vadd.f32 %v1337, %v2209
      %v2211 = vpop.f32.mrb[0].mxu0
      %2212 = vmatprep.mubr.f32.mxu0 0.0
      %2213 = vmatmul.mubr.f32.gmra.mrb[0].mxu0 %v1595
      %v2214 = vpop.f32.mrb[0].mxu0
      %v2215 = vadd.f32 %v1337, %v2214
      %v2216 = vpop.f32.mrb[0].mxu0
      %2217 = vmatprep.mubr.f32.mxu0 0.0
      %2218 = vmatmul.mubr.f32.gmra.mrb[0].mxu0 %v1598
      %v2219 = vpop.f32.mrb[0].mxu0
      %v2220 = vadd.f32 %v1337, %v2219
      %v2221 = vpop.f32.mrb[0].mxu0
      %2222 = vmatprep.mubr.f32.mxu0 0.0
      %2223 = vmatmul.mubr.f32.gmra.mrb[0].mxu0 %v1601
      %v2224 = vpop.f32.mrb[0].mxu0
      %v2225 = vadd.f32 %v1337, %v2224
      %v2226 = vpop.f32.mrb[0].mxu0
      %2227 = vmatprep.mubr.f32.mxu0 0.0
      %2228 = vmatmul.mubr.f32.gmra.mrb[0].mxu0 %v1604
      %v2229 = vpop.f32.mrb[0].mxu0
      %v2230 = vadd.f32 %v1337, %v2229
      %v2231 = vpop.f32.mrb[0].mxu0
      %2232 = vmatprep.mubr.f32.mxu0 0.0
      %2233 = vmatmul.mubr.f32.gmra.mrb[0].mxu0 %v1607
      %v2234 = vpop.f32.mrb[0].mxu0
      %v2235 = vadd.f32 %v1337, %v2234
      %v2236 = vpop.f32.mrb[0].mxu0
      %2237 = vmatprep.mubr.f32.mxu0 0.0
      %2238 = vmatmul.mubr.f32.gmra.mrb[0].mxu0 %v1610
      %v2239 = vpop.f32.mrb[0].mxu0
      %v2240 = vadd.f32 %v1337, %v2239
      %v2241 = vpop.f32.mrb[0].mxu0
      %2242 = vmatprep.mubr.f32.mxu0 0.0
      %2243 = vmatmul.mubr.f32.gmra.mrb[0].mxu0 %v1613
      %v2244 = vpop.f32.mrb[0].mxu0
      %v2245 = vadd.f32 %v1337, %v2244
      %v2246 = vpop.f32.mrb[0].mxu0
      %2247 = vmatprep.mubr.f32.mxu0 0.0
      %2248 = vmatmul.mubr.f32.gmra.mrb[0].mxu0 %v1616
      %v2249 = vpop.f32.mrb[0].mxu0
      %v2250 = vadd.f32 %v1337, %v2249
      %v2251 = vpop.f32.mrb[0].mxu0
      %2252 = vmatprep.mubr.f32.mxu0 0.0
      %2253 = vmatmul.mubr.f32.gmra.mrb[0].mxu0 %v1619
      %v2254 = vpop.f32.mrb[0].mxu0
      %v2255 = vadd.f32 %v1337, %v2254
      %v2256 = vpop.f32.mrb[0].mxu0
      %2257 = vmatprep.mubr.f32.mxu0 0.0
      %2258 = vmatmul.mubr.f32.gmra.mrb[0].mxu0 %v1622
      %v2259 = vpop.f32.mrb[0].mxu0
      %v2260 = vadd.f32 %v1337, %v2259
      %v2261 = vpop.f32.mrb[0].mxu0
      %2262 = vmatprep.mubr.f32.mxu0 0.0
      %2263 = vmatmul.mubr.f32.gmra.mrb[0].mxu0 %v1625
      %v2264 = vpop.f32.mrb[0].mxu0
      %v2265 = vadd.f32 %v1337, %v2264
      %v2266 = vpop.f32.mrb[0].mxu0
      %2267 = vmatprep.mubr.f32.mxu0 0.0
      %2268 = vmatmul.mubr.f32.gmra.mrb[0].mxu0 %v1628
      %v2269 = vpop.f32.mrb[0].mxu0
      %v2270 = vadd.f32 %v1337, %v2269
      %v2271 = vpop.f32.mrb[0].mxu0
      %2272 = vmatprep.mubr.f32.mxu0 0.0
      %2273 = vmatmul.mubr.f32.gmra.mrb[0].mxu0 %v1631
      %v2274 = vpop.f32.mrb[0].mxu0
      %v2275 = vadd.f32 %v1337, %v2274
      %v2276 = vpop.f32.mrb[0].mxu0
      %2277 = vmatprep.mubr.f32.mxu0 0.0
      %2278 = vmatmul.mubr.f32.gmra.mrb[0].mxu0 %v1634
      %v2279 = vpop.f32.mrb[0].mxu0
      %v2280 = vadd.f32 %v1337, %v2279
      %v2281 = vpop.f32.mrb[0].mxu0
      %2282 = vmatprep.mubr.f32.mxu0 0.0
      %2283 = vmatmul.mubr.f32.gmra.mrb[0].mxu0 %v1637
      %v2284 = vpop.f32.mrb[0].mxu0
      %v2285 = vadd.f32 %v1337, %v2284
      %v2286 = vpop.f32.mrb[0].mxu0
      %2287 = vmatprep.mubr.f32.mxu0 0.0
      %2288 = vmatmul.mubr.f32.gmra.mrb[0].mxu0 %v1640
      %v2289 = vpop.f32.mrb[0].mxu0
      %v2290 = vadd.f32 %v1337, %v2289
      %v2291 = vpop.f32.mrb[0].mxu0
      %2292 = vmatprep.mubr.f32.mxu0 0.0
      %2293 = vmatmul.mubr.f32.gmra.mrb[0].mxu0 %v1643
      %v2294 = vpop.f32.mrb[0].mxu0
      %v2295 = vadd.f32 %v1337, %v2294
      %v2296 = vpop.f32.mrb[0].mxu0
      %2297 = vmatprep.mubr.f32.mxu0 0.0
      %2298 = vmatmul.mubr.f32.gmra.mrb[0].mxu0 %v1646
      %v2299 = vpop.f32.mrb[0].mxu0
      %v2300 = vadd.f32 %v1337, %v2299
      %v2301 = vpop.f32.mrb[0].mxu0
      %2302 = vmatprep.mubr.f32.mxu0 0.0
      %2303 = vmatmul.mubr.f32.gmra.mrb[0].mxu0 %v1649
      %v2304 = vpop.f32.mrb[0].mxu0
      %v2305 = vadd.f32 %v1337, %v2304
      %v2306 = vpop.f32.mrb[0].mxu0
      %2307 = vmatprep.mubr.f32.mxu0 0.0
      %2308 = vmatmul.mubr.f32.gmra.mrb[0].mxu0 %v1652
      %v2309 = vpop.f32.mrb[0].mxu0
      %v2310 = vadd.f32 %v1337, %v2309
      %v2311 = vpop.f32.mrb[0].mxu0
      %2312 = vmatprep.mubr.f32.mxu0 0.0
      %2313 = vmatmul.mubr.f32.gmra.mrb[0].mxu0 %v1655
      %v2314 = vpop.f32.mrb[0].mxu0
      %v2315 = vadd.f32 %v1337, %v2314
      %v2316 = vpop.f32.mrb[0].mxu0
      %2317 = vmatprep.mubr.f32.mxu0 0.0
      %2318 = vmatmul.mubr.f32.gmra.mrb[0].mxu0 %v1658
      %v2319 = vpop.f32.mrb[0].mxu0
      %v2320 = vadd.f32 %v1337, %v2319
      %v2321 = vpop.f32.mrb[0].mxu0
      %2322 = vmatprep.mubr.f32.mxu0 0.0
      %2323 = vmatmul.mubr.f32.gmra.mrb[0].mxu0 %v1661
      %v2324 = vpop.f32.mrb[0].mxu0
      %v2325 = vadd.f32 %v1337, %v2324
      %v2326 = vpop.f32.mrb[0].mxu0
      %2327 = vmatprep.mubr.f32.mxu0 0.0
      %2328 = vmatmul.mubr.f32.gmra.mrb[0].mxu0 %v1664
      %v2329 = vpop.f32.mrb[0].mxu0
      %v2330 = vadd.f32 %v1337, %v2329
      %v2331 = vpop.f32.mrb[0].mxu0
      %2332 = vmatprep.mubr.f32.mxu0 0.0
      %2333 = vmatmul.mubr.f32.gmra.mrb[0].mxu0 %v1667
      %v2334 = vpop.f32.mrb[0].mxu0
      %v2335 = vadd.f32 %v1337, %v2334
      %v2336 = vpop.f32.mrb[0].mxu0
      %2337 = vmatprep.mubr.f32.mxu0 0.0
      %2338 = vmatmul.mubr.f32.gmra.mrb[0].mxu0 %v1670
      %v2339 = vpop.f32.mrb[0].mxu0
      %v2340 = vadd.f32 %v1337, %v2339
      %v2341 = vpop.f32.mrb[0].mxu0
      %2342 = vmatprep.mubr.f32.mxu0 0.0
      %2343 = vmatmul.mubr.f32.gmra.mrb[0].mxu0 %v1673
      %v2344 = vpop.f32.mrb[0].mxu0
      %v2345 = vadd.f32 %v1337, %v2344
      %v2346 = vpop.f32.mrb[0].mxu0
      %2347 = vmatprep.mubr.f32.mxu0 0.0
      %2348 = vmatmul.mubr.f32.gmra.mrb[0].mxu0 %v1676
      %v2349 = vpop.f32.mrb[0].mxu0
      %v2350 = vadd.f32 %v1337, %v2349
      %v2351 = vpop.f32.mrb[0].mxu0
      %2352 = vmatprep.mubr.f32.mxu0 0.0
      %2353 = vmatmul.mubr.f32.gmra.mrb[0].mxu0 %v1679
      %v2354 = vpop.f32.mrb[0].mxu0
      %v2355 = vadd.f32 %v1337, %v2354
      %v2356 = vpop.f32.mrb[0].mxu0
      %2357 = vmatprep.mubr.f32.mxu0 0.0
      %2358 = vmatmul.mubr.f32.gmra.mrb[0].mxu0 %v1682
      %v2359 = vpop.f32.mrb[0].mxu0
      %v2360 = vadd.f32 %v1337, %v2359
      %v2361 = vpop.f32.mrb[0].mxu0
      %2362 = vmatprep.mubr.f32.mxu0 0.0
      %2363 = vmatmul.mubr.f32.gmra.mrb[0].mxu0 %v1685
      %v2364 = vpop.f32.mrb[0].mxu0
      %v2365 = vadd.f32 %v1337, %v2364
      %v2366 = vpop.f32.mrb[0].mxu0
      %2367 = vmatprep.mubr.f32.mxu0 0.0
      %2368 = vmatmul.mubr.f32.gmra.mrb[0].mxu0 %v1688
      %v2369 = vpop.f32.mrb[0].mxu0
      %v2370 = vadd.f32 %v1337, %v2369
      %v2371 = vpop.f32.mrb[0].mxu0
      %2372 = vmatprep.mubr.f32.mxu0 0.0
      %2373 = vmatmul.mubr.f32.gmra.mrb[0].mxu0 %v1691
      %v2374 = vpop.f32.mrb[0].mxu0
      %v2375 = vadd.f32 %v1337, %v2374
      %v2376 = vpop.f32.mrb[0].mxu0
      %2377 = vmatprep.mubr.f32.mxu0 0.0
      %2378 = vmatmul.mubr.f32.gmra.mrb[0].mxu0 %v1694
      %v2379 = vpop.f32.mrb[0].mxu0
      %v2380 = vadd.f32 %v1337, %v2379
      %v2381 = vpop.f32.mrb[0].mxu0
      %2382 = vmatprep.mubr.f32.mxu0 0.0
      %2383 = vmatmul.mubr.f32.gmra.mrb[0].mxu0 %v1697
      %v2384 = vpop.f32.mrb[0].mxu0
      %v2385 = vadd.f32 %v1337, %v2384
      %v2386 = vpop.f32.mrb[0].mxu0
      %2387 = vmatprep.mubr.f32.mxu0 0.0
      %2388 = vmatmul.mubr.f32.gmra.mrb[0].mxu0 %v1700
      %v2389 = vpop.f32.mrb[0].mxu0
      %v2390 = vadd.f32 %v1337, %v2389
      %v2391 = vpop.f32.mrb[0].mxu0
      %2392 = vmatprep.mubr.f32.mxu0 0.0
      %2393 = vmatmul.mubr.f32.gmra.mrb[0].mxu0 %v1703
      %v2394 = vpop.f32.mrb[0].mxu0
      %v2395 = vadd.f32 %v1337, %v2394
      %v2396 = vpop.f32.mrb[0].mxu0
      %2397 = vmatprep.mubr.f32.mxu0 0.0
      %2398 = vmatmul.mubr.f32.gmra.mrb[0].mxu0 %v1706
      %v2399 = vpop.f32.mrb[0].mxu0
      %v2400 = vadd.f32 %v1337, %v2399
      %v2401 = vpop.f32.mrb[0].mxu0
      %2402 = vmatprep.mubr.f32.mxu0 0.0
      %2403 = vmatmul.mubr.f32.gmra.mrb[0].mxu0 %v1709
      %v2404 = vpop.f32.mrb[0].mxu0
      %v2405 = vadd.f32 %v1337, %v2404
      %v2406 = vpop.f32.mrb[0].mxu0
      %2407 = vmatprep.mubr.f32.mxu0 0.0
      %2408 = vmatmul.mubr.f32.gmra.mrb[0].mxu0 %v1712
      %v2409 = vpop.f32.mrb[0].mxu0
      %v2410 = vadd.f32 %v1337, %v2409
      %v2411 = vpop.f32.mrb[0].mxu0
      %2412 = vmatprep.mubr.f32.mxu0 0.0
      %2413 = vmatmul.mubr.f32.gmra.mrb[0].mxu0 %v1715
      %v2414 = vpop.f32.mrb[0].mxu0
      %v2415 = vadd.f32 %v1337, %v2414
      %v2416 = vpop.f32.mrb[0].mxu0
      %2417 = vmatprep.mubr.f32.mxu0 0.0
      %2418 = vmatmul.mubr.f32.gmra.mrb[0].mxu0 %v1718
      %v2419 = vpop.f32.mrb[0].mxu0
      %v2420 = vadd.f32 %v1337, %v2419
      %v2421 = vpop.f32.mrb[0].mxu0
      %2422 = vmatprep.mubr.f32.mxu0 0.0
      %2423 = vmatmul.mubr.f32.gmra.mrb[0].mxu0 %v1721
      %v2424 = vpop.f32.mrb[0].mxu0
      %v2425 = vadd.f32 %v1337, %v2424
      %v2426 = vpop.f32.mrb[0].mxu0
      %2427 = vdwg.mxu0
      %vm2428 = vcmp.ge.f32.partialorder %v1790, 0.0
      %vm2429 = vcmp.ge.f32.partialorder %v1795, 0.0
      %vm2430 = vcmp.ge.f32.partialorder %v1800, 0.0
      %vm2431 = vcmp.ge.f32.partialorder %v1805, 0.0
      %vm2432 = vcmp.ge.f32.partialorder %v1810, 0.0
      %vm2433 = vcmp.ge.f32.partialorder %v1815, 0.0
      %vm2434 = vcmp.ge.f32.partialorder %v1820, 0.0
      %vm2435 = vcmp.ge.f32.partialorder %v1825, 0.0
      %vm2436 = vcmp.ge.f32.partialorder %v1830, 0.0
      %vm2437 = vcmp.ge.f32.partialorder %v1835, 0.0
      %vm2438 = vcmp.ge.f32.partialorder %v1840, 0.0
      %vm2439 = vcmp.ge.f32.partialorder %v1845, 0.0
      %vm2440 = vcmp.ge.f32.partialorder %v1850, 0.0
      %vm2441 = vcmp.ge.f32.partialorder %v1855, 0.0
      %vm2442 = vcmp.ge.f32.partialorder %v1860, 0.0
      %vm2443 = vcmp.ge.f32.partialorder %v1865, 0.0
      %vm2444 = vcmp.ge.f32.partialorder %v1870, 0.0
      %vm2445 = vcmp.ge.f32.partialorder %v1875, 0.0
      %vm2446 = vcmp.ge.f32.partialorder %v1880, 0.0
      %vm2447 = vcmp.ge.f32.partialorder %v1885, 0.0
      %vm2448 = vcmp.ge.f32.partialorder %v1890, 0.0
      %vm2449 = vcmp.ge.f32.partialorder %v1895, 0.0
      %vm2450 = vcmp.ge.f32.partialorder %v1900, 0.0
      %vm2451 = vcmp.ge.f32.partialorder %v1905, 0.0
      %vm2452 = vcmp.ge.f32.partialorder %v1910, 0.0
      %vm2453 = vcmp.ge.f32.partialorder %v1915, 0.0
      %vm2454 = vcmp.ge.f32.partialorder %v1920, 0.0
      %vm2455 = vcmp.ge.f32.partialorder %v1925, 0.0
      %vm2456 = vcmp.ge.f32.partialorder %v1930, 0.0
      %vm2457 = vcmp.ge.f32.partialorder %v1935, 0.0
      %vm2458 = vcmp.ge.f32.partialorder %v1940, 0.0
      %vm2459 = vcmp.ge.f32.partialorder %v1945, 0.0
      %vm2460 = vcmp.ge.f32.partialorder %v1950, 0.0
      %vm2461 = vcmp.ge.f32.partialorder %v1955, 0.0
      %vm2462 = vcmp.ge.f32.partialorder %v1960, 0.0
      %vm2463 = vcmp.ge.f32.partialorder %v1965, 0.0
      %vm2464 = vcmp.ge.f32.partialorder %v1970, 0.0
      %vm2465 = vcmp.ge.f32.partialorder %v1975, 0.0
      %vm2466 = vcmp.ge.f32.partialorder %v1980, 0.0
      %vm2467 = vcmp.ge.f32.partialorder %v1985, 0.0
      %vm2468 = vcmp.ge.f32.partialorder %v1990, 0.0
      %vm2469 = vcmp.ge.f32.partialorder %v1995, 0.0
      %vm2470 = vcmp.ge.f32.partialorder %v2000, 0.0
      %vm2471 = vcmp.ge.f32.partialorder %v2005, 0.0
      %vm2472 = vcmp.ge.f32.partialorder %v2010, 0.0
      %vm2473 = vcmp.ge.f32.partialorder %v2015, 0.0
      %vm2474 = vcmp.ge.f32.partialorder %v2020, 0.0
      %vm2475 = vcmp.ge.f32.partialorder %v2025, 0.0
      %vm2476 = vcmp.ge.f32.partialorder %v2030, 0.0
      %vm2477 = vcmp.ge.f32.partialorder %v2035, 0.0
      %vm2478 = vcmp.ge.f32.partialorder %v2040, 0.0
      %vm2479 = vcmp.ge.f32.partialorder %v2045, 0.0
      %vm2480 = vcmp.ge.f32.partialorder %v2050, 0.0
      %vm2481 = vcmp.ge.f32.partialorder %v2055, 0.0
      %vm2482 = vcmp.ge.f32.partialorder %v2060, 0.0
      %vm2483 = vcmp.ge.f32.partialorder %v2065, 0.0
      %vm2484 = vcmp.ge.f32.partialorder %v2070, 0.0
      %vm2485 = vcmp.ge.f32.partialorder %v2075, 0.0
      %vm2486 = vcmp.ge.f32.partialorder %v2080, 0.0
      %vm2487 = vcmp.ge.f32.partialorder %v2085, 0.0
      %vm2488 = vcmp.ge.f32.partialorder %v2090, 0.0
      %vm2489 = vcmp.ge.f32.partialorder %v2095, 0.0
      %vm2490 = vcmp.ge.f32.partialorder %v2100, 0.0
      %vm2491 = vcmp.ge.f32.partialorder %v2105, 0.0
      %vm2492 = vcmp.ge.f32.partialorder %v2110, 0.0
      %vm2493 = vcmp.ge.f32.partialorder %v2115, 0.0
      %vm2494 = vcmp.ge.f32.partialorder %v2120, 0.0
      %vm2495 = vcmp.ge.f32.partialorder %v2125, 0.0
      %vm2496 = vcmp.ge.f32.partialorder %v2130, 0.0
      %vm2497 = vcmp.ge.f32.partialorder %v2135, 0.0
      %vm2498 = vcmp.ge.f32.partialorder %v2140, 0.0
      %vm2499 = vcmp.ge.f32.partialorder %v2145, 0.0
      %vm2500 = vcmp.ge.f32.partialorder %v2150, 0.0
      %vm2501 = vcmp.ge.f32.partialorder %v2155, 0.0
      %vm2502 = vcmp.ge.f32.partialorder %v2160, 0.0
      %vm2503 = vcmp.ge.f32.partialorder %v2165, 0.0
      %vm2504 = vcmp.ge.f32.partialorder %v2170, 0.0
      %vm2505 = vcmp.ge.f32.partialorder %v2175, 0.0
      %vm2506 = vcmp.ge.f32.partialorder %v2180, 0.0
      %vm2507 = vcmp.ge.f32.partialorder %v2185, 0.0
      %vm2508 = vcmp.ge.f32.partialorder %v2190, 0.0
      %vm2509 = vcmp.ge.f32.partialorder %v2195, 0.0
      %vm2510 = vcmp.ge.f32.partialorder %v2200, 0.0
      %vm2511 = vcmp.ge.f32.partialorder %v2205, 0.0
      %vm2512 = vcmp.ge.f32.partialorder %v2210, 0.0
      %vm2513 = vcmp.ge.f32.partialorder %v2215, 0.0
      %vm2514 = vcmp.ge.f32.partialorder %v2220, 0.0
      %vm2515 = vcmp.ge.f32.partialorder %v2225, 0.0
      %vm2516 = vcmp.ge.f32.partialorder %v2230, 0.0
      %vm2517 = vcmp.ge.f32.partialorder %v2235, 0.0
      %vm2518 = vcmp.ge.f32.partialorder %v2240, 0.0
      %vm2519 = vcmp.ge.f32.partialorder %v2245, 0.0
      %vm2520 = vcmp.ge.f32.partialorder %v2250, 0.0
      %vm2521 = vcmp.ge.f32.partialorder %v2255, 0.0
      %vm2522 = vcmp.ge.f32.partialorder %v2260, 0.0
      %vm2523 = vcmp.ge.f32.partialorder %v2265, 0.0
      %vm2524 = vcmp.ge.f32.partialorder %v2270, 0.0
      %vm2525 = vcmp.ge.f32.partialorder %v2275, 0.0
      %vm2526 = vcmp.ge.f32.partialorder %v2280, 0.0
      %vm2527 = vcmp.ge.f32.partialorder %v2285, 0.0
      %vm2528 = vcmp.ge.f32.partialorder %v2290, 0.0
      %vm2529 = vcmp.ge.f32.partialorder %v2295, 0.0
      %vm2530 = vcmp.ge.f32.partialorder %v2300, 0.0
      %vm2531 = vcmp.ge.f32.partialorder %v2305, 0.0
      %vm2532 = vcmp.ge.f32.partialorder %v2310, 0.0
      %vm2533 = vcmp.ge.f32.partialorder %v2315, 0.0
      %vm2534 = vcmp.ge.f32.partialorder %v2320, 0.0
      %vm2535 = vcmp.ge.f32.partialorder %v2325, 0.0
      %vm2536 = vcmp.ge.f32.partialorder %v2330, 0.0
      %vm2537 = vcmp.ge.f32.partialorder %v2335, 0.0
      %vm2538 = vcmp.ge.f32.partialorder %v2340, 0.0
      %vm2539 = vcmp.ge.f32.partialorder %v2345, 0.0
      %vm2540 = vcmp.ge.f32.partialorder %v2350, 0.0
      %vm2541 = vcmp.ge.f32.partialorder %v2355, 0.0
      %vm2542 = vcmp.ge.f32.partialorder %v2360, 0.0
      %vm2543 = vcmp.ge.f32.partialorder %v2365, 0.0
      %vm2544 = vcmp.ge.f32.partialorder %v2370, 0.0
      %vm2545 = vcmp.ge.f32.partialorder %v2375, 0.0
      %vm2546 = vcmp.ge.f32.partialorder %v2380, 0.0
      %vm2547 = vcmp.ge.f32.partialorder %v2385, 0.0
      %vm2548 = vcmp.ge.f32.partialorder %v2390, 0.0
      %vm2549 = vcmp.ge.f32.partialorder %v2395, 0.0
      %vm2550 = vcmp.ge.f32.partialorder %v2400, 0.0
      %vm2551 = vcmp.ge.f32.partialorder %v2405, 0.0
      %vm2552 = vcmp.ge.f32.partialorder %v2410, 0.0
      %vm2553 = vcmp.ge.f32.partialorder %v2415, 0.0
      %vm2554 = vcmp.ge.f32.partialorder %v2420, 0.0
      %vm2555 = vcmp.ge.f32.partialorder %v2425, 0.0
      %v2556 = vmul.f32 %v1790, 0.2
      %v2557 = vmul.f32 %v1795, 0.2
      %v2558 = vmul.f32 %v1800, 0.2
      %v2559 = vmul.f32 %v1805, 0.2
      %v2560 = vmul.f32 %v1810, 0.2
      %v2561 = vmul.f32 %v1815, 0.2
      %v2562 = vmul.f32 %v1820, 0.2
      %v2563 = vmul.f32 %v1825, 0.2
      %v2564 = vmul.f32 %v1830, 0.2
      %v2565 = vmul.f32 %v1835, 0.2
      %v2566 = vmul.f32 %v1840, 0.2
      %v2567 = vmul.f32 %v1845, 0.2
      %v2568 = vmul.f32 %v1850, 0.2
      %v2569 = vmul.f32 %v1855, 0.2
      %v2570 = vmul.f32 %v1860, 0.2
      %v2571 = vmul.f32 %v1865, 0.2
      %v2572 = vmul.f32 %v1870, 0.2
      %v2573 = vmul.f32 %v1875, 0.2
      %v2574 = vmul.f32 %v1880, 0.2
      %v2575 = vmul.f32 %v1885, 0.2
      %v2576 = vmul.f32 %v1890, 0.2
      %v2577 = vmul.f32 %v1895, 0.2
      %v2578 = vmul.f32 %v1900, 0.2
      %v2579 = vmul.f32 %v1905, 0.2
      %v2580 = vmul.f32 %v1910, 0.2
      %v2581 = vmul.f32 %v1915, 0.2
      %v2582 = vmul.f32 %v1920, 0.2
      %v2583 = vmul.f32 %v1925, 0.2
      %v2584 = vmul.f32 %v1930, 0.2
      %v2585 = vmul.f32 %v1935, 0.2
      %v2586 = vmul.f32 %v1940, 0.2
      %v2587 = vmul.f32 %v1945, 0.2
      %v2588 = vmul.f32 %v1950, 0.2
      %v2589 = vmul.f32 %v1955, 0.2
      %v2590 = vmul.f32 %v1960, 0.2
      %v2591 = vmul.f32 %v1965, 0.2
      %v2592 = vmul.f32 %v1970, 0.2
      %v2593 = vmul.f32 %v1975, 0.2
      %v2594 = vmul.f32 %v1980, 0.2
      %v2595 = vmul.f32 %v1985, 0.2
      %v2596 = vmul.f32 %v1990, 0.2
      %v2597 = vmul.f32 %v1995, 0.2
      %v2598 = vmul.f32 %v2000, 0.2
      %v2599 = vmul.f32 %v2005, 0.2
      %v2600 = vmul.f32 %v2010, 0.2
      %v2601 = vmul.f32 %v2015, 0.2
      %v2602 = vmul.f32 %v2020, 0.2
      %v2603 = vmul.f32 %v2025, 0.2
      %v2604 = vmul.f32 %v2030, 0.2
      %v2605 = vmul.f32 %v2035, 0.2
      %v2606 = vmul.f32 %v2040, 0.2
      %v2607 = vmul.f32 %v2045, 0.2
      %v2608 = vmul.f32 %v2050, 0.2
      %v2609 = vmul.f32 %v2055, 0.2
      %v2610 = vmul.f32 %v2060, 0.2
      %v2611 = vmul.f32 %v2065, 0.2
      %v2612 = vmul.f32 %v2070, 0.2
      %v2613 = vmul.f32 %v2075, 0.2
      %v2614 = vmul.f32 %v2080, 0.2
      %v2615 = vmul.f32 %v2085, 0.2
      %v2616 = vmul.f32 %v2090, 0.2
      %v2617 = vmul.f32 %v2095, 0.2
      %v2618 = vmul.f32 %v2100, 0.2
      %v2619 = vmul.f32 %v2105, 0.2
      %v2620 = vmul.f32 %v2110, 0.2
      %v2621 = vmul.f32 %v2115, 0.2
      %v2622 = vmul.f32 %v2120, 0.2
      %v2623 = vmul.f32 %v2125, 0.2
      %v2624 = vmul.f32 %v2130, 0.2
      %v2625 = vmul.f32 %v2135, 0.2
      %v2626 = vmul.f32 %v2140, 0.2
      %v2627 = vmul.f32 %v2145, 0.2
      %v2628 = vmul.f32 %v2150, 0.2
      %v2629 = vmul.f32 %v2155, 0.2
      %v2630 = vmul.f32 %v2160, 0.2
      %v2631 = vmul.f32 %v2165, 0.2
      %v2632 = vmul.f32 %v2170, 0.2
      %v2633 = vmul.f32 %v2175, 0.2
      %v2634 = vmul.f32 %v2180, 0.2
      %v2635 = vmul.f32 %v2185, 0.2
      %v2636 = vmul.f32 %v2190, 0.2
      %v2637 = vmul.f32 %v2195, 0.2
      %v2638 = vmul.f32 %v2200, 0.2
      %v2639 = vmul.f32 %v2205, 0.2
      %v2640 = vmul.f32 %v2210, 0.2
      %v2641 = vmul.f32 %v2215, 0.2
      %v2642 = vmul.f32 %v2220, 0.2
      %v2643 = vmul.f32 %v2225, 0.2
      %v2644 = vmul.f32 %v2230, 0.2
      %v2645 = vmul.f32 %v2235, 0.2
      %v2646 = vmul.f32 %v2240, 0.2
      %v2647 = vmul.f32 %v2245, 0.2
      %v2648 = vmul.f32 %v2250, 0.2
      %v2649 = vmul.f32 %v2255, 0.2
      %v2650 = vmul.f32 %v2260, 0.2
      %v2651 = vmul.f32 %v2265, 0.2
      %v2652 = vmul.f32 %v2270, 0.2
      %v2653 = vmul.f32 %v2275, 0.2
      %v2654 = vmul.f32 %v2280, 0.2
      %v2655 = vmul.f32 %v2285, 0.2
      %v2656 = vmul.f32 %v2290, 0.2
      %v2657 = vmul.f32 %v2295, 0.2
      %v2658 = vmul.f32 %v2300, 0.2
      %v2659 = vmul.f32 %v2305, 0.2
      %v2660 = vmul.f32 %v2310, 0.2
      %v2661 = vmul.f32 %v2315, 0.2
      %v2662 = vmul.f32 %v2320, 0.2
      %v2663 = vmul.f32 %v2325, 0.2
      %v2664 = vmul.f32 %v2330, 0.2
      %v2665 = vmul.f32 %v2335, 0.2
      %v2666 = vmul.f32 %v2340, 0.2
      %v2667 = vmul.f32 %v2345, 0.2
      %v2668 = vmul.f32 %v2350, 0.2
      %v2669 = vmul.f32 %v2355, 0.2
      %v2670 = vmul.f32 %v2360, 0.2
      %v2671 = vmul.f32 %v2365, 0.2
      %v2672 = vmul.f32 %v2370, 0.2
      %v2673 = vmul.f32 %v2375, 0.2
      %v2674 = vmul.f32 %v2380, 0.2
      %v2675 = vmul.f32 %v2385, 0.2
      %v2676 = vmul.f32 %v2390, 0.2
      %v2677 = vmul.f32 %v2395, 0.2
      %v2678 = vmul.f32 %v2400, 0.2
      %v2679 = vmul.f32 %v2405, 0.2
      %v2680 = vmul.f32 %v2410, 0.2
      %v2681 = vmul.f32 %v2415, 0.2
      %v2682 = vmul.f32 %v2420, 0.2
      %v2683 = vmul.f32 %v2425, 0.2
      %v2684 = vsel %vm2428, %v1790, %v2556
      %v2685 = vsel %vm2429, %v1795, %v2557
      %v2686 = vsel %vm2430, %v1800, %v2558
      %v2687 = vsel %vm2431, %v1805, %v2559
      %v2688 = vsel %vm2432, %v1810, %v2560
      %v2689 = vsel %vm2433, %v1815, %v2561
      %v2690 = vsel %vm2434, %v1820, %v2562
      %v2691 = vsel %vm2435, %v1825, %v2563
      %v2692 = vsel %vm2436, %v1830, %v2564
      %v2693 = vsel %vm2437, %v1835, %v2565
      %v2694 = vsel %vm2438, %v1840, %v2566
      %v2695 = vsel %vm2439, %v1845, %v2567
      %v2696 = vsel %vm2440, %v1850, %v2568
      %v2697 = vsel %vm2441, %v1855, %v2569
      %v2698 = vsel %vm2442, %v1860, %v2570
      %v2699 = vsel %vm2443, %v1865, %v2571
      %v2700 = vsel %vm2444, %v1870, %v2572
      %v2701 = vsel %vm2445, %v1875, %v2573
      %v2702 = vsel %vm2446, %v1880, %v2574
      %v2703 = vsel %vm2447, %v1885, %v2575
      %v2704 = vsel %vm2448, %v1890, %v2576
      %v2705 = vsel %vm2449, %v1895, %v2577
      %v2706 = vsel %vm2450, %v1900, %v2578
      %v2707 = vsel %vm2451, %v1905, %v2579
      %v2708 = vsel %vm2452, %v1910, %v2580
      %v2709 = vsel %vm2453, %v1915, %v2581
      %v2710 = vsel %vm2454, %v1920, %v2582
      %v2711 = vsel %vm2455, %v1925, %v2583
      %v2712 = vsel %vm2456, %v1930, %v2584
      %v2713 = vsel %vm2457, %v1935, %v2585
      %v2714 = vsel %vm2458, %v1940, %v2586
      %v2715 = vsel %vm2459, %v1945, %v2587
      %v2716 = vsel %vm2460, %v1950, %v2588
      %v2717 = vsel %vm2461, %v1955, %v2589
      %v2718 = vsel %vm2462, %v1960, %v2590
      %v2719 = vsel %vm2463, %v1965, %v2591
      %v2720 = vsel %vm2464, %v1970, %v2592
      %v2721 = vsel %vm2465, %v1975, %v2593
      %v2722 = vsel %vm2466, %v1980, %v2594
      %v2723 = vsel %vm2467, %v1985, %v2595
      %v2724 = vsel %vm2468, %v1990, %v2596
      %v2725 = vsel %vm2469, %v1995, %v2597
      %v2726 = vsel %vm2470, %v2000, %v2598
      %v2727 = vsel %vm2471, %v2005, %v2599
      %v2728 = vsel %vm2472, %v2010, %v2600
      %v2729 = vsel %vm2473, %v2015, %v2601
      %v2730 = vsel %vm2474, %v2020, %v2602
      %v2731 = vsel %vm2475, %v2025, %v2603
      %v2732 = vsel %vm2476, %v2030, %v2604
      %v2733 = vsel %vm2477, %v2035, %v2605
      %v2734 = vsel %vm2478, %v2040, %v2606
      %v2735 = vsel %vm2479, %v2045, %v2607
      %v2736 = vsel %vm2480, %v2050, %v2608
      %v2737 = vsel %vm2481, %v2055, %v2609
      %v2738 = vsel %vm2482, %v2060, %v2610
      %v2739 = vsel %vm2483, %v2065, %v2611
      %v2740 = vsel %vm2484, %v2070, %v2612
      %v2741 = vsel %vm2485, %v2075, %v2613
      %v2742 = vsel %vm2486, %v2080, %v2614
      %v2743 = vsel %vm2487, %v2085, %v2615
      %v2744 = vsel %vm2488, %v2090, %v2616
      %v2745 = vsel %vm2489, %v2095, %v2617
      %v2746 = vsel %vm2490, %v2100, %v2618
      %v2747 = vsel %vm2491, %v2105, %v2619
      %v2748 = vsel %vm2492, %v2110, %v2620
      %v2749 = vsel %vm2493, %v2115, %v2621
      %v2750 = vsel %vm2494, %v2120, %v2622
      %v2751 = vsel %vm2495, %v2125, %v2623
      %v2752 = vsel %vm2496, %v2130, %v2624
      %v2753 = vsel %vm2497, %v2135, %v2625
      %v2754 = vsel %vm2498, %v2140, %v2626
      %v2755 = vsel %vm2499, %v2145, %v2627
      %v2756 = vsel %vm2500, %v2150, %v2628
      %v2757 = vsel %vm2501, %v2155, %v2629
      %v2758 = vsel %vm2502, %v2160, %v2630
      %v2759 = vsel %vm2503, %v2165, %v2631
      %v2760 = vsel %vm2504, %v2170, %v2632
      %v2761 = vsel %vm2505, %v2175, %v2633
      %v2762 = vsel %vm2506, %v2180, %v2634
      %v2763 = vsel %vm2507, %v2185, %v2635
      %v2764 = vsel %vm2508, %v2190, %v2636
      %v2765 = vsel %vm2509, %v2195, %v2637
      %v2766 = vsel %vm2510, %v2200, %v2638
      %v2767 = vsel %vm2511, %v2205, %v2639
      %v2768 = vsel %vm2512, %v2210, %v2640
      %v2769 = vsel %vm2513, %v2215, %v2641
      %v2770 = vsel %vm2514, %v2220, %v2642
      %v2771 = vsel %vm2515, %v2225, %v2643
      %v2772 = vsel %vm2516, %v2230, %v2644
      %v2773 = vsel %vm2517, %v2235, %v2645
      %v2774 = vsel %vm2518, %v2240, %v2646
      %v2775 = vsel %vm2519, %v2245, %v2647
      %v2776 = vsel %vm2520, %v2250, %v2648
      %v2777 = vsel %vm2521, %v2255, %v2649
      %v2778 = vsel %vm2522, %v2260, %v2650
      %v2779 = vsel %vm2523, %v2265, %v2651
      %v2780 = vsel %vm2524, %v2270, %v2652
      %v2781 = vsel %vm2525, %v2275, %v2653
      %v2782 = vsel %vm2526, %v2280, %v2654
      %v2783 = vsel %vm2527, %v2285, %v2655
      %v2784 = vsel %vm2528, %v2290, %v2656
      %v2785 = vsel %vm2529, %v2295, %v2657
      %v2786 = vsel %vm2530, %v2300, %v2658
      %v2787 = vsel %vm2531, %v2305, %v2659
      %v2788 = vsel %vm2532, %v2310, %v2660
      %v2789 = vsel %vm2533, %v2315, %v2661
      %v2790 = vsel %vm2534, %v2320, %v2662
      %v2791 = vsel %vm2535, %v2325, %v2663
      %v2792 = vsel %vm2536, %v2330, %v2664
      %v2793 = vsel %vm2537, %v2335, %v2665
      %v2794 = vsel %vm2538, %v2340, %v2666
      %v2795 = vsel %vm2539, %v2345, %v2667
      %v2796 = vsel %vm2540, %v2350, %v2668
      %v2797 = vsel %vm2541, %v2355, %v2669
      %v2798 = vsel %vm2542, %v2360, %v2670
      %v2799 = vsel %vm2543, %v2365, %v2671
      %v2800 = vsel %vm2544, %v2370, %v2672
      %v2801 = vsel %vm2545, %v2375, %v2673
      %v2802 = vsel %vm2546, %v2380, %v2674
      %v2803 = vsel %vm2547, %v2385, %v2675
      %v2804 = vsel %vm2548, %v2390, %v2676
      %v2805 = vsel %vm2549, %v2395, %v2677
      %v2806 = vsel %vm2550, %v2400, %v2678
      %v2807 = vsel %vm2551, %v2405, %v2679
      %v2808 = vsel %vm2552, %v2410, %v2680
      %v2809 = vsel %vm2553, %v2415, %v2681
      %v2810 = vsel %vm2554, %v2420, %v2682
      %v2811 = vsel %vm2555, %v2425, %v2683
      %v2812 = vmul.f32 %v2684, 1.4142135
      %v2813 = vmul.f32 %v2685, 1.4142135
      %v2814 = vmul.f32 %v2686, 1.4142135
      %v2815 = vmul.f32 %v2687, 1.4142135
      %v2816 = vmul.f32 %v2688, 1.4142135
      %v2817 = vmul.f32 %v2689, 1.4142135
      %v2818 = vmul.f32 %v2690, 1.4142135
      %v2819 = vmul.f32 %v2691, 1.4142135
      %v2820 = vmul.f32 %v2692, 1.4142135
      %v2821 = vmul.f32 %v2693, 1.4142135
      %v2822 = vmul.f32 %v2694, 1.4142135
      %v2823 = vmul.f32 %v2695, 1.4142135
      %v2824 = vmul.f32 %v2696, 1.4142135
      %v2825 = vmul.f32 %v2697, 1.4142135
      %v2826 = vmul.f32 %v2698, 1.4142135
      %v2827 = vmul.f32 %v2699, 1.4142135
      %v2828 = vmul.f32 %v2700, 1.4142135
      %v2829 = vmul.f32 %v2701, 1.4142135
      %v2830 = vmul.f32 %v2702, 1.4142135
      %v2831 = vmul.f32 %v2703, 1.4142135
      %v2832 = vmul.f32 %v2704, 1.4142135
      %v2833 = vmul.f32 %v2705, 1.4142135
      %v2834 = vmul.f32 %v2706, 1.4142135
      %v2835 = vmul.f32 %v2707, 1.4142135
      %v2836 = vmul.f32 %v2708, 1.4142135
      %v2837 = vmul.f32 %v2709, 1.4142135
      %v2838 = vmul.f32 %v2710, 1.4142135
      %v2839 = vmul.f32 %v2711, 1.4142135
      %v2840 = vmul.f32 %v2712, 1.4142135
      %v2841 = vmul.f32 %v2713, 1.4142135
      %v2842 = vmul.f32 %v2714, 1.4142135
      %v2843 = vmul.f32 %v2715, 1.4142135
      %v2844 = vmul.f32 %v2716, 1.4142135
      %v2845 = vmul.f32 %v2717, 1.4142135
      %v2846 = vmul.f32 %v2718, 1.4142135
      %v2847 = vmul.f32 %v2719, 1.4142135
      %v2848 = vmul.f32 %v2720, 1.4142135
      %v2849 = vmul.f32 %v2721, 1.4142135
      %v2850 = vmul.f32 %v2722, 1.4142135
      %v2851 = vmul.f32 %v2723, 1.4142135
      %v2852 = vmul.f32 %v2724, 1.4142135
      %v2853 = vmul.f32 %v2725, 1.4142135
      %v2854 = vmul.f32 %v2726, 1.4142135
      %v2855 = vmul.f32 %v2727, 1.4142135
      %v2856 = vmul.f32 %v2728, 1.4142135
      %v2857 = vmul.f32 %v2729, 1.4142135
      %v2858 = vmul.f32 %v2730, 1.4142135
      %v2859 = vmul.f32 %v2731, 1.4142135
      %v2860 = vmul.f32 %v2732, 1.4142135
      %v2861 = vmul.f32 %v2733, 1.4142135
      %v2862 = vmul.f32 %v2734, 1.4142135
      %v2863 = vmul.f32 %v2735, 1.4142135
      %v2864 = vmul.f32 %v2736, 1.4142135
      %v2865 = vmul.f32 %v2737, 1.4142135
      %v2866 = vmul.f32 %v2738, 1.4142135
      %v2867 = vmul.f32 %v2739, 1.4142135
      %v2868 = vmul.f32 %v2740, 1.4142135
      %v2869 = vmul.f32 %v2741, 1.4142135
      %v2870 = vmul.f32 %v2742, 1.4142135
      %v2871 = vmul.f32 %v2743, 1.4142135
      %v2872 = vmul.f32 %v2744, 1.4142135
      %v2873 = vmul.f32 %v2745, 1.4142135
      %v2874 = vmul.f32 %v2746, 1.4142135
      %v2875 = vmul.f32 %v2747, 1.4142135
      %v2876 = vmul.f32 %v2748, 1.4142135
      %v2877 = vmul.f32 %v2749, 1.4142135
      %v2878 = vmul.f32 %v2750, 1.4142135
      %v2879 = vmul.f32 %v2751, 1.4142135
      %v2880 = vmul.f32 %v2752, 1.4142135
      %v2881 = vmul.f32 %v2753, 1.4142135
      %v2882 = vmul.f32 %v2754, 1.4142135
      %v2883 = vmul.f32 %v2755, 1.4142135
      %v2884 = vmul.f32 %v2756, 1.4142135
      %v2885 = vmul.f32 %v2757, 1.4142135
      %v2886 = vmul.f32 %v2758, 1.4142135
      %v2887 = vmul.f32 %v2759, 1.4142135
      %v2888 = vmul.f32 %v2760, 1.4142135
      %v2889 = vmul.f32 %v2761, 1.4142135
      %v2890 = vmul.f32 %v2762, 1.4142135
      %v2891 = vmul.f32 %v2763, 1.4142135
      %v2892 = vmul.f32 %v2764, 1.4142135
      %v2893 = vmul.f32 %v2765, 1.4142135
      %v2894 = vmul.f32 %v2766, 1.4142135
      %v2895 = vmul.f32 %v2767, 1.4142135
      %v2896 = vmul.f32 %v2768, 1.4142135
      %v2897 = vmul.f32 %v2769, 1.4142135
      %v2898 = vmul.f32 %v2770, 1.4142135
      %v2899 = vmul.f32 %v2771, 1.4142135
      %v2900 = vmul.f32 %v2772, 1.4142135
      %v2901 = vmul.f32 %v2773, 1.4142135
      %v2902 = vmul.f32 %v2774, 1.4142135
      %v2903 = vmul.f32 %v2775, 1.4142135
      %v2904 = vmul.f32 %v2776, 1.4142135
      %v2905 = vmul.f32 %v2777, 1.4142135
      %v2906 = vmul.f32 %v2778, 1.4142135
      %v2907 = vmul.f32 %v2779, 1.4142135
      %v2908 = vmul.f32 %v2780, 1.4142135
      %v2909 = vmul.f32 %v2781, 1.4142135
      %v2910 = vmul.f32 %v2782, 1.4142135
      %v2911 = vmul.f32 %v2783, 1.4142135
      %v2912 = vmul.f32 %v2784, 1.4142135
      %v2913 = vmul.f32 %v2785, 1.4142135
      %v2914 = vmul.f32 %v2786, 1.4142135
      %v2915 = vmul.f32 %v2787, 1.4142135
      %v2916 = vmul.f32 %v2788, 1.4142135
      %v2917 = vmul.f32 %v2789, 1.4142135
      %v2918 = vmul.f32 %v2790, 1.4142135
      %v2919 = vmul.f32 %v2791, 1.4142135
      %v2920 = vmul.f32 %v2792, 1.4142135
      %v2921 = vmul.f32 %v2793, 1.4142135
      %v2922 = vmul.f32 %v2794, 1.4142135
      %v2923 = vmul.f32 %v2795, 1.4142135
      %v2924 = vmul.f32 %v2796, 1.4142135
      %v2925 = vmul.f32 %v2797, 1.4142135
      %v2926 = vmul.f32 %v2798, 1.4142135
      %v2927 = vmul.f32 %v2799, 1.4142135
      %v2928 = vmul.f32 %v2800, 1.4142135
      %v2929 = vmul.f32 %v2801, 1.4142135
      %v2930 = vmul.f32 %v2802, 1.4142135
      %v2931 = vmul.f32 %v2803, 1.4142135
      %v2932 = vmul.f32 %v2804, 1.4142135
      %v2933 = vmul.f32 %v2805, 1.4142135
      %v2934 = vmul.f32 %v2806, 1.4142135
      %v2935 = vmul.f32 %v2807, 1.4142135
      %v2936 = vmul.f32 %v2808, 1.4142135
      %v2937 = vmul.f32 %v2809, 1.4142135
      %v2938 = vmul.f32 %v2810, 1.4142135
      %v2939 = vmul.f32 %v2811, 1.4142135
      %s2940 = scalar_lea.vmem %s1, 32
      %v2941 = vld [vmem:[%s2940] sm:$0xff]
      %v2942 = vld [vmem:[%s2940 + $0x8] sm:$0xff]
      %v2943 = vld [vmem:[%s2940 + $0x10] sm:$0xff]
      %v2944 = vld [vmem:[%s2940 + $0x18] sm:$0xff]
      %s2945 = scalar_lea.vmem %s2, 1
      %v2946 = vld [vmem:[%s2945] sm:$0x1]
      %v2948 = vlaneseq
      %v2949 = vshrl.u32 %v2948, 7
      %v2950 = vsub.s32 0, %v2949
      %v2951 = vrot.slane %v2946, %v2950
      %v2954 = vsel %vm430, %v2812, 0
      %v2957 = vsel %vm430, %v2813, 0
      %v2960 = vsel %vm430, %v2814, 0
      %v2963 = vsel %vm430, %v2815, 0
      %v2966 = vsel %vm430, %v2816, 0
      %v2969 = vsel %vm430, %v2817, 0
      %v2972 = vsel %vm430, %v2818, 0
      %v2975 = vsel %vm430, %v2819, 0
      %v2978 = vsel %vm430, %v2820, 0
      %v2981 = vsel %vm430, %v2821, 0
      %v2984 = vsel %vm430, %v2822, 0
      %v2987 = vsel %vm430, %v2823, 0
      %v2990 = vsel %vm430, %v2824, 0
      %v2993 = vsel %vm430, %v2825, 0
      %v2996 = vsel %vm430, %v2826, 0
      %v2999 = vsel %vm430, %v2827, 0
      %v3002 = vsel %vm430, %v2828, 0
      %v3005 = vsel %vm430, %v2829, 0
      %v3008 = vsel %vm430, %v2830, 0
      %v3011 = vsel %vm430, %v2831, 0
      %v3014 = vsel %vm430, %v2832, 0
      %v3017 = vsel %vm430, %v2833, 0
      %v3020 = vsel %vm430, %v2834, 0
      %v3023 = vsel %vm430, %v2835, 0
      %v3026 = vsel %vm430, %v2836, 0
      %v3029 = vsel %vm430, %v2837, 0
      %v3032 = vsel %vm430, %v2838, 0
      %v3035 = vsel %vm430, %v2839, 0
      %v3038 = vsel %vm430, %v2840, 0
      %v3041 = vsel %vm430, %v2841, 0
      %v3044 = vsel %vm430, %v2842, 0
      %v3047 = vsel %vm430, %v2843, 0
      %v3050 = vsel %vm430, %v2844, 0
      %v3053 = vsel %vm430, %v2845, 0
      %v3056 = vsel %vm430, %v2846, 0
      %v3059 = vsel %vm430, %v2847, 0
      %v3062 = vsel %vm430, %v2848, 0
      %v3065 = vsel %vm430, %v2849, 0
      %v3068 = vsel %vm430, %v2850, 0
      %v3071 = vsel %vm430, %v2851, 0
      %v3074 = vsel %vm430, %v2852, 0
      %v3077 = vsel %vm430, %v2853, 0
      %v3080 = vsel %vm430, %v2854, 0
      %v3083 = vsel %vm430, %v2855, 0
      %v3086 = vsel %vm430, %v2856, 0
      %v3089 = vsel %vm430, %v2857, 0
      %v3092 = vsel %vm430, %v2858, 0
      %v3095 = vsel %vm430, %v2859, 0
      %v3098 = vsel %vm430, %v2860, 0
      %v3101 = vsel %vm430, %v2861, 0
      %v3104 = vsel %vm430, %v2862, 0
      %v3107 = vsel %vm430, %v2863, 0
      %v3110 = vsel %vm430, %v2864, 0
      %v3113 = vsel %vm430, %v2865, 0
      %v3116 = vsel %vm430, %v2866, 0
      %v3119 = vsel %vm430, %v2867, 0
      %v3122 = vsel %vm430, %v2868, 0
      %v3125 = vsel %vm430, %v2869, 0
      %v3128 = vsel %vm430, %v2870, 0
      %v3131 = vsel %vm430, %v2871, 0
      %v3134 = vsel %vm430, %v2872, 0
      %v3137 = vsel %vm430, %v2873, 0
      %v3140 = vsel %vm430, %v2874, 0
      %v3143 = vsel %vm430, %v2875, 0
      %v3146 = vsel %vm430, %v2876, 0
      %v3149 = vsel %vm430, %v2877, 0
      %v3152 = vsel %vm430, %v2878, 0
      %v3155 = vsel %vm430, %v2879, 0
      %v3158 = vsel %vm430, %v2880, 0
      %v3161 = vsel %vm430, %v2881, 0
      %v3164 = vsel %vm430, %v2882, 0
      %v3167 = vsel %vm430, %v2883, 0
      %v3170 = vsel %vm430, %v2884, 0
      %v3173 = vsel %vm430, %v2885, 0
      %v3176 = vsel %vm430, %v2886, 0
      %v3179 = vsel %vm430, %v2887, 0
      %v3182 = vsel %vm430, %v2888, 0
      %v3185 = vsel %vm430, %v2889, 0
      %v3188 = vsel %vm430, %v2890, 0
      %v3191 = vsel %vm430, %v2891, 0
      %v3194 = vsel %vm430, %v2892, 0
      %v3197 = vsel %vm430, %v2893, 0
      %v3200 = vsel %vm430, %v2894, 0
      %v3203 = vsel %vm430, %v2895, 0
      %v3206 = vsel %vm430, %v2896, 0
      %v3209 = vsel %vm430, %v2897, 0
      %v3212 = vsel %vm430, %v2898, 0
      %v3215 = vsel %vm430, %v2899, 0
      %v3218 = vsel %vm430, %v2900, 0
      %v3221 = vsel %vm430, %v2901, 0
      %v3224 = vsel %vm430, %v2902, 0
      %v3227 = vsel %vm430, %v2903, 0
      %v3230 = vsel %vm430, %v2904, 0
      %v3233 = vsel %vm430, %v2905, 0
      %v3236 = vsel %vm430, %v2906, 0
      %v3239 = vsel %vm430, %v2907, 0
      %v3242 = vsel %vm430, %v2908, 0
      %v3245 = vsel %vm430, %v2909, 0
      %v3248 = vsel %vm430, %v2910, 0
      %v3251 = vsel %vm430, %v2911, 0
      %v3254 = vsel %vm430, %v2912, 0
      %v3257 = vsel %vm430, %v2913, 0
      %v3260 = vsel %vm430, %v2914, 0
      %v3263 = vsel %vm430, %v2915, 0
      %v3266 = vsel %vm430, %v2916, 0
      %v3269 = vsel %vm430, %v2917, 0
      %v3272 = vsel %vm430, %v2918, 0
      %v3275 = vsel %vm430, %v2919, 0
      %v3278 = vsel %vm430, %v2920, 0
      %v3281 = vsel %vm430, %v2921, 0
      %v3284 = vsel %vm430, %v2922, 0
      %v3287 = vsel %vm430, %v2923, 0
      %v3290 = vsel %vm430, %v2924, 0
      %v3293 = vsel %vm430, %v2925, 0
      %v3296 = vsel %vm430, %v2926, 0
      %v3299 = vsel %vm430, %v2927, 0
      %v3302 = vsel %vm430, %v2928, 0
      %v3305 = vsel %vm430, %v2929, 0
      %v3308 = vsel %vm430, %v2930, 0
      %v3311 = vsel %vm430, %v2931, 0
      %v3314 = vsel %vm430, %v2932, 0
      %v3317 = vsel %vm430, %v2933, 0
      %v3320 = vsel %vm430, %v2934, 0
      %v3323 = vsel %vm430, %v2935, 0
      %v3326 = vsel %vm430, %v2936, 0
      %v3329 = vsel %vm430, %v2937, 0
      %v3332 = vsel %vm430, %v2938, 0
      %v3335 = vsel %vm430, %v2939, 0
      %3337 = vmatprep.subr.mxu0 0.0
      %3338 = vmatpush1.msra.mxu0 %v2941
      %3339 = vmatprep.subr.mxu0 0.0
      %3340 = vmatpush1.msra.mxu0 %v2942
      %3341 = vmatprep.subr.mxu0 0.0
      %3342 = vmatpush1.msra.mxu0 %v2943
      %3343 = vmatprep.subr.mxu0 0.0
      %3344 = vmatpush1.msra.mxu0 %v2944
      %3345 = vmatprep.subr.mxu0 0.0
      %3346 = vmatpush1.msra.mxu0 0.0
      %3347 = vmatprep.subr.mxu0 0.0
      %3348 = vmatpush1.msra.mxu0 0.0
      %3349 = vmatprep.subr.mxu0 0.0
      %3350 = vmatpush1.msra.mxu0 0.0
      %3351 = vmatprep.subr.mxu0 0.0
      %3352 = vmatpush1.msra.mxu0 0.0
      %3353 = vmatprep.subr.mxu0 0.0
      %3354 = vmatpush1.msra.mxu0 0.0
      %3355 = vmatprep.subr.mxu0 0.0
      %3356 = vmatpush1.msra.mxu0 0.0
      %3357 = vmatprep.subr.mxu0 0.0
      %3358 = vmatpush1.msra.mxu0 0.0
      %3359 = vmatprep.subr.mxu0 0.0
      %3360 = vmatpush1.msra.mxu0 0.0
      %3361 = vmatprep.subr.mxu0 0.0
      %3362 = vmatpush1.msra.mxu0 0.0
      %3363 = vmatprep.subr.mxu0 0.0
      %3364 = vmatpush1.msra.mxu0 0.0
      %3365 = vmatprep.subr.mxu0 0.0
      %3366 = vmatpush1.msra.mxu0 0.0
      %3367 = vmatprep.subr.mxu0 0.0
      %3368 = vmatpush1.msra.mxu0 0.0
      %3369 = vmatprep.subr.mxu0 0.0
      %3370 = vmatpush1.msra.mxu0 0.0
      %3371 = vmatprep.subr.mxu0 0.0
      %3372 = vmatpush1.msra.mxu0 0.0
      %3373 = vmatprep.subr.mxu0 0.0
      %3374 = vmatpush1.msra.mxu0 0.0
      %3375 = vmatprep.subr.mxu0 0.0
      %3376 = vmatpush1.msra.mxu0 0.0
      %3377 = vmatprep.subr.mxu0 0.0
      %3378 = vmatpush1.msra.mxu0 0.0
      %3379 = vmatprep.subr.mxu0 0.0
      %3380 = vmatpush1.msra.mxu0 0.0
      %3381 = vmatprep.subr.mxu0 0.0
      %3382 = vmatpush1.msra.mxu0 0.0
      %3383 = vmatprep.subr.mxu0 0.0
      %3384 = vmatpush1.msra.mxu0 0.0
      %3385 = vmatprep.subr.mxu0 0.0
      %3386 = vmatpush1.msra.mxu0 0.0
      %3387 = vmatprep.subr.mxu0 0.0
      %3388 = vmatpush1.msra.mxu0 0.0
      %3389 = vmatprep.subr.mxu0 0.0
      %3390 = vmatpush1.msra.mxu0 0.0
      %3391 = vmatprep.subr.mxu0 0.0
      %3392 = vmatpush1.msra.mxu0 0.0
      %3393 = vmatprep.subr.mxu0 0.0
      %3394 = vmatpush1.msra.mxu0 0.0
      %3395 = vmatprep.subr.mxu0 0.0
      %3396 = vmatpush1.msra.mxu0 0.0
      %3397 = vmatprep.subr.mxu0 0.0
      %3398 = vmatpush1.msra.mxu0 0.0
      %3399 = vmatprep.subr.mxu0 0.0
      %3400 = vmatpush1.msra.mxu0 0.0
      %3401 = vmatprep.mubr.f32.mxu0 0.0
      %3402 = vmatmul.mubr.f32.gmra.mrb[0].mxu0 %v2954
      %v3403 = vpop.f32.mrb[0].mxu0
      %v3404 = vadd.f32 %v2951, %v3403
      %v3405 = vpop.f32.mrb[0].mxu0
      %3406 = vmatprep.mubr.f32.mxu0 0.0
      %3407 = vmatmul.mubr.f32.gmra.mrb[0].mxu0 %v2957
      %v3408 = vpop.f32.mrb[0].mxu0
      %v3409 = vadd.f32 %v2951, %v3408
      %v3410 = vpop.f32.mrb[0].mxu0
      %3411 = vmatprep.mubr.f32.mxu0 0.0
      %3412 = vmatmul.mubr.f32.gmra.mrb[0].mxu0 %v2960
      %v3413 = vpop.f32.mrb[0].mxu0
      %v3414 = vadd.f32 %v2951, %v3413
      %v3415 = vpop.f32.mrb[0].mxu0
      %3416 = vmatprep.mubr.f32.mxu0 0.0
      %3417 = vmatmul.mubr.f32.gmra.mrb[0].mxu0 %v2963
      %v3418 = vpop.f32.mrb[0].mxu0
      %v3419 = vadd.f32 %v2951, %v3418
      %v3420 = vpop.f32.mrb[0].mxu0
      %3421 = vmatprep.mubr.f32.mxu0 0.0
      %3422 = vmatmul.mubr.f32.gmra.mrb[0].mxu0 %v2966
      %v3423 = vpop.f32.mrb[0].mxu0
      %v3424 = vadd.f32 %v2951, %v3423
      %v3425 = vpop.f32.mrb[0].mxu0
      %3426 = vmatprep.mubr.f32.mxu0 0.0
      %3427 = vmatmul.mubr.f32.gmra.mrb[0].mxu0 %v2969
      %v3428 = vpop.f32.mrb[0].mxu0
      %v3429 = vadd.f32 %v2951, %v3428
      %v3430 = vpop.f32.mrb[0].mxu0
      %3431 = vmatprep.mubr.f32.mxu0 0.0
      %3432 = vmatmul.mubr.f32.gmra.mrb[0].mxu0 %v2972
      %v3433 = vpop.f32.mrb[0].mxu0
      %v3434 = vadd.f32 %v2951, %v3433
      %v3435 = vpop.f32.mrb[0].mxu0
      %3436 = vmatprep.mubr.f32.mxu0 0.0
      %3437 = vmatmul.mubr.f32.gmra.mrb[0].mxu0 %v2975
      %v3438 = vpop.f32.mrb[0].mxu0
      %v3439 = vadd.f32 %v2951, %v3438
      %v3440 = vpop.f32.mrb[0].mxu0
      %3441 = vmatprep.mubr.f32.mxu0 0.0
      %3442 = vmatmul.mubr.f32.gmra.mrb[0].mxu0 %v2978
      %v3443 = vpop.f32.mrb[0].mxu0
      %v3444 = vadd.f32 %v2951, %v3443
      %v3445 = vpop.f32.mrb[0].mxu0
      %3446 = vmatprep.mubr.f32.mxu0 0.0
      %3447 = vmatmul.mubr.f32.gmra.mrb[0].mxu0 %v2981
      %v3448 = vpop.f32.mrb[0].mxu0
      %v3449 = vadd.f32 %v2951, %v3448
      %v3450 = vpop.f32.mrb[0].mxu0
      %3451 = vmatprep.mubr.f32.mxu0 0.0
      %3452 = vmatmul.mubr.f32.gmra.mrb[0].mxu0 %v2984
      %v3453 = vpop.f32.mrb[0].mxu0
      %v3454 = vadd.f32 %v2951, %v3453
      %v3455 = vpop.f32.mrb[0].mxu0
      %3456 = vmatprep.mubr.f32.mxu0 0.0
      %3457 = vmatmul.mubr.f32.gmra.mrb[0].mxu0 %v2987
      %v3458 = vpop.f32.mrb[0].mxu0
      %v3459 = vadd.f32 %v2951, %v3458
      %v3460 = vpop.f32.mrb[0].mxu0
      %3461 = vmatprep.mubr.f32.mxu0 0.0
      %3462 = vmatmul.mubr.f32.gmra.mrb[0].mxu0 %v2990
      %v3463 = vpop.f32.mrb[0].mxu0
      %v3464 = vadd.f32 %v2951, %v3463
      %v3465 = vpop.f32.mrb[0].mxu0
      %3466 = vmatprep.mubr.f32.mxu0 0.0
      %3467 = vmatmul.mubr.f32.gmra.mrb[0].mxu0 %v2993
      %v3468 = vpop.f32.mrb[0].mxu0
      %v3469 = vadd.f32 %v2951, %v3468
      %v3470 = vpop.f32.mrb[0].mxu0
      %3471 = vmatprep.mubr.f32.mxu0 0.0
      %3472 = vmatmul.mubr.f32.gmra.mrb[0].mxu0 %v2996
      %v3473 = vpop.f32.mrb[0].mxu0
      %v3474 = vadd.f32 %v2951, %v3473
      %v3475 = vpop.f32.mrb[0].mxu0
      %3476 = vmatprep.mubr.f32.mxu0 0.0
      %3477 = vmatmul.mubr.f32.gmra.mrb[0].mxu0 %v2999
      %v3478 = vpop.f32.mrb[0].mxu0
      %v3479 = vadd.f32 %v2951, %v3478
      %v3480 = vpop.f32.mrb[0].mxu0
      %3481 = vmatprep.mubr.f32.mxu0 0.0
      %3482 = vmatmul.mubr.f32.gmra.mrb[0].mxu0 %v3002
      %v3483 = vpop.f32.mrb[0].mxu0
      %v3484 = vadd.f32 %v2951, %v3483
      %v3485 = vpop.f32.mrb[0].mxu0
      %3486 = vmatprep.mubr.f32.mxu0 0.0
      %3487 = vmatmul.mubr.f32.gmra.mrb[0].mxu0 %v3005
      %v3488 = vpop.f32.mrb[0].mxu0
      %v3489 = vadd.f32 %v2951, %v3488
      %v3490 = vpop.f32.mrb[0].mxu0
      %3491 = vmatprep.mubr.f32.mxu0 0.0
      %3492 = vmatmul.mubr.f32.gmra.mrb[0].mxu0 %v3008
      %v3493 = vpop.f32.mrb[0].mxu0
      %v3494 = vadd.f32 %v2951, %v3493
      %v3495 = vpop.f32.mrb[0].mxu0
      %3496 = vmatprep.mubr.f32.mxu0 0.0
      %3497 = vmatmul.mubr.f32.gmra.mrb[0].mxu0 %v3011
      %v3498 = vpop.f32.mrb[0].mxu0
      %v3499 = vadd.f32 %v2951, %v3498
      %v3500 = vpop.f32.mrb[0].mxu0
      %3501 = vmatprep.mubr.f32.mxu0 0.0
      %3502 = vmatmul.mubr.f32.gmra.mrb[0].mxu0 %v3014
      %v3503 = vpop.f32.mrb[0].mxu0
      %v3504 = vadd.f32 %v2951, %v3503
      %v3505 = vpop.f32.mrb[0].mxu0
      %3506 = vmatprep.mubr.f32.mxu0 0.0
      %3507 = vmatmul.mubr.f32.gmra.mrb[0].mxu0 %v3017
      %v3508 = vpop.f32.mrb[0].mxu0
      %v3509 = vadd.f32 %v2951, %v3508
      %v3510 = vpop.f32.mrb[0].mxu0
      %3511 = vmatprep.mubr.f32.mxu0 0.0
      %3512 = vmatmul.mubr.f32.gmra.mrb[0].mxu0 %v3020
      %v3513 = vpop.f32.mrb[0].mxu0
      %v3514 = vadd.f32 %v2951, %v3513
      %v3515 = vpop.f32.mrb[0].mxu0
      %3516 = vmatprep.mubr.f32.mxu0 0.0
      %3517 = vmatmul.mubr.f32.gmra.mrb[0].mxu0 %v3023
      %v3518 = vpop.f32.mrb[0].mxu0
      %v3519 = vadd.f32 %v2951, %v3518
      %v3520 = vpop.f32.mrb[0].mxu0
      %3521 = vmatprep.mubr.f32.mxu0 0.0
      %3522 = vmatmul.mubr.f32.gmra.mrb[0].mxu0 %v3026
      %v3523 = vpop.f32.mrb[0].mxu0
      %v3524 = vadd.f32 %v2951, %v3523
      %v3525 = vpop.f32.mrb[0].mxu0
      %3526 = vmatprep.mubr.f32.mxu0 0.0
      %3527 = vmatmul.mubr.f32.gmra.mrb[0].mxu0 %v3029
      %v3528 = vpop.f32.mrb[0].mxu0
      %v3529 = vadd.f32 %v2951, %v3528
      %v3530 = vpop.f32.mrb[0].mxu0
      %3531 = vmatprep.mubr.f32.mxu0 0.0
      %3532 = vmatmul.mubr.f32.gmra.mrb[0].mxu0 %v3032
      %v3533 = vpop.f32.mrb[0].mxu0
      %v3534 = vadd.f32 %v2951, %v3533
      %v3535 = vpop.f32.mrb[0].mxu0
      %3536 = vmatprep.mubr.f32.mxu0 0.0
      %3537 = vmatmul.mubr.f32.gmra.mrb[0].mxu0 %v3035
      %v3538 = vpop.f32.mrb[0].mxu0
      %v3539 = vadd.f32 %v2951, %v3538
      %v3540 = vpop.f32.mrb[0].mxu0
      %3541 = vmatprep.mubr.f32.mxu0 0.0
      %3542 = vmatmul.mubr.f32.gmra.mrb[0].mxu0 %v3038
      %v3543 = vpop.f32.mrb[0].mxu0
      %v3544 = vadd.f32 %v2951, %v3543
      %v3545 = vpop.f32.mrb[0].mxu0
      %3546 = vmatprep.mubr.f32.mxu0 0.0
      %3547 = vmatmul.mubr.f32.gmra.mrb[0].mxu0 %v3041
      %v3548 = vpop.f32.mrb[0].mxu0
      %v3549 = vadd.f32 %v2951, %v3548
      %v3550 = vpop.f32.mrb[0].mxu0
      %3551 = vmatprep.mubr.f32.mxu0 0.0
      %3552 = vmatmul.mubr.f32.gmra.mrb[0].mxu0 %v3044
      %v3553 = vpop.f32.mrb[0].mxu0
      %v3554 = vadd.f32 %v2951, %v3553
      %v3555 = vpop.f32.mrb[0].mxu0
      %3556 = vmatprep.mubr.f32.mxu0 0.0
      %3557 = vmatmul.mubr.f32.gmra.mrb[0].mxu0 %v3047
      %v3558 = vpop.f32.mrb[0].mxu0
      %v3559 = vadd.f32 %v2951, %v3558
      %v3560 = vpop.f32.mrb[0].mxu0
      %3561 = vmatprep.mubr.f32.mxu0 0.0
      %3562 = vmatmul.mubr.f32.gmra.mrb[0].mxu0 %v3050
      %v3563 = vpop.f32.mrb[0].mxu0
      %v3564 = vadd.f32 %v2951, %v3563
      %v3565 = vpop.f32.mrb[0].mxu0
      %3566 = vmatprep.mubr.f32.mxu0 0.0
      %3567 = vmatmul.mubr.f32.gmra.mrb[0].mxu0 %v3053
      %v3568 = vpop.f32.mrb[0].mxu0
      %v3569 = vadd.f32 %v2951, %v3568
      %v3570 = vpop.f32.mrb[0].mxu0
      %3571 = vmatprep.mubr.f32.mxu0 0.0
      %3572 = vmatmul.mubr.f32.gmra.mrb[0].mxu0 %v3056
      %v3573 = vpop.f32.mrb[0].mxu0
      %v3574 = vadd.f32 %v2951, %v3573
      %v3575 = vpop.f32.mrb[0].mxu0
      %3576 = vmatprep.mubr.f32.mxu0 0.0
      %3577 = vmatmul.mubr.f32.gmra.mrb[0].mxu0 %v3059
      %v3578 = vpop.f32.mrb[0].mxu0
      %v3579 = vadd.f32 %v2951, %v3578
      %v3580 = vpop.f32.mrb[0].mxu0
      %3581 = vmatprep.mubr.f32.mxu0 0.0
      %3582 = vmatmul.mubr.f32.gmra.mrb[0].mxu0 %v3062
      %v3583 = vpop.f32.mrb[0].mxu0
      %v3584 = vadd.f32 %v2951, %v3583
      %v3585 = vpop.f32.mrb[0].mxu0
      %3586 = vmatprep.mubr.f32.mxu0 0.0
      %3587 = vmatmul.mubr.f32.gmra.mrb[0].mxu0 %v3065
      %v3588 = vpop.f32.mrb[0].mxu0
      %v3589 = vadd.f32 %v2951, %v3588
      %v3590 = vpop.f32.mrb[0].mxu0
      %3591 = vmatprep.mubr.f32.mxu0 0.0
      %3592 = vmatmul.mubr.f32.gmra.mrb[0].mxu0 %v3068
      %v3593 = vpop.f32.mrb[0].mxu0
      %v3594 = vadd.f32 %v2951, %v3593
      %v3595 = vpop.f32.mrb[0].mxu0
      %3596 = vmatprep.mubr.f32.mxu0 0.0
      %3597 = vmatmul.mubr.f32.gmra.mrb[0].mxu0 %v3071
      %v3598 = vpop.f32.mrb[0].mxu0
      %v3599 = vadd.f32 %v2951, %v3598
      %v3600 = vpop.f32.mrb[0].mxu0
      %3601 = vmatprep.mubr.f32.mxu0 0.0
      %3602 = vmatmul.mubr.f32.gmra.mrb[0].mxu0 %v3074
      %v3603 = vpop.f32.mrb[0].mxu0
      %v3604 = vadd.f32 %v2951, %v3603
      %v3605 = vpop.f32.mrb[0].mxu0
      %3606 = vmatprep.mubr.f32.mxu0 0.0
      %3607 = vmatmul.mubr.f32.gmra.mrb[0].mxu0 %v3077
      %v3608 = vpop.f32.mrb[0].mxu0
      %v3609 = vadd.f32 %v2951, %v3608
      %v3610 = vpop.f32.mrb[0].mxu0
      %3611 = vmatprep.mubr.f32.mxu0 0.0
      %3612 = vmatmul.mubr.f32.gmra.mrb[0].mxu0 %v3080
      %v3613 = vpop.f32.mrb[0].mxu0
      %v3614 = vadd.f32 %v2951, %v3613
      %v3615 = vpop.f32.mrb[0].mxu0
      %3616 = vmatprep.mubr.f32.mxu0 0.0
      %3617 = vmatmul.mubr.f32.gmra.mrb[0].mxu0 %v3083
      %v3618 = vpop.f32.mrb[0].mxu0
      %v3619 = vadd.f32 %v2951, %v3618
      %v3620 = vpop.f32.mrb[0].mxu0
      %3621 = vmatprep.mubr.f32.mxu0 0.0
      %3622 = vmatmul.mubr.f32.gmra.mrb[0].mxu0 %v3086
      %v3623 = vpop.f32.mrb[0].mxu0
      %v3624 = vadd.f32 %v2951, %v3623
      %v3625 = vpop.f32.mrb[0].mxu0
      %3626 = vmatprep.mubr.f32.mxu0 0.0
      %3627 = vmatmul.mubr.f32.gmra.mrb[0].mxu0 %v3089
      %v3628 = vpop.f32.mrb[0].mxu0
      %v3629 = vadd.f32 %v2951, %v3628
      %v3630 = vpop.f32.mrb[0].mxu0
      %3631 = vmatprep.mubr.f32.mxu0 0.0
      %3632 = vmatmul.mubr.f32.gmra.mrb[0].mxu0 %v3092
      %v3633 = vpop.f32.mrb[0].mxu0
      %v3634 = vadd.f32 %v2951, %v3633
      %v3635 = vpop.f32.mrb[0].mxu0
      %3636 = vmatprep.mubr.f32.mxu0 0.0
      %3637 = vmatmul.mubr.f32.gmra.mrb[0].mxu0 %v3095
      %v3638 = vpop.f32.mrb[0].mxu0
      %v3639 = vadd.f32 %v2951, %v3638
      %v3640 = vpop.f32.mrb[0].mxu0
      %3641 = vmatprep.mubr.f32.mxu0 0.0
      %3642 = vmatmul.mubr.f32.gmra.mrb[0].mxu0 %v3098
      %v3643 = vpop.f32.mrb[0].mxu0
      %v3644 = vadd.f32 %v2951, %v3643
      %v3645 = vpop.f32.mrb[0].mxu0
      %3646 = vmatprep.mubr.f32.mxu0 0.0
      %3647 = vmatmul.mubr.f32.gmra.mrb[0].mxu0 %v3101
      %v3648 = vpop.f32.mrb[0].mxu0
      %v3649 = vadd.f32 %v2951, %v3648
      %v3650 = vpop.f32.mrb[0].mxu0
      %3651 = vmatprep.mubr.f32.mxu0 0.0
      %3652 = vmatmul.mubr.f32.gmra.mrb[0].mxu0 %v3104
      %v3653 = vpop.f32.mrb[0].mxu0
      %v3654 = vadd.f32 %v2951, %v3653
      %v3655 = vpop.f32.mrb[0].mxu0
      %3656 = vmatprep.mubr.f32.mxu0 0.0
      %3657 = vmatmul.mubr.f32.gmra.mrb[0].mxu0 %v3107
      %v3658 = vpop.f32.mrb[0].mxu0
      %v3659 = vadd.f32 %v2951, %v3658
      %v3660 = vpop.f32.mrb[0].mxu0
      %3661 = vmatprep.mubr.f32.mxu0 0.0
      %3662 = vmatmul.mubr.f32.gmra.mrb[0].mxu0 %v3110
      %v3663 = vpop.f32.mrb[0].mxu0
      %v3664 = vadd.f32 %v2951, %v3663
      %v3665 = vpop.f32.mrb[0].mxu0
      %3666 = vmatprep.mubr.f32.mxu0 0.0
      %3667 = vmatmul.mubr.f32.gmra.mrb[0].mxu0 %v3113
      %v3668 = vpop.f32.mrb[0].mxu0
      %v3669 = vadd.f32 %v2951, %v3668
      %v3670 = vpop.f32.mrb[0].mxu0
      %3671 = vmatprep.mubr.f32.mxu0 0.0
      %3672 = vmatmul.mubr.f32.gmra.mrb[0].mxu0 %v3116
      %v3673 = vpop.f32.mrb[0].mxu0
      %v3674 = vadd.f32 %v2951, %v3673
      %v3675 = vpop.f32.mrb[0].mxu0
      %3676 = vmatprep.mubr.f32.mxu0 0.0
      %3677 = vmatmul.mubr.f32.gmra.mrb[0].mxu0 %v3119
      %v3678 = vpop.f32.mrb[0].mxu0
      %v3679 = vadd.f32 %v2951, %v3678
      %v3680 = vpop.f32.mrb[0].mxu0
      %3681 = vmatprep.mubr.f32.mxu0 0.0
      %3682 = vmatmul.mubr.f32.gmra.mrb[0].mxu0 %v3122
      %v3683 = vpop.f32.mrb[0].mxu0
      %v3684 = vadd.f32 %v2951, %v3683
      %v3685 = vpop.f32.mrb[0].mxu0
      %3686 = vmatprep.mubr.f32.mxu0 0.0
      %3687 = vmatmul.mubr.f32.gmra.mrb[0].mxu0 %v3125
      %v3688 = vpop.f32.mrb[0].mxu0
      %v3689 = vadd.f32 %v2951, %v3688
      %v3690 = vpop.f32.mrb[0].mxu0
      %3691 = vmatprep.mubr.f32.mxu0 0.0
      %3692 = vmatmul.mubr.f32.gmra.mrb[0].mxu0 %v3128
      %v3693 = vpop.f32.mrb[0].mxu0
      %v3694 = vadd.f32 %v2951, %v3693
      %v3695 = vpop.f32.mrb[0].mxu0
      %3696 = vmatprep.mubr.f32.mxu0 0.0
      %3697 = vmatmul.mubr.f32.gmra.mrb[0].mxu0 %v3131
      %v3698 = vpop.f32.mrb[0].mxu0
      %v3699 = vadd.f32 %v2951, %v3698
      %v3700 = vpop.f32.mrb[0].mxu0
      %3701 = vmatprep.mubr.f32.mxu0 0.0
      %3702 = vmatmul.mubr.f32.gmra.mrb[0].mxu0 %v3134
      %v3703 = vpop.f32.mrb[0].mxu0
      %v3704 = vadd.f32 %v2951, %v3703
      %v3705 = vpop.f32.mrb[0].mxu0
      %3706 = vmatprep.mubr.f32.mxu0 0.0
      %3707 = vmatmul.mubr.f32.gmra.mrb[0].mxu0 %v3137
      %v3708 = vpop.f32.mrb[0].mxu0
      %v3709 = vadd.f32 %v2951, %v3708
      %v3710 = vpop.f32.mrb[0].mxu0
      %3711 = vmatprep.mubr.f32.mxu0 0.0
      %3712 = vmatmul.mubr.f32.gmra.mrb[0].mxu0 %v3140
      %v3713 = vpop.f32.mrb[0].mxu0
      %v3714 = vadd.f32 %v2951, %v3713
      %v3715 = vpop.f32.mrb[0].mxu0
      %3716 = vmatprep.mubr.f32.mxu0 0.0
      %3717 = vmatmul.mubr.f32.gmra.mrb[0].mxu0 %v3143
      %v3718 = vpop.f32.mrb[0].mxu0
      %v3719 = vadd.f32 %v2951, %v3718
      %v3720 = vpop.f32.mrb[0].mxu0
      %3721 = vmatprep.mubr.f32.mxu0 0.0
      %3722 = vmatmul.mubr.f32.gmra.mrb[0].mxu0 %v3146
      %v3723 = vpop.f32.mrb[0].mxu0
      %v3724 = vadd.f32 %v2951, %v3723
      %v3725 = vpop.f32.mrb[0].mxu0
      %3726 = vmatprep.mubr.f32.mxu0 0.0
      %3727 = vmatmul.mubr.f32.gmra.mrb[0].mxu0 %v3149
      %v3728 = vpop.f32.mrb[0].mxu0
      %v3729 = vadd.f32 %v2951, %v3728
      %v3730 = vpop.f32.mrb[0].mxu0
      %3731 = vmatprep.mubr.f32.mxu0 0.0
      %3732 = vmatmul.mubr.f32.gmra.mrb[0].mxu0 %v3152
      %v3733 = vpop.f32.mrb[0].mxu0
      %v3734 = vadd.f32 %v2951, %v3733
      %v3735 = vpop.f32.mrb[0].mxu0
      %3736 = vmatprep.mubr.f32.mxu0 0.0
      %3737 = vmatmul.mubr.f32.gmra.mrb[0].mxu0 %v3155
      %v3738 = vpop.f32.mrb[0].mxu0
      %v3739 = vadd.f32 %v2951, %v3738
      %v3740 = vpop.f32.mrb[0].mxu0
      %3741 = vmatprep.mubr.f32.mxu0 0.0
      %3742 = vmatmul.mubr.f32.gmra.mrb[0].mxu0 %v3158
      %v3743 = vpop.f32.mrb[0].mxu0
      %v3744 = vadd.f32 %v2951, %v3743
      %v3745 = vpop.f32.mrb[0].mxu0
      %3746 = vmatprep.mubr.f32.mxu0 0.0
      %3747 = vmatmul.mubr.f32.gmra.mrb[0].mxu0 %v3161
      %v3748 = vpop.f32.mrb[0].mxu0
      %v3749 = vadd.f32 %v2951, %v3748
      %v3750 = vpop.f32.mrb[0].mxu0
      %3751 = vmatprep.mubr.f32.mxu0 0.0
      %3752 = vmatmul.mubr.f32.gmra.mrb[0].mxu0 %v3164
      %v3753 = vpop.f32.mrb[0].mxu0
      %v3754 = vadd.f32 %v2951, %v3753
      %v3755 = vpop.f32.mrb[0].mxu0
      %3756 = vmatprep.mubr.f32.mxu0 0.0
      %3757 = vmatmul.mubr.f32.gmra.mrb[0].mxu0 %v3167
      %v3758 = vpop.f32.mrb[0].mxu0
      %v3759 = vadd.f32 %v2951, %v3758
      %v3760 = vpop.f32.mrb[0].mxu0
      %3761 = vmatprep.mubr.f32.mxu0 0.0
      %3762 = vmatmul.mubr.f32.gmra.mrb[0].mxu0 %v3170
      %v3763 = vpop.f32.mrb[0].mxu0
      %v3764 = vadd.f32 %v2951, %v3763
      %v3765 = vpop.f32.mrb[0].mxu0
      %3766 = vmatprep.mubr.f32.mxu0 0.0
      %3767 = vmatmul.mubr.f32.gmra.mrb[0].mxu0 %v3173
      %v3768 = vpop.f32.mrb[0].mxu0
      %v3769 = vadd.f32 %v2951, %v3768
      %v3770 = vpop.f32.mrb[0].mxu0
      %3771 = vmatprep.mubr.f32.mxu0 0.0
      %3772 = vmatmul.mubr.f32.gmra.mrb[0].mxu0 %v3176
      %v3773 = vpop.f32.mrb[0].mxu0
      %v3774 = vadd.f32 %v2951, %v3773
      %v3775 = vpop.f32.mrb[0].mxu0
      %3776 = vmatprep.mubr.f32.mxu0 0.0
      %3777 = vmatmul.mubr.f32.gmra.mrb[0].mxu0 %v3179
      %v3778 = vpop.f32.mrb[0].mxu0
      %v3779 = vadd.f32 %v2951, %v3778
      %v3780 = vpop.f32.mrb[0].mxu0
      %3781 = vmatprep.mubr.f32.mxu0 0.0
      %3782 = vmatmul.mubr.f32.gmra.mrb[0].mxu0 %v3182
      %v3783 = vpop.f32.mrb[0].mxu0
      %v3784 = vadd.f32 %v2951, %v3783
      %v3785 = vpop.f32.mrb[0].mxu0
      %3786 = vmatprep.mubr.f32.mxu0 0.0
      %3787 = vmatmul.mubr.f32.gmra.mrb[0].mxu0 %v3185
      %v3788 = vpop.f32.mrb[0].mxu0
      %v3789 = vadd.f32 %v2951, %v3788
      %v3790 = vpop.f32.mrb[0].mxu0
      %3791 = vmatprep.mubr.f32.mxu0 0.0
      %3792 = vmatmul.mubr.f32.gmra.mrb[0].mxu0 %v3188
      %v3793 = vpop.f32.mrb[0].mxu0
      %v3794 = vadd.f32 %v2951, %v3793
      %v3795 = vpop.f32.mrb[0].mxu0
      %3796 = vmatprep.mubr.f32.mxu0 0.0
      %3797 = vmatmul.mubr.f32.gmra.mrb[0].mxu0 %v3191
      %v3798 = vpop.f32.mrb[0].mxu0
      %v3799 = vadd.f32 %v2951, %v3798
      %v3800 = vpop.f32.mrb[0].mxu0
      %3801 = vmatprep.mubr.f32.mxu0 0.0
      %3802 = vmatmul.mubr.f32.gmra.mrb[0].mxu0 %v3194
      %v3803 = vpop.f32.mrb[0].mxu0
      %v3804 = vadd.f32 %v2951, %v3803
      %v3805 = vpop.f32.mrb[0].mxu0
      %3806 = vmatprep.mubr.f32.mxu0 0.0
      %3807 = vmatmul.mubr.f32.gmra.mrb[0].mxu0 %v3197
      %v3808 = vpop.f32.mrb[0].mxu0
      %v3809 = vadd.f32 %v2951, %v3808
      %v3810 = vpop.f32.mrb[0].mxu0
      %3811 = vmatprep.mubr.f32.mxu0 0.0
      %3812 = vmatmul.mubr.f32.gmra.mrb[0].mxu0 %v3200
      %v3813 = vpop.f32.mrb[0].mxu0
      %v3814 = vadd.f32 %v2951, %v3813
      %v3815 = vpop.f32.mrb[0].mxu0
      %3816 = vmatprep.mubr.f32.mxu0 0.0
      %3817 = vmatmul.mubr.f32.gmra.mrb[0].mxu0 %v3203
      %v3818 = vpop.f32.mrb[0].mxu0
      %v3819 = vadd.f32 %v2951, %v3818
      %v3820 = vpop.f32.mrb[0].mxu0
      %3821 = vmatprep.mubr.f32.mxu0 0.0
      %3822 = vmatmul.mubr.f32.gmra.mrb[0].mxu0 %v3206
      %v3823 = vpop.f32.mrb[0].mxu0
      %v3824 = vadd.f32 %v2951, %v3823
      %v3825 = vpop.f32.mrb[0].mxu0
      %3826 = vmatprep.mubr.f32.mxu0 0.0
      %3827 = vmatmul.mubr.f32.gmra.mrb[0].mxu0 %v3209
      %v3828 = vpop.f32.mrb[0].mxu0
      %v3829 = vadd.f32 %v2951, %v3828
      %v3830 = vpop.f32.mrb[0].mxu0
      %3831 = vmatprep.mubr.f32.mxu0 0.0
      %3832 = vmatmul.mubr.f32.gmra.mrb[0].mxu0 %v3212
      %v3833 = vpop.f32.mrb[0].mxu0
      %v3834 = vadd.f32 %v2951, %v3833
      %v3835 = vpop.f32.mrb[0].mxu0
      %3836 = vmatprep.mubr.f32.mxu0 0.0
      %3837 = vmatmul.mubr.f32.gmra.mrb[0].mxu0 %v3215
      %v3838 = vpop.f32.mrb[0].mxu0
      %v3839 = vadd.f32 %v2951, %v3838
      %v3840 = vpop.f32.mrb[0].mxu0
      %3841 = vmatprep.mubr.f32.mxu0 0.0
      %3842 = vmatmul.mubr.f32.gmra.mrb[0].mxu0 %v3218
      %v3843 = vpop.f32.mrb[0].mxu0
      %v3844 = vadd.f32 %v2951, %v3843
      %v3845 = vpop.f32.mrb[0].mxu0
      %3846 = vmatprep.mubr.f32.mxu0 0.0
      %3847 = vmatmul.mubr.f32.gmra.mrb[0].mxu0 %v3221
      %v3848 = vpop.f32.mrb[0].mxu0
      %v3849 = vadd.f32 %v2951, %v3848
      %v3850 = vpop.f32.mrb[0].mxu0
      %3851 = vmatprep.mubr.f32.mxu0 0.0
      %3852 = vmatmul.mubr.f32.gmra.mrb[0].mxu0 %v3224
      %v3853 = vpop.f32.mrb[0].mxu0
      %v3854 = vadd.f32 %v2951, %v3853
      %v3855 = vpop.f32.mrb[0].mxu0
      %3856 = vmatprep.mubr.f32.mxu0 0.0
      %3857 = vmatmul.mubr.f32.gmra.mrb[0].mxu0 %v3227
      %v3858 = vpop.f32.mrb[0].mxu0
      %v3859 = vadd.f32 %v2951, %v3858
      %v3860 = vpop.f32.mrb[0].mxu0
      %3861 = vmatprep.mubr.f32.mxu0 0.0
      %3862 = vmatmul.mubr.f32.gmra.mrb[0].mxu0 %v3230
      %v3863 = vpop.f32.mrb[0].mxu0
      %v3864 = vadd.f32 %v2951, %v3863
      %v3865 = vpop.f32.mrb[0].mxu0
      %3866 = vmatprep.mubr.f32.mxu0 0.0
      %3867 = vmatmul.mubr.f32.gmra.mrb[0].mxu0 %v3233
      %v3868 = vpop.f32.mrb[0].mxu0
      %v3869 = vadd.f32 %v2951, %v3868
      %v3870 = vpop.f32.mrb[0].mxu0
      %3871 = vmatprep.mubr.f32.mxu0 0.0
      %3872 = vmatmul.mubr.f32.gmra.mrb[0].mxu0 %v3236
      %v3873 = vpop.f32.mrb[0].mxu0
      %v3874 = vadd.f32 %v2951, %v3873
      %v3875 = vpop.f32.mrb[0].mxu0
      %3876 = vmatprep.mubr.f32.mxu0 0.0
      %3877 = vmatmul.mubr.f32.gmra.mrb[0].mxu0 %v3239
      %v3878 = vpop.f32.mrb[0].mxu0
      %v3879 = vadd.f32 %v2951, %v3878
      %v3880 = vpop.f32.mrb[0].mxu0
      %3881 = vmatprep.mubr.f32.mxu0 0.0
      %3882 = vmatmul.mubr.f32.gmra.mrb[0].mxu0 %v3242
      %v3883 = vpop.f32.mrb[0].mxu0
      %v3884 = vadd.f32 %v2951, %v3883
      %v3885 = vpop.f32.mrb[0].mxu0
      %3886 = vmatprep.mubr.f32.mxu0 0.0
      %3887 = vmatmul.mubr.f32.gmra.mrb[0].mxu0 %v3245
      %v3888 = vpop.f32.mrb[0].mxu0
      %v3889 = vadd.f32 %v2951, %v3888
      %v3890 = vpop.f32.mrb[0].mxu0
      %3891 = vmatprep.mubr.f32.mxu0 0.0
      %3892 = vmatmul.mubr.f32.gmra.mrb[0].mxu0 %v3248
      %v3893 = vpop.f32.mrb[0].mxu0
      %v3894 = vadd.f32 %v2951, %v3893
      %v3895 = vpop.f32.mrb[0].mxu0
      %3896 = vmatprep.mubr.f32.mxu0 0.0
      %3897 = vmatmul.mubr.f32.gmra.mrb[0].mxu0 %v3251
      %v3898 = vpop.f32.mrb[0].mxu0
      %v3899 = vadd.f32 %v2951, %v3898
      %v3900 = vpop.f32.mrb[0].mxu0
      %3901 = vmatprep.mubr.f32.mxu0 0.0
      %3902 = vmatmul.mubr.f32.gmra.mrb[0].mxu0 %v3254
      %v3903 = vpop.f32.mrb[0].mxu0
      %v3904 = vadd.f32 %v2951, %v3903
      %v3905 = vpop.f32.mrb[0].mxu0
      %3906 = vmatprep.mubr.f32.mxu0 0.0
      %3907 = vmatmul.mubr.f32.gmra.mrb[0].mxu0 %v3257
      %v3908 = vpop.f32.mrb[0].mxu0
      %v3909 = vadd.f32 %v2951, %v3908
      %v3910 = vpop.f32.mrb[0].mxu0
      %3911 = vmatprep.mubr.f32.mxu0 0.0
      %3912 = vmatmul.mubr.f32.gmra.mrb[0].mxu0 %v3260
      %v3913 = vpop.f32.mrb[0].mxu0
      %v3914 = vadd.f32 %v2951, %v3913
      %v3915 = vpop.f32.mrb[0].mxu0
      %3916 = vmatprep.mubr.f32.mxu0 0.0
      %3917 = vmatmul.mubr.f32.gmra.mrb[0].mxu0 %v3263
      %v3918 = vpop.f32.mrb[0].mxu0
      %v3919 = vadd.f32 %v2951, %v3918
      %v3920 = vpop.f32.mrb[0].mxu0
      %3921 = vmatprep.mubr.f32.mxu0 0.0
      %3922 = vmatmul.mubr.f32.gmra.mrb[0].mxu0 %v3266
      %v3923 = vpop.f32.mrb[0].mxu0
      %v3924 = vadd.f32 %v2951, %v3923
      %v3925 = vpop.f32.mrb[0].mxu0
      %3926 = vmatprep.mubr.f32.mxu0 0.0
      %3927 = vmatmul.mubr.f32.gmra.mrb[0].mxu0 %v3269
      %v3928 = vpop.f32.mrb[0].mxu0
      %v3929 = vadd.f32 %v2951, %v3928
      %v3930 = vpop.f32.mrb[0].mxu0
      %3931 = vmatprep.mubr.f32.mxu0 0.0
      %3932 = vmatmul.mubr.f32.gmra.mrb[0].mxu0 %v3272
      %v3933 = vpop.f32.mrb[0].mxu0
      %v3934 = vadd.f32 %v2951, %v3933
      %v3935 = vpop.f32.mrb[0].mxu0
      %3936 = vmatprep.mubr.f32.mxu0 0.0
      %3937 = vmatmul.mubr.f32.gmra.mrb[0].mxu0 %v3275
      %v3938 = vpop.f32.mrb[0].mxu0
      %v3939 = vadd.f32 %v2951, %v3938
      %v3940 = vpop.f32.mrb[0].mxu0
      %3941 = vmatprep.mubr.f32.mxu0 0.0
      %3942 = vmatmul.mubr.f32.gmra.mrb[0].mxu0 %v3278
      %v3943 = vpop.f32.mrb[0].mxu0
      %v3944 = vadd.f32 %v2951, %v3943
      %v3945 = vpop.f32.mrb[0].mxu0
      %3946 = vmatprep.mubr.f32.mxu0 0.0
      %3947 = vmatmul.mubr.f32.gmra.mrb[0].mxu0 %v3281
      %v3948 = vpop.f32.mrb[0].mxu0
      %v3949 = vadd.f32 %v2951, %v3948
      %v3950 = vpop.f32.mrb[0].mxu0
      %3951 = vmatprep.mubr.f32.mxu0 0.0
      %3952 = vmatmul.mubr.f32.gmra.mrb[0].mxu0 %v3284
      %v3953 = vpop.f32.mrb[0].mxu0
      %v3954 = vadd.f32 %v2951, %v3953
      %v3955 = vpop.f32.mrb[0].mxu0
      %3956 = vmatprep.mubr.f32.mxu0 0.0
      %3957 = vmatmul.mubr.f32.gmra.mrb[0].mxu0 %v3287
      %v3958 = vpop.f32.mrb[0].mxu0
      %v3959 = vadd.f32 %v2951, %v3958
      %v3960 = vpop.f32.mrb[0].mxu0
      %3961 = vmatprep.mubr.f32.mxu0 0.0
      %3962 = vmatmul.mubr.f32.gmra.mrb[0].mxu0 %v3290
      %v3963 = vpop.f32.mrb[0].mxu0
      %v3964 = vadd.f32 %v2951, %v3963
      %v3965 = vpop.f32.mrb[0].mxu0
      %3966 = vmatprep.mubr.f32.mxu0 0.0
      %3967 = vmatmul.mubr.f32.gmra.mrb[0].mxu0 %v3293
      %v3968 = vpop.f32.mrb[0].mxu0
      %v3969 = vadd.f32 %v2951, %v3968
      %v3970 = vpop.f32.mrb[0].mxu0
      %3971 = vmatprep.mubr.f32.mxu0 0.0
      %3972 = vmatmul.mubr.f32.gmra.mrb[0].mxu0 %v3296
      %v3973 = vpop.f32.mrb[0].mxu0
      %v3974 = vadd.f32 %v2951, %v3973
      %v3975 = vpop.f32.mrb[0].mxu0
      %3976 = vmatprep.mubr.f32.mxu0 0.0
      %3977 = vmatmul.mubr.f32.gmra.mrb[0].mxu0 %v3299
      %v3978 = vpop.f32.mrb[0].mxu0
      %v3979 = vadd.f32 %v2951, %v3978
      %v3980 = vpop.f32.mrb[0].mxu0
      %3981 = vmatprep.mubr.f32.mxu0 0.0
      %3982 = vmatmul.mubr.f32.gmra.mrb[0].mxu0 %v3302
      %v3983 = vpop.f32.mrb[0].mxu0
      %v3984 = vadd.f32 %v2951, %v3983
      %v3985 = vpop.f32.mrb[0].mxu0
      %3986 = vmatprep.mubr.f32.mxu0 0.0
      %3987 = vmatmul.mubr.f32.gmra.mrb[0].mxu0 %v3305
      %v3988 = vpop.f32.mrb[0].mxu0
      %v3989 = vadd.f32 %v2951, %v3988
      %v3990 = vpop.f32.mrb[0].mxu0
      %3991 = vmatprep.mubr.f32.mxu0 0.0
      %3992 = vmatmul.mubr.f32.gmra.mrb[0].mxu0 %v3308
      %v3993 = vpop.f32.mrb[0].mxu0
      %v3994 = vadd.f32 %v2951, %v3993
      %v3995 = vpop.f32.mrb[0].mxu0
      %3996 = vmatprep.mubr.f32.mxu0 0.0
      %3997 = vmatmul.mubr.f32.gmra.mrb[0].mxu0 %v3311
      %v3998 = vpop.f32.mrb[0].mxu0
      %v3999 = vadd.f32 %v2951, %v3998
      %v4000 = vpop.f32.mrb[0].mxu0
      %4001 = vmatprep.mubr.f32.mxu0 0.0
      %4002 = vmatmul.mubr.f32.gmra.mrb[0].mxu0 %v3314
      %v4003 = vpop.f32.mrb[0].mxu0
      %v4004 = vadd.f32 %v2951, %v4003
      %v4005 = vpop.f32.mrb[0].mxu0
      %4006 = vmatprep.mubr.f32.mxu0 0.0
      %4007 = vmatmul.mubr.f32.gmra.mrb[0].mxu0 %v3317
      %v4008 = vpop.f32.mrb[0].mxu0
      %v4009 = vadd.f32 %v2951, %v4008
      %v4010 = vpop.f32.mrb[0].mxu0
      %4011 = vmatprep.mubr.f32.mxu0 0.0
      %4012 = vmatmul.mubr.f32.gmra.mrb[0].mxu0 %v3320
      %v4013 = vpop.f32.mrb[0].mxu0
      %v4014 = vadd.f32 %v2951, %v4013
      %v4015 = vpop.f32.mrb[0].mxu0
      %4016 = vmatprep.mubr.f32.mxu0 0.0
      %4017 = vmatmul.mubr.f32.gmra.mrb[0].mxu0 %v3323
      %v4018 = vpop.f32.mrb[0].mxu0
      %v4019 = vadd.f32 %v2951, %v4018
      %v4020 = vpop.f32.mrb[0].mxu0
      %4021 = vmatprep.mubr.f32.mxu0 0.0
      %4022 = vmatmul.mubr.f32.gmra.mrb[0].mxu0 %v3326
      %v4023 = vpop.f32.mrb[0].mxu0
      %v4024 = vadd.f32 %v2951, %v4023
      %v4025 = vpop.f32.mrb[0].mxu0
      %4026 = vmatprep.mubr.f32.mxu0 0.0
      %4027 = vmatmul.mubr.f32.gmra.mrb[0].mxu0 %v3329
      %v4028 = vpop.f32.mrb[0].mxu0
      %v4029 = vadd.f32 %v2951, %v4028
      %v4030 = vpop.f32.mrb[0].mxu0
      %4031 = vmatprep.mubr.f32.mxu0 0.0
      %4032 = vmatmul.mubr.f32.gmra.mrb[0].mxu0 %v3332
      %v4033 = vpop.f32.mrb[0].mxu0
      %v4034 = vadd.f32 %v2951, %v4033
      %v4035 = vpop.f32.mrb[0].mxu0
      %4036 = vmatprep.mubr.f32.mxu0 0.0
      %4037 = vmatmul.mubr.f32.gmra.mrb[0].mxu0 %v3335
      %v4038 = vpop.f32.mrb[0].mxu0
      %v4039 = vadd.f32 %v2951, %v4038
      %v4040 = vpop.f32.mrb[0].mxu0
      %4041 = vdwg.mxu0
      %vm4042 = vcmp.ge.f32.partialorder %v3404, 0.0
      %vm4043 = vcmp.ge.f32.partialorder %v3409, 0.0
      %vm4044 = vcmp.ge.f32.partialorder %v3414, 0.0
      %vm4045 = vcmp.ge.f32.partialorder %v3419, 0.0
      %vm4046 = vcmp.ge.f32.partialorder %v3424, 0.0
      %vm4047 = vcmp.ge.f32.partialorder %v3429, 0.0
      %vm4048 = vcmp.ge.f32.partialorder %v3434, 0.0
      %vm4049 = vcmp.ge.f32.partialorder %v3439, 0.0
      %vm4050 = vcmp.ge.f32.partialorder %v3444, 0.0
      %vm4051 = vcmp.ge.f32.partialorder %v3449, 0.0
      %vm4052 = vcmp.ge.f32.partialorder %v3454, 0.0
      %vm4053 = vcmp.ge.f32.partialorder %v3459, 0.0
      %vm4054 = vcmp.ge.f32.partialorder %v3464, 0.0
      %vm4055 = vcmp.ge.f32.partialorder %v3469, 0.0
      %vm4056 = vcmp.ge.f32.partialorder %v3474, 0.0
      %vm4057 = vcmp.ge.f32.partialorder %v3479, 0.0
      %vm4058 = vcmp.ge.f32.partialorder %v3484, 0.0
      %vm4059 = vcmp.ge.f32.partialorder %v3489, 0.0
      %vm4060 = vcmp.ge.f32.partialorder %v3494, 0.0
      %vm4061 = vcmp.ge.f32.partialorder %v3499, 0.0
      %vm4062 = vcmp.ge.f32.partialorder %v3504, 0.0
      %vm4063 = vcmp.ge.f32.partialorder %v3509, 0.0
      %vm4064 = vcmp.ge.f32.partialorder %v3514, 0.0
      %vm4065 = vcmp.ge.f32.partialorder %v3519, 0.0
      %vm4066 = vcmp.ge.f32.partialorder %v3524, 0.0
      %vm4067 = vcmp.ge.f32.partialorder %v3529, 0.0
      %vm4068 = vcmp.ge.f32.partialorder %v3534, 0.0
      %vm4069 = vcmp.ge.f32.partialorder %v3539, 0.0
      %vm4070 = vcmp.ge.f32.partialorder %v3544, 0.0
      %vm4071 = vcmp.ge.f32.partialorder %v3549, 0.0
      %vm4072 = vcmp.ge.f32.partialorder %v3554, 0.0
      %vm4073 = vcmp.ge.f32.partialorder %v3559, 0.0
      %vm4074 = vcmp.ge.f32.partialorder %v3564, 0.0
      %vm4075 = vcmp.ge.f32.partialorder %v3569, 0.0
      %vm4076 = vcmp.ge.f32.partialorder %v3574, 0.0
      %vm4077 = vcmp.ge.f32.partialorder %v3579, 0.0
      %vm4078 = vcmp.ge.f32.partialorder %v3584, 0.0
      %vm4079 = vcmp.ge.f32.partialorder %v3589, 0.0
      %vm4080 = vcmp.ge.f32.partialorder %v3594, 0.0
      %vm4081 = vcmp.ge.f32.partialorder %v3599, 0.0
      %vm4082 = vcmp.ge.f32.partialorder %v3604, 0.0
      %vm4083 = vcmp.ge.f32.partialorder %v3609, 0.0
      %vm4084 = vcmp.ge.f32.partialorder %v3614, 0.0
      %vm4085 = vcmp.ge.f32.partialorder %v3619, 0.0
      %vm4086 = vcmp.ge.f32.partialorder %v3624, 0.0
      %vm4087 = vcmp.ge.f32.partialorder %v3629, 0.0
      %vm4088 = vcmp.ge.f32.partialorder %v3634, 0.0
      %vm4089 = vcmp.ge.f32.partialorder %v3639, 0.0
      %vm4090 = vcmp.ge.f32.partialorder %v3644, 0.0
      %vm4091 = vcmp.ge.f32.partialorder %v3649, 0.0
      %vm4092 = vcmp.ge.f32.partialorder %v3654, 0.0
      %vm4093 = vcmp.ge.f32.partialorder %v3659, 0.0
      %vm4094 = vcmp.ge.f32.partialorder %v3664, 0.0
      %vm4095 = vcmp.ge.f32.partialorder %v3669, 0.0
      %vm4096 = vcmp.ge.f32.partialorder %v3674, 0.0
      %vm4097 = vcmp.ge.f32.partialorder %v3679, 0.0
      %vm4098 = vcmp.ge.f32.partialorder %v3684, 0.0
      %vm4099 = vcmp.ge.f32.partialorder %v3689, 0.0
      %vm4100 = vcmp.ge.f32.partialorder %v3694, 0.0
      %vm4101 = vcmp.ge.f32.partialorder %v3699, 0.0
      %vm4102 = vcmp.ge.f32.partialorder %v3704, 0.0
      %vm4103 = vcmp.ge.f32.partialorder %v3709, 0.0
      %vm4104 = vcmp.ge.f32.partialorder %v3714, 0.0
      %vm4105 = vcmp.ge.f32.partialorder %v3719, 0.0
      %vm4106 = vcmp.ge.f32.partialorder %v3724, 0.0
      %vm4107 = vcmp.ge.f32.partialorder %v3729, 0.0
      %vm4108 = vcmp.ge.f32.partialorder %v3734, 0.0
      %vm4109 = vcmp.ge.f32.partialorder %v3739, 0.0
      %vm4110 = vcmp.ge.f32.partialorder %v3744, 0.0
      %vm4111 = vcmp.ge.f32.partialorder %v3749, 0.0
      %vm4112 = vcmp.ge.f32.partialorder %v3754, 0.0
      %vm4113 = vcmp.ge.f32.partialorder %v3759, 0.0
      %vm4114 = vcmp.ge.f32.partialorder %v3764, 0.0
      %vm4115 = vcmp.ge.f32.partialorder %v3769, 0.0
      %vm4116 = vcmp.ge.f32.partialorder %v3774, 0.0
      %vm4117 = vcmp.ge.f32.partialorder %v3779, 0.0
      %vm4118 = vcmp.ge.f32.partialorder %v3784, 0.0
      %vm4119 = vcmp.ge.f32.partialorder %v3789, 0.0
      %vm4120 = vcmp.ge.f32.partialorder %v3794, 0.0
      %vm4121 = vcmp.ge.f32.partialorder %v3799, 0.0
      %vm4122 = vcmp.ge.f32.partialorder %v3804, 0.0
      %vm4123 = vcmp.ge.f32.partialorder %v3809, 0.0
      %vm4124 = vcmp.ge.f32.partialorder %v3814, 0.0
      %vm4125 = vcmp.ge.f32.partialorder %v3819, 0.0
      %vm4126 = vcmp.ge.f32.partialorder %v3824, 0.0
      %vm4127 = vcmp.ge.f32.partialorder %v3829, 0.0
      %vm4128 = vcmp.ge.f32.partialorder %v3834, 0.0
      %vm4129 = vcmp.ge.f32.partialorder %v3839, 0.0
      %vm4130 = vcmp.ge.f32.partialorder %v3844, 0.0
      %vm4131 = vcmp.ge.f32.partialorder %v3849, 0.0
      %vm4132 = vcmp.ge.f32.partialorder %v3854, 0.0
      %vm4133 = vcmp.ge.f32.partialorder %v3859, 0.0
      %vm4134 = vcmp.ge.f32.partialorder %v3864, 0.0
      %vm4135 = vcmp.ge.f32.partialorder %v3869, 0.0
      %vm4136 = vcmp.ge.f32.partialorder %v3874, 0.0
      %vm4137 = vcmp.ge.f32.partialorder %v3879, 0.0
      %vm4138 = vcmp.ge.f32.partialorder %v3884, 0.0
      %vm4139 = vcmp.ge.f32.partialorder %v3889, 0.0
      %vm4140 = vcmp.ge.f32.partialorder %v3894, 0.0
      %vm4141 = vcmp.ge.f32.partialorder %v3899, 0.0
      %vm4142 = vcmp.ge.f32.partialorder %v3904, 0.0
      %vm4143 = vcmp.ge.f32.partialorder %v3909, 0.0
      %vm4144 = vcmp.ge.f32.partialorder %v3914, 0.0
      %vm4145 = vcmp.ge.f32.partialorder %v3919, 0.0
      %vm4146 = vcmp.ge.f32.partialorder %v3924, 0.0
      %vm4147 = vcmp.ge.f32.partialorder %v3929, 0.0
      %vm4148 = vcmp.ge.f32.partialorder %v3934, 0.0
      %vm4149 = vcmp.ge.f32.partialorder %v3939, 0.0
      %vm4150 = vcmp.ge.f32.partialorder %v3944, 0.0
      %vm4151 = vcmp.ge.f32.partialorder %v3949, 0.0
      %vm4152 = vcmp.ge.f32.partialorder %v3954, 0.0
      %vm4153 = vcmp.ge.f32.partialorder %v3959, 0.0
      %vm4154 = vcmp.ge.f32.partialorder %v3964, 0.0
      %vm4155 = vcmp.ge.f32.partialorder %v3969, 0.0
      %vm4156 = vcmp.ge.f32.partialorder %v3974, 0.0
      %vm4157 = vcmp.ge.f32.partialorder %v3979, 0.0
      %vm4158 = vcmp.ge.f32.partialorder %v3984, 0.0
      %vm4159 = vcmp.ge.f32.partialorder %v3989, 0.0
      %vm4160 = vcmp.ge.f32.partialorder %v3994, 0.0
      %vm4161 = vcmp.ge.f32.partialorder %v3999, 0.0
      %vm4162 = vcmp.ge.f32.partialorder %v4004, 0.0
      %vm4163 = vcmp.ge.f32.partialorder %v4009, 0.0
      %vm4164 = vcmp.ge.f32.partialorder %v4014, 0.0
      %vm4165 = vcmp.ge.f32.partialorder %v4019, 0.0
      %vm4166 = vcmp.ge.f32.partialorder %v4024, 0.0
      %vm4167 = vcmp.ge.f32.partialorder %v4029, 0.0
      %vm4168 = vcmp.ge.f32.partialorder %v4034, 0.0
      %vm4169 = vcmp.ge.f32.partialorder %v4039, 0.0
      %v4170 = vmul.f32 %v3404, 0.2
      %v4171 = vmul.f32 %v3409, 0.2
      %v4172 = vmul.f32 %v3414, 0.2
      %v4173 = vmul.f32 %v3419, 0.2
      %v4174 = vmul.f32 %v3424, 0.2
      %v4175 = vmul.f32 %v3429, 0.2
      %v4176 = vmul.f32 %v3434, 0.2
      %v4177 = vmul.f32 %v3439, 0.2
      %v4178 = vmul.f32 %v3444, 0.2
      %v4179 = vmul.f32 %v3449, 0.2
      %v4180 = vmul.f32 %v3454, 0.2
      %v4181 = vmul.f32 %v3459, 0.2
      %v4182 = vmul.f32 %v3464, 0.2
      %v4183 = vmul.f32 %v3469, 0.2
      %v4184 = vmul.f32 %v3474, 0.2
      %v4185 = vmul.f32 %v3479, 0.2
      %v4186 = vmul.f32 %v3484, 0.2
      %v4187 = vmul.f32 %v3489, 0.2
      %v4188 = vmul.f32 %v3494, 0.2
      %v4189 = vmul.f32 %v3499, 0.2
      %v4190 = vmul.f32 %v3504, 0.2
      %v4191 = vmul.f32 %v3509, 0.2
      %v4192 = vmul.f32 %v3514, 0.2
      %v4193 = vmul.f32 %v3519, 0.2
      %v4194 = vmul.f32 %v3524, 0.2
      %v4195 = vmul.f32 %v3529, 0.2
      %v4196 = vmul.f32 %v3534, 0.2
      %v4197 = vmul.f32 %v3539, 0.2
      %v4198 = vmul.f32 %v3544, 0.2
      %v4199 = vmul.f32 %v3549, 0.2
      %v4200 = vmul.f32 %v3554, 0.2
      %v4201 = vmul.f32 %v3559, 0.2
      %v4202 = vmul.f32 %v3564, 0.2
      %v4203 = vmul.f32 %v3569, 0.2
      %v4204 = vmul.f32 %v3574, 0.2
      %v4205 = vmul.f32 %v3579, 0.2
      %v4206 = vmul.f32 %v3584, 0.2
      %v4207 = vmul.f32 %v3589, 0.2
      %v4208 = vmul.f32 %v3594, 0.2
      %v4209 = vmul.f32 %v3599, 0.2
      %v4210 = vmul.f32 %v3604, 0.2
      %v4211 = vmul.f32 %v3609, 0.2
      %v4212 = vmul.f32 %v3614, 0.2
      %v4213 = vmul.f32 %v3619, 0.2
      %v4214 = vmul.f32 %v3624, 0.2
      %v4215 = vmul.f32 %v3629, 0.2
      %v4216 = vmul.f32 %v3634, 0.2
      %v4217 = vmul.f32 %v3639, 0.2
      %v4218 = vmul.f32 %v3644, 0.2
      %v4219 = vmul.f32 %v3649, 0.2
      %v4220 = vmul.f32 %v3654, 0.2
      %v4221 = vmul.f32 %v3659, 0.2
      %v4222 = vmul.f32 %v3664, 0.2
      %v4223 = vmul.f32 %v3669, 0.2
      %v4224 = vmul.f32 %v3674, 0.2
      %v4225 = vmul.f32 %v3679, 0.2
      %v4226 = vmul.f32 %v3684, 0.2
      %v4227 = vmul.f32 %v3689, 0.2
      %v4228 = vmul.f32 %v3694, 0.2
      %v4229 = vmul.f32 %v3699, 0.2
      %v4230 = vmul.f32 %v3704, 0.2
      %v4231 = vmul.f32 %v3709, 0.2
      %v4232 = vmul.f32 %v3714, 0.2
      %v4233 = vmul.f32 %v3719, 0.2
      %v4234 = vmul.f32 %v3724, 0.2
      %v4235 = vmul.f32 %v3729, 0.2
      %v4236 = vmul.f32 %v3734, 0.2
      %v4237 = vmul.f32 %v3739, 0.2
      %v4238 = vmul.f32 %v3744, 0.2
      %v4239 = vmul.f32 %v3749, 0.2
      %v4240 = vmul.f32 %v3754, 0.2
      %v4241 = vmul.f32 %v3759, 0.2
      %v4242 = vmul.f32 %v3764, 0.2
      %v4243 = vmul.f32 %v3769, 0.2
      %v4244 = vmul.f32 %v3774, 0.2
      %v4245 = vmul.f32 %v3779, 0.2
      %v4246 = vmul.f32 %v3784, 0.2
      %v4247 = vmul.f32 %v3789, 0.2
      %v4248 = vmul.f32 %v3794, 0.2
      %v4249 = vmul.f32 %v3799, 0.2
      %v4250 = vmul.f32 %v3804, 0.2
      %v4251 = vmul.f32 %v3809, 0.2
      %v4252 = vmul.f32 %v3814, 0.2
      %v4253 = vmul.f32 %v3819, 0.2
      %v4254 = vmul.f32 %v3824, 0.2
      %v4255 = vmul.f32 %v3829, 0.2
      %v4256 = vmul.f32 %v3834, 0.2
      %v4257 = vmul.f32 %v3839, 0.2
      %v4258 = vmul.f32 %v3844, 0.2
      %v4259 = vmul.f32 %v3849, 0.2
      %v4260 = vmul.f32 %v3854, 0.2
      %v4261 = vmul.f32 %v3859, 0.2
      %v4262 = vmul.f32 %v3864, 0.2
      %v4263 = vmul.f32 %v3869, 0.2
      %v4264 = vmul.f32 %v3874, 0.2
      %v4265 = vmul.f32 %v3879, 0.2
      %v4266 = vmul.f32 %v3884, 0.2
      %v4267 = vmul.f32 %v3889, 0.2
      %v4268 = vmul.f32 %v3894, 0.2
      %v4269 = vmul.f32 %v3899, 0.2
      %v4270 = vmul.f32 %v3904, 0.2
      %v4271 = vmul.f32 %v3909, 0.2
      %v4272 = vmul.f32 %v3914, 0.2
      %v4273 = vmul.f32 %v3919, 0.2
      %v4274 = vmul.f32 %v3924, 0.2
      %v4275 = vmul.f32 %v3929, 0.2
      %v4276 = vmul.f32 %v3934, 0.2
      %v4277 = vmul.f32 %v3939, 0.2
      %v4278 = vmul.f32 %v3944, 0.2
      %v4279 = vmul.f32 %v3949, 0.2
      %v4280 = vmul.f32 %v3954, 0.2
      %v4281 = vmul.f32 %v3959, 0.2
      %v4282 = vmul.f32 %v3964, 0.2
      %v4283 = vmul.f32 %v3969, 0.2
      %v4284 = vmul.f32 %v3974, 0.2
      %v4285 = vmul.f32 %v3979, 0.2
      %v4286 = vmul.f32 %v3984, 0.2
      %v4287 = vmul.f32 %v3989, 0.2
      %v4288 = vmul.f32 %v3994, 0.2
      %v4289 = vmul.f32 %v3999, 0.2
      %v4290 = vmul.f32 %v4004, 0.2
      %v4291 = vmul.f32 %v4009, 0.2
      %v4292 = vmul.f32 %v4014, 0.2
      %v4293 = vmul.f32 %v4019, 0.2
      %v4294 = vmul.f32 %v4024, 0.2
      %v4295 = vmul.f32 %v4029, 0.2
      %v4296 = vmul.f32 %v4034, 0.2
      %v4297 = vmul.f32 %v4039, 0.2
      %v4298 = vsel %vm4042, %v3404, %v4170
      %v4299 = vsel %vm4043, %v3409, %v4171
      %v4300 = vsel %vm4044, %v3414, %v4172
      %v4301 = vsel %vm4045, %v3419, %v4173
      %v4302 = vsel %vm4046, %v3424, %v4174
      %v4303 = vsel %vm4047, %v3429, %v4175
      %v4304 = vsel %vm4048, %v3434, %v4176
      %v4305 = vsel %vm4049, %v3439, %v4177
      %v4306 = vsel %vm4050, %v3444, %v4178
      %v4307 = vsel %vm4051, %v3449, %v4179
      %v4308 = vsel %vm4052, %v3454, %v4180
      %v4309 = vsel %vm4053, %v3459, %v4181
      %v4310 = vsel %vm4054, %v3464, %v4182
      %v4311 = vsel %vm4055, %v3469, %v4183
      %v4312 = vsel %vm4056, %v3474, %v4184
      %v4313 = vsel %vm4057, %v3479, %v4185
      %v4314 = vsel %vm4058, %v3484, %v4186
      %v4315 = vsel %vm4059, %v3489, %v4187
      %v4316 = vsel %vm4060, %v3494, %v4188
      %v4317 = vsel %vm4061, %v3499, %v4189
      %v4318 = vsel %vm4062, %v3504, %v4190
      %v4319 = vsel %vm4063, %v3509, %v4191
      %v4320 = vsel %vm4064, %v3514, %v4192
      %v4321 = vsel %vm4065, %v3519, %v4193
      %v4322 = vsel %vm4066, %v3524, %v4194
      %v4323 = vsel %vm4067, %v3529, %v4195
      %v4324 = vsel %vm4068, %v3534, %v4196
      %v4325 = vsel %vm4069, %v3539, %v4197
      %v4326 = vsel %vm4070, %v3544, %v4198
      %v4327 = vsel %vm4071, %v3549, %v4199
      %v4328 = vsel %vm4072, %v3554, %v4200
      %v4329 = vsel %vm4073, %v3559, %v4201
      %v4330 = vsel %vm4074, %v3564, %v4202
      %v4331 = vsel %vm4075, %v3569, %v4203
      %v4332 = vsel %vm4076, %v3574, %v4204
      %v4333 = vsel %vm4077, %v3579, %v4205
      %v4334 = vsel %vm4078, %v3584, %v4206
      %v4335 = vsel %vm4079, %v3589, %v4207
      %v4336 = vsel %vm4080, %v3594, %v4208
      %v4337 = vsel %vm4081, %v3599, %v4209
      %v4338 = vsel %vm4082, %v3604, %v4210
      %v4339 = vsel %vm4083, %v3609, %v4211
      %v4340 = vsel %vm4084, %v3614, %v4212
      %v4341 = vsel %vm4085, %v3619, %v4213
      %v4342 = vsel %vm4086, %v3624, %v4214
      %v4343 = vsel %vm4087, %v3629, %v4215
      %v4344 = vsel %vm4088, %v3634, %v4216
      %v4345 = vsel %vm4089, %v3639, %v4217
      %v4346 = vsel %vm4090, %v3644, %v4218
      %v4347 = vsel %vm4091, %v3649, %v4219
      %v4348 = vsel %vm4092, %v3654, %v4220
      %v4349 = vsel %vm4093, %v3659, %v4221
      %v4350 = vsel %vm4094, %v3664, %v4222
      %v4351 = vsel %vm4095, %v3669, %v4223
      %v4352 = vsel %vm4096, %v3674, %v4224
      %v4353 = vsel %vm4097, %v3679, %v4225
      %v4354 = vsel %vm4098, %v3684, %v4226
      %v4355 = vsel %vm4099, %v3689, %v4227
      %v4356 = vsel %vm4100, %v3694, %v4228
      %v4357 = vsel %vm4101, %v3699, %v4229
      %v4358 = vsel %vm4102, %v3704, %v4230
      %v4359 = vsel %vm4103, %v3709, %v4231
      %v4360 = vsel %vm4104, %v3714, %v4232
      %v4361 = vsel %vm4105, %v3719, %v4233
      %v4362 = vsel %vm4106, %v3724, %v4234
      %v4363 = vsel %vm4107, %v3729, %v4235
      %v4364 = vsel %vm4108, %v3734, %v4236
      %v4365 = vsel %vm4109, %v3739, %v4237
      %v4366 = vsel %vm4110, %v3744, %v4238
      %v4367 = vsel %vm4111, %v3749, %v4239
      %v4368 = vsel %vm4112, %v3754, %v4240
      %v4369 = vsel %vm4113, %v3759, %v4241
      %v4370 = vsel %vm4114, %v3764, %v4242
      %v4371 = vsel %vm4115, %v3769, %v4243
      %v4372 = vsel %vm4116, %v3774, %v4244
      %v4373 = vsel %vm4117, %v3779, %v4245
      %v4374 = vsel %vm4118, %v3784, %v4246
      %v4375 = vsel %vm4119, %v3789, %v4247
      %v4376 = vsel %vm4120, %v3794, %v4248
      %v4377 = vsel %vm4121, %v3799, %v4249
      %v4378 = vsel %vm4122, %v3804, %v4250
      %v4379 = vsel %vm4123, %v3809, %v4251
      %v4380 = vsel %vm4124, %v3814, %v4252
      %v4381 = vsel %vm4125, %v3819, %v4253
      %v4382 = vsel %vm4126, %v3824, %v4254
      %v4383 = vsel %vm4127, %v3829, %v4255
      %v4384 = vsel %vm4128, %v3834, %v4256
      %v4385 = vsel %vm4129, %v3839, %v4257
      %v4386 = vsel %vm4130, %v3844, %v4258
      %v4387 = vsel %vm4131, %v3849, %v4259
      %v4388 = vsel %vm4132, %v3854, %v4260
      %v4389 = vsel %vm4133, %v3859, %v4261
      %v4390 = vsel %vm4134, %v3864, %v4262
      %v4391 = vsel %vm4135, %v3869, %v4263
      %v4392 = vsel %vm4136, %v3874, %v4264
      %v4393 = vsel %vm4137, %v3879, %v4265
      %v4394 = vsel %vm4138, %v3884, %v4266
      %v4395 = vsel %vm4139, %v3889, %v4267
      %v4396 = vsel %vm4140, %v3894, %v4268
      %v4397 = vsel %vm4141, %v3899, %v4269
      %v4398 = vsel %vm4142, %v3904, %v4270
      %v4399 = vsel %vm4143, %v3909, %v4271
      %v4400 = vsel %vm4144, %v3914, %v4272
      %v4401 = vsel %vm4145, %v3919, %v4273
      %v4402 = vsel %vm4146, %v3924, %v4274
      %v4403 = vsel %vm4147, %v3929, %v4275
      %v4404 = vsel %vm4148, %v3934, %v4276
      %v4405 = vsel %vm4149, %v3939, %v4277
      %v4406 = vsel %vm4150, %v3944, %v4278
      %v4407 = vsel %vm4151, %v3949, %v4279
      %v4408 = vsel %vm4152, %v3954, %v4280
      %v4409 = vsel %vm4153, %v3959, %v4281
      %v4410 = vsel %vm4154, %v3964, %v4282
      %v4411 = vsel %vm4155, %v3969, %v4283
      %v4412 = vsel %vm4156, %v3974, %v4284
      %v4413 = vsel %vm4157, %v3979, %v4285
      %v4414 = vsel %vm4158, %v3984, %v4286
      %v4415 = vsel %vm4159, %v3989, %v4287
      %v4416 = vsel %vm4160, %v3994, %v4288
      %v4417 = vsel %vm4161, %v3999, %v4289
      %v4418 = vsel %vm4162, %v4004, %v4290
      %v4419 = vsel %vm4163, %v4009, %v4291
      %v4420 = vsel %vm4164, %v4014, %v4292
      %v4421 = vsel %vm4165, %v4019, %v4293
      %v4422 = vsel %vm4166, %v4024, %v4294
      %v4423 = vsel %vm4167, %v4029, %v4295
      %v4424 = vsel %vm4168, %v4034, %v4296
      %v4425 = vsel %vm4169, %v4039, %v4297
      %v4426 = vmul.f32 %v4298, 1.4142135
      %v4427 = vmul.f32 %v4299, 1.4142135
      %v4428 = vmul.f32 %v4300, 1.4142135
      %v4429 = vmul.f32 %v4301, 1.4142135
      %v4430 = vmul.f32 %v4302, 1.4142135
      %v4431 = vmul.f32 %v4303, 1.4142135
      %v4432 = vmul.f32 %v4304, 1.4142135
      %v4433 = vmul.f32 %v4305, 1.4142135
      %v4434 = vmul.f32 %v4306, 1.4142135
      %v4435 = vmul.f32 %v4307, 1.4142135
      %v4436 = vmul.f32 %v4308, 1.4142135
      %v4437 = vmul.f32 %v4309, 1.4142135
      %v4438 = vmul.f32 %v4310, 1.4142135
      %v4439 = vmul.f32 %v4311, 1.4142135
      %v4440 = vmul.f32 %v4312, 1.4142135
      %v4441 = vmul.f32 %v4313, 1.4142135
      %v4442 = vmul.f32 %v4314, 1.4142135
      %v4443 = vmul.f32 %v4315, 1.4142135
      %v4444 = vmul.f32 %v4316, 1.4142135
      %v4445 = vmul.f32 %v4317, 1.4142135
      %v4446 = vmul.f32 %v4318, 1.4142135
      %v4447 = vmul.f32 %v4319, 1.4142135
      %v4448 = vmul.f32 %v4320, 1.4142135
      %v4449 = vmul.f32 %v4321, 1.4142135
      %v4450 = vmul.f32 %v4322, 1.4142135
      %v4451 = vmul.f32 %v4323, 1.4142135
      %v4452 = vmul.f32 %v4324, 1.4142135
      %v4453 = vmul.f32 %v4325, 1.4142135
      %v4454 = vmul.f32 %v4326, 1.4142135
      %v4455 = vmul.f32 %v4327, 1.4142135
      %v4456 = vmul.f32 %v4328, 1.4142135
      %v4457 = vmul.f32 %v4329, 1.4142135
      %v4458 = vmul.f32 %v4330, 1.4142135
      %v4459 = vmul.f32 %v4331, 1.4142135
      %v4460 = vmul.f32 %v4332, 1.4142135
      %v4461 = vmul.f32 %v4333, 1.4142135
      %v4462 = vmul.f32 %v4334, 1.4142135
      %v4463 = vmul.f32 %v4335, 1.4142135
      %v4464 = vmul.f32 %v4336, 1.4142135
      %v4465 = vmul.f32 %v4337, 1.4142135
      %v4466 = vmul.f32 %v4338, 1.4142135
      %v4467 = vmul.f32 %v4339, 1.4142135
      %v4468 = vmul.f32 %v4340, 1.4142135
      %v4469 = vmul.f32 %v4341, 1.4142135
      %v4470 = vmul.f32 %v4342, 1.4142135
      %v4471 = vmul.f32 %v4343, 1.4142135
      %v4472 = vmul.f32 %v4344, 1.4142135
      %v4473 = vmul.f32 %v4345, 1.4142135
      %v4474 = vmul.f32 %v4346, 1.4142135
      %v4475 = vmul.f32 %v4347, 1.4142135
      %v4476 = vmul.f32 %v4348, 1.4142135
      %v4477 = vmul.f32 %v4349, 1.4142135
      %v4478 = vmul.f32 %v4350, 1.4142135
      %v4479 = vmul.f32 %v4351, 1.4142135
      %v4480 = vmul.f32 %v4352, 1.4142135
      %v4481 = vmul.f32 %v4353, 1.4142135
      %v4482 = vmul.f32 %v4354, 1.4142135
      %v4483 = vmul.f32 %v4355, 1.4142135
      %v4484 = vmul.f32 %v4356, 1.4142135
      %v4485 = vmul.f32 %v4357, 1.4142135
      %v4486 = vmul.f32 %v4358, 1.4142135
      %v4487 = vmul.f32 %v4359, 1.4142135
      %v4488 = vmul.f32 %v4360, 1.4142135
      %v4489 = vmul.f32 %v4361, 1.4142135
      %v4490 = vmul.f32 %v4362, 1.4142135
      %v4491 = vmul.f32 %v4363, 1.4142135
      %v4492 = vmul.f32 %v4364, 1.4142135
      %v4493 = vmul.f32 %v4365, 1.4142135
      %v4494 = vmul.f32 %v4366, 1.4142135
      %v4495 = vmul.f32 %v4367, 1.4142135
      %v4496 = vmul.f32 %v4368, 1.4142135
      %v4497 = vmul.f32 %v4369, 1.4142135
      %v4498 = vmul.f32 %v4370, 1.4142135
      %v4499 = vmul.f32 %v4371, 1.4142135
      %v4500 = vmul.f32 %v4372, 1.4142135
      %v4501 = vmul.f32 %v4373, 1.4142135
      %v4502 = vmul.f32 %v4374, 1.4142135
      %v4503 = vmul.f32 %v4375, 1.4142135
      %v4504 = vmul.f32 %v4376, 1.4142135
      %v4505 = vmul.f32 %v4377, 1.4142135
      %v4506 = vmul.f32 %v4378, 1.4142135
      %v4507 = vmul.f32 %v4379, 1.4142135
      %v4508 = vmul.f32 %v4380, 1.4142135
      %v4509 = vmul.f32 %v4381, 1.4142135
      %v4510 = vmul.f32 %v4382, 1.4142135
      %v4511 = vmul.f32 %v4383, 1.4142135
      %v4512 = vmul.f32 %v4384, 1.4142135
      %v4513 = vmul.f32 %v4385, 1.4142135
      %v4514 = vmul.f32 %v4386, 1.4142135
      %v4515 = vmul.f32 %v4387, 1.4142135
      %v4516 = vmul.f32 %v4388, 1.4142135
      %v4517 = vmul.f32 %v4389, 1.4142135
      %v4518 = vmul.f32 %v4390, 1.4142135
      %v4519 = vmul.f32 %v4391, 1.4142135
      %v4520 = vmul.f32 %v4392, 1.4142135
      %v4521 = vmul.f32 %v4393, 1.4142135
      %v4522 = vmul.f32 %v4394, 1.4142135
      %v4523 = vmul.f32 %v4395, 1.4142135
      %v4524 = vmul.f32 %v4396, 1.4142135
      %v4525 = vmul.f32 %v4397, 1.4142135
      %v4526 = vmul.f32 %v4398, 1.4142135
      %v4527 = vmul.f32 %v4399, 1.4142135
      %v4528 = vmul.f32 %v4400, 1.4142135
      %v4529 = vmul.f32 %v4401, 1.4142135
      %v4530 = vmul.f32 %v4402, 1.4142135
      %v4531 = vmul.f32 %v4403, 1.4142135
      %v4532 = vmul.f32 %v4404, 1.4142135
      %v4533 = vmul.f32 %v4405, 1.4142135
      %v4534 = vmul.f32 %v4406, 1.4142135
      %v4535 = vmul.f32 %v4407, 1.4142135
      %v4536 = vmul.f32 %v4408, 1.4142135
      %v4537 = vmul.f32 %v4409, 1.4142135
      %v4538 = vmul.f32 %v4410, 1.4142135
      %v4539 = vmul.f32 %v4411, 1.4142135
      %v4540 = vmul.f32 %v4412, 1.4142135
      %v4541 = vmul.f32 %v4413, 1.4142135
      %v4542 = vmul.f32 %v4414, 1.4142135
      %v4543 = vmul.f32 %v4415, 1.4142135
      %v4544 = vmul.f32 %v4416, 1.4142135
      %v4545 = vmul.f32 %v4417, 1.4142135
      %v4546 = vmul.f32 %v4418, 1.4142135
      %v4547 = vmul.f32 %v4419, 1.4142135
      %v4548 = vmul.f32 %v4420, 1.4142135
      %v4549 = vmul.f32 %v4421, 1.4142135
      %v4550 = vmul.f32 %v4422, 1.4142135
      %v4551 = vmul.f32 %v4423, 1.4142135
      %v4552 = vmul.f32 %v4424, 1.4142135
      %v4553 = vmul.f32 %v4425, 1.4142135
      %4554 = vst.msk [vmem:[%s172] sm:$0xff] %vm430, %v4426
      %4555 = vst.msk [vmem:[%s172 + $0x8] sm:$0xff] %vm430, %v4427
      %4556 = vst.msk [vmem:[%s172 + $0x10] sm:$0xff] %vm430, %v4428
      %4557 = vst.msk [vmem:[%s172 + $0x18] sm:$0xff] %vm430, %v4429
      %4558 = vst.msk [vmem:[%s172 + $0x20] sm:$0xff] %vm430, %v4430
      %4559 = vst.msk [vmem:[%s172 + $0x28] sm:$0xff] %vm430, %v4431
      %4560 = vst.msk [vmem:[%s172 + $0x30] sm:$0xff] %vm430, %v4432
      %4561 = vst.msk [vmem:[%s172 + $0x38] sm:$0xff] %vm430, %v4433
      %4562 = vst.msk [vmem:[%s172 + $0x40] sm:$0xff] %vm430, %v4434
      %4563 = vst.msk [vmem:[%s172 + $0x48] sm:$0xff] %vm430, %v4435
      %4564 = vst.msk [vmem:[%s172 + $0x50] sm:$0xff] %vm430, %v4436
      %4565 = vst.msk [vmem:[%s172 + $0x58] sm:$0xff] %vm430, %v4437
      %4566 = vst.msk [vmem:[%s172 + $0x60] sm:$0xff] %vm430, %v4438
      %4567 = vst.msk [vmem:[%s172 + $0x68] sm:$0xff] %vm430, %v4439
      %4568 = vst.msk [vmem:[%s172 + $0x70] sm:$0xff] %vm430, %v4440
      %4569 = vst.msk [vmem:[%s172 + $0x78] sm:$0xff] %vm430, %v4441
      %4570 = vst.msk [vmem:[%s172 + $0x80] sm:$0xff] %vm430, %v4442
      %4571 = vst.msk [vmem:[%s172 + $0x88] sm:$0xff] %vm430, %v4443
      %4572 = vst.msk [vmem:[%s172 + $0x90] sm:$0xff] %vm430, %v4444
      %4573 = vst.msk [vmem:[%s172 + $0x98] sm:$0xff] %vm430, %v4445
      %4574 = vst.msk [vmem:[%s172 + $0xa0] sm:$0xff] %vm430, %v4446
      %4575 = vst.msk [vmem:[%s172 + $0xa8] sm:$0xff] %vm430, %v4447
      %4576 = vst.msk [vmem:[%s172 + $0xb0] sm:$0xff] %vm430, %v4448
      %4577 = vst.msk [vmem:[%s172 + $0xb8] sm:$0xff] %vm430, %v4449
      %4578 = vst.msk [vmem:[%s172 + $0xc0] sm:$0xff] %vm430, %v4450
      %4579 = vst.msk [vmem:[%s172 + $0xc8] sm:$0xff] %vm430, %v4451
      %4580 = vst.msk [vmem:[%s172 + $0xd0] sm:$0xff] %vm430, %v4452
      %4581 = vst.msk [vmem:[%s172 + $0xd8] sm:$0xff] %vm430, %v4453
      %4582 = vst.msk [vmem:[%s172 + $0xe0] sm:$0xff] %vm430, %v4454
      %4583 = vst.msk [vmem:[%s172 + $0xe8] sm:$0xff] %vm430, %v4455
      %4584 = vst.msk [vmem:[%s172 + $0xf0] sm:$0xff] %vm430, %v4456
      %4585 = vst.msk [vmem:[%s172 + $0xf8] sm:$0xff] %vm430, %v4457
      %4586 = vst.msk [vmem:[%s172 + $0x100] sm:$0xff] %vm430, %v4458
      %4587 = vst.msk [vmem:[%s172 + $0x108] sm:$0xff] %vm430, %v4459
      %4588 = vst.msk [vmem:[%s172 + $0x110] sm:$0xff] %vm430, %v4460
      %4589 = vst.msk [vmem:[%s172 + $0x118] sm:$0xff] %vm430, %v4461
      %4590 = vst.msk [vmem:[%s172 + $0x120] sm:$0xff] %vm430, %v4462
      %4591 = vst.msk [vmem:[%s172 + $0x128] sm:$0xff] %vm430, %v4463
      %4592 = vst.msk [vmem:[%s172 + $0x130] sm:$0xff] %vm430, %v4464
      %4593 = vst.msk [vmem:[%s172 + $0x138] sm:$0xff] %vm430, %v4465
      %4594 = vst.msk [vmem:[%s172 + $0x140] sm:$0xff] %vm430, %v4466
      %4595 = vst.msk [vmem:[%s172 + $0x148] sm:$0xff] %vm430, %v4467
      %4596 = vst.msk [vmem:[%s172 + $0x150] sm:$0xff] %vm430, %v4468
      %4597 = vst.msk [vmem:[%s172 + $0x158] sm:$0xff] %vm430, %v4469
      %4598 = vst.msk [vmem:[%s172 + $0x160] sm:$0xff] %vm430, %v4470
      %4599 = vst.msk [vmem:[%s172 + $0x168] sm:$0xff] %vm430, %v4471
      %4600 = vst.msk [vmem:[%s172 + $0x170] sm:$0xff] %vm430, %v4472
      %4601 = vst.msk [vmem:[%s172 + $0x178] sm:$0xff] %vm430, %v4473
      %4602 = vst.msk [vmem:[%s172 + $0x180] sm:$0xff] %vm430, %v4474
      %4603 = vst.msk [vmem:[%s172 + $0x188] sm:$0xff] %vm430, %v4475
      %4604 = vst.msk [vmem:[%s172 + $0x190] sm:$0xff] %vm430, %v4476
      %4605 = vst.msk [vmem:[%s172 + $0x198] sm:$0xff] %vm430, %v4477
      %4606 = vst.msk [vmem:[%s172 + $0x1a0] sm:$0xff] %vm430, %v4478
      %4607 = vst.msk [vmem:[%s172 + $0x1a8] sm:$0xff] %vm430, %v4479
      %4608 = vst.msk [vmem:[%s172 + $0x1b0] sm:$0xff] %vm430, %v4480
      %4609 = vst.msk [vmem:[%s172 + $0x1b8] sm:$0xff] %vm430, %v4481
      %4610 = vst.msk [vmem:[%s172 + $0x1c0] sm:$0xff] %vm430, %v4482
      %4611 = vst.msk [vmem:[%s172 + $0x1c8] sm:$0xff] %vm430, %v4483
      %4612 = vst.msk [vmem:[%s172 + $0x1d0] sm:$0xff] %vm430, %v4484
      %4613 = vst.msk [vmem:[%s172 + $0x1d8] sm:$0xff] %vm430, %v4485
      %4614 = vst.msk [vmem:[%s172 + $0x1e0] sm:$0xff] %vm430, %v4486
      %4615 = vst.msk [vmem:[%s172 + $0x1e8] sm:$0xff] %vm430, %v4487
      %4616 = vst.msk [vmem:[%s172 + $0x1f0] sm:$0xff] %vm430, %v4488
      %4617 = vst.msk [vmem:[%s172 + $0x1f8] sm:$0xff] %vm430, %v4489
      %4618 = vst.msk [vmem:[%s172 + $0x200] sm:$0xff] %vm430, %v4490
      %4619 = vst.msk [vmem:[%s172 + $0x208] sm:$0xff] %vm430, %v4491
      %4620 = vst.msk [vmem:[%s172 + $0x210] sm:$0xff] %vm430, %v4492
      %4621 = vst.msk [vmem:[%s172 + $0x218] sm:$0xff] %vm430, %v4493
      %4622 = vst.msk [vmem:[%s172 + $0x220] sm:$0xff] %vm430, %v4494
      %4623 = vst.msk [vmem:[%s172 + $0x228] sm:$0xff] %vm430, %v4495
      %4624 = vst.msk [vmem:[%s172 + $0x230] sm:$0xff] %vm430, %v4496
      %4625 = vst.msk [vmem:[%s172 + $0x238] sm:$0xff] %vm430, %v4497
      %4626 = vst.msk [vmem:[%s172 + $0x240] sm:$0xff] %vm430, %v4498
      %4627 = vst.msk [vmem:[%s172 + $0x248] sm:$0xff] %vm430, %v4499
      %4628 = vst.msk [vmem:[%s172 + $0x250] sm:$0xff] %vm430, %v4500
      %4629 = vst.msk [vmem:[%s172 + $0x258] sm:$0xff] %vm430, %v4501
      %4630 = vst.msk [vmem:[%s172 + $0x260] sm:$0xff] %vm430, %v4502
      %4631 = vst.msk [vmem:[%s172 + $0x268] sm:$0xff] %vm430, %v4503
      %4632 = vst.msk [vmem:[%s172 + $0x270] sm:$0xff] %vm430, %v4504
      %4633 = vst.msk [vmem:[%s172 + $0x278] sm:$0xff] %vm430, %v4505
      %4634 = vst.msk [vmem:[%s172 + $0x280] sm:$0xff] %vm430, %v4506
      %4635 = vst.msk [vmem:[%s172 + $0x288] sm:$0xff] %vm430, %v4507
      %4636 = vst.msk [vmem:[%s172 + $0x290] sm:$0xff] %vm430, %v4508
      %4637 = vst.msk [vmem:[%s172 + $0x298] sm:$0xff] %vm430, %v4509
      %4638 = vst.msk [vmem:[%s172 + $0x2a0] sm:$0xff] %vm430, %v4510
      %4639 = vst.msk [vmem:[%s172 + $0x2a8] sm:$0xff] %vm430, %v4511
      %4640 = vst.msk [vmem:[%s172 + $0x2b0] sm:$0xff] %vm430, %v4512
      %4641 = vst.msk [vmem:[%s172 + $0x2b8] sm:$0xff] %vm430, %v4513
      %4642 = vst.msk [vmem:[%s172 + $0x2c0] sm:$0xff] %vm430, %v4514
      %4643 = vst.msk [vmem:[%s172 + $0x2c8] sm:$0xff] %vm430, %v4515
      %4644 = vst.msk [vmem:[%s172 + $0x2d0] sm:$0xff] %vm430, %v4516
      %4645 = vst.msk [vmem:[%s172 + $0x2d8] sm:$0xff] %vm430, %v4517
      %4646 = vst.msk [vmem:[%s172 + $0x2e0] sm:$0xff] %vm430, %v4518
      %4647 = vst.msk [vmem:[%s172 + $0x2e8] sm:$0xff] %vm430, %v4519
      %4648 = vst.msk [vmem:[%s172 + $0x2f0] sm:$0xff] %vm430, %v4520
      %4649 = vst.msk [vmem:[%s172 + $0x2f8] sm:$0xff] %vm430, %v4521
      %4650 = vst.msk [vmem:[%s172 + $0x300] sm:$0xff] %vm430, %v4522
      %4651 = vst.msk [vmem:[%s172 + $0x308] sm:$0xff] %vm430, %v4523
      %4652 = vst.msk [vmem:[%s172 + $0x310] sm:$0xff] %vm430, %v4524
      %4653 = vst.msk [vmem:[%s172 + $0x318] sm:$0xff] %vm430, %v4525
      %4654 = vst.msk [vmem:[%s172 + $0x320] sm:$0xff] %vm430, %v4526
      %4655 = vst.msk [vmem:[%s172 + $0x328] sm:$0xff] %vm430, %v4527
      %4656 = vst.msk [vmem:[%s172 + $0x330] sm:$0xff] %vm430, %v4528
      %4657 = vst.msk [vmem:[%s172 + $0x338] sm:$0xff] %vm430, %v4529
      %4658 = vst.msk [vmem:[%s172 + $0x340] sm:$0xff] %vm430, %v4530
      %4659 = vst.msk [vmem:[%s172 + $0x348] sm:$0xff] %vm430, %v4531
      %4660 = vst.msk [vmem:[%s172 + $0x350] sm:$0xff] %vm430, %v4532
      %4661 = vst.msk [vmem:[%s172 + $0x358] sm:$0xff] %vm430, %v4533
      %4662 = vst.msk [vmem:[%s172 + $0x360] sm:$0xff] %vm430, %v4534
      %4663 = vst.msk [vmem:[%s172 + $0x368] sm:$0xff] %vm430, %v4535
      %4664 = vst.msk [vmem:[%s172 + $0x370] sm:$0xff] %vm430, %v4536
      %4665 = vst.msk [vmem:[%s172 + $0x378] sm:$0xff] %vm430, %v4537
      %4666 = vst.msk [vmem:[%s172 + $0x380] sm:$0xff] %vm430, %v4538
      %4667 = vst.msk [vmem:[%s172 + $0x388] sm:$0xff] %vm430, %v4539
      %4668 = vst.msk [vmem:[%s172 + $0x390] sm:$0xff] %vm430, %v4540
      %4669 = vst.msk [vmem:[%s172 + $0x398] sm:$0xff] %vm430, %v4541
      %4670 = vst.msk [vmem:[%s172 + $0x3a0] sm:$0xff] %vm430, %v4542
      %4671 = vst.msk [vmem:[%s172 + $0x3a8] sm:$0xff] %vm430, %v4543
      %4672 = vst.msk [vmem:[%s172 + $0x3b0] sm:$0xff] %vm430, %v4544
      %4673 = vst.msk [vmem:[%s172 + $0x3b8] sm:$0xff] %vm430, %v4545
      %4674 = vst.msk [vmem:[%s172 + $0x3c0] sm:$0xff] %vm430, %v4546
      %4675 = vst.msk [vmem:[%s172 + $0x3c8] sm:$0xff] %vm430, %v4547
      %4676 = vst.msk [vmem:[%s172 + $0x3d0] sm:$0xff] %vm430, %v4548
      %4677 = vst.msk [vmem:[%s172 + $0x3d8] sm:$0xff] %vm430, %v4549
      %4678 = vst.msk [vmem:[%s172 + $0x3e0] sm:$0xff] %vm430, %v4550
      %4679 = vst.msk [vmem:[%s172 + $0x3e8] sm:$0xff] %vm430, %v4551
      %4680 = vst.msk [vmem:[%s172 + $0x3f0] sm:$0xff] %vm430, %v4552
      %4681 = vst.msk [vmem:[%s172 + $0x3f8] sm:$0xff] %vm430, %v4553
      %s4682 = smul.u32 128, %s14
      %p4683 = scmp.lt.s32.totalorder %s4682, 511
      %s4684 = scalar_select %p4683, %s4682, 511
      %s4685 = smul.addr %s4684, 8
      %s4686 = scalar_lea.vmem %s3, %s4685
      // Predicated region
      $region33: #{tpu_custom_call.1} parent=31 // pred_check
        %p4687 = pneg %p100
      $region34: #{tpu_custom_call.1} parent=31 // pred_check_branch
        %4689 = sbr.rel (%p4687) target = $region36
      $region35: #{tpu_custom_call.1} parent=31 // pred_region
        %s4690 = smul.u32 128, %s14
      $region36: #{tpu_custom_call.1} parent=31 // pred_fallthru
        _
    $region32: #{tpu_custom_call.1} parent=5 // pred_fallthru
      _
    %p4691 = scmp.le.s32.totalorder 2, %s9
    // Predicated region
    $region37: #{tpu_custom_call.1} parent=5 // pred_check
      %p4692 = pneg %p4691
    $region38: #{tpu_custom_call.1} parent=5 // pred_check_branch
      %4694 = sbr.rel (%p4692) target = $region40
    $region39: #{tpu_custom_call.1} parent=5 // pred_region
      %s4695 = ssub.s32 %s9, 2
      // Predicated region
      $region41: #{tpu_custom_call.1} parent=39 // pred_check
        %p4696 = pneg %p106
      $region42: #{tpu_custom_call.1} parent=39 // pred_check_branch
        %4698 = sbr.rel (%p4696) target = $region44
      $region43: #{tpu_custom_call.1} parent=39 // pred_region
        %s4699 = smul.u32 128, %s15
        %p4700 = scmp.lt.s32.totalorder %s4699, 511
        %s4701 = scalar_select %p4700, %s4699, 511
        %s4702 = smul.addr %s4701, 8
        %s4703 = scalar_lea.vmem %s3, %s4702
      $region44: #{tpu_custom_call.1} parent=39 // pred_fallthru
        _
    $region40: #{tpu_custom_call.1} parent=5 // pred_fallthru
      _
  $region6: #{tpu_custom_call.1} parent=0 // loop_footer
    %s13 = sadd.s32 1, %s9
  $region7: #{tpu_custom_call.1} parent=0 // loop_footer_branch
    %8 = sbr.rel target = $region3
  $region8: #{tpu_custom_call.1} parent=0 // loop_exit
    _

</llo_original>
